<compile_context>
chip_gen: v5e
topology: v5e:2x2
jax: 0.10.0
libtpu: 0.0.40
codegen_flags: <defaults>
</compile_context>

<pallas_src>
import math
from functools import partial

import numpy as np
import jax
import jax.numpy as jnp
from jax.experimental import pallas as pl
from jax.experimental.pallas import tpu as pltpu


# ----------------------------- small helpers ---------------------------------------
def _round_up(x, m):
    return ((x + m - 1) // m) * m


def _row_tile(m, max_tile=512):
    mp = _round_up(m, 8)
    tm = min(max_tile, mp)
    while mp % tm:
        tm -= 8
    return mp, tm


def _pick_seq_chunk(L, target=512):
    if L <= target:
        return L
    lc = target
    while L % lc:
        lc -= 8
    return max(lc, 8)


def _sigmoid(x):
    # exp -> EUP, approx reciprocal -> EUP: keeps the VALU free for the scan.
    return pl.reciprocal(1.0 + jnp.exp(-x), approx=True)


def _softplus(x):
    return jnp.maximum(x, 0.0) + jnp.log(1.0 + jnp.exp(-jnp.abs(x)))


# ----------------------- kernel 1: fused LayerNorm + in_proj (bf16 MXU) -------------
def _ln_in_proj_kernel(x_ref, lnw_ref, lnb_ref, w_ref, o_ref, *, eps):
    x = x_ref[...]                                           # f32 (tm, C)
    mu = jnp.mean(x, axis=1, keepdims=True)
    xc = x - mu
    var = jnp.mean(xc * xc, axis=1, keepdims=True)
    xn = xc * jax.lax.rsqrt(var + eps) * lnw_ref[...] + lnb_ref[...]
    o_ref[...] = jnp.dot(xn.astype(jnp.bfloat16), w_ref[...],
                         preferred_element_type=jnp.float32).astype(o_ref.dtype)


def ln_in_proj(x, ln_w, ln_b, w_bf16, eps=1e-5):
    M, C = x.shape
    N = w_bf16.shape[1]
    Mp, tm = _row_tile(M)
    xp = x if Mp == M else jnp.pad(x, ((0, Mp - M), (0, 0)))
    out = pl.pallas_call(
        partial(_ln_in_proj_kernel, eps=eps),
        out_shape=jax.ShapeDtypeStruct((Mp, N), jnp.bfloat16),
        grid=(Mp // tm,),
        in_specs=[pl.BlockSpec((tm, C), lambda i: (i, 0)),
                  pl.BlockSpec((1, C), lambda i: (0, 0)),
                  pl.BlockSpec((1, C), lambda i: (0, 0)),
                  pl.BlockSpec((C, N), lambda i: (0, 0))],
        out_specs=pl.BlockSpec((tm, N), lambda i: (i, 0)),
        compiler_params=pltpu.CompilerParams(dimension_semantics=("parallel",)),
    )(xp.astype(jnp.float32), ln_w.reshape(1, C).astype(jnp.float32),
      ln_b.reshape(1, C).astype(jnp.float32), w_bf16)
    return out if Mp == M else out[:M]


# ----------------------- kernel 2: fused branch-add + out_proj ----------------------
def _add_out_proj_kernel(a_ref, b_ref, w_ref, o_ref):
    y = a_ref[...].astype(jnp.float32) + b_ref[...].astype(jnp.float32)
    o_ref[...] = jnp.dot(y.astype(jnp.bfloat16), w_ref[...],
                         preferred_element_type=jnp.float32)


def add_out_proj(ya, yb, w_bf16):
    M, K = ya.shape
    N = w_bf16.shape[1]
    Mp, tm = _row_tile(M)
    if Mp != M:
        ya = jnp.pad(ya, ((0, Mp - M), (0, 0)))
        yb = jnp.pad(yb, ((0, Mp - M), (0, 0)))
    out = pl.pallas_call(
        _add_out_proj_kernel,
        out_shape=jax.ShapeDtypeStruct((Mp, N), jnp.float32),
        grid=(Mp // tm,),
        in_specs=[pl.BlockSpec((tm, K), lambda i: (i, 0)),
                  pl.BlockSpec((tm, K), lambda i: (i, 0)),
                  pl.BlockSpec((K, N), lambda i: (0, 0))],
        out_specs=pl.BlockSpec((tm, N), lambda i: (i, 0)),
        compiler_params=pltpu.CompilerParams(dimension_semantics=("parallel",)),
    )(ya, yb, w_bf16)
    return out if Mp == M else out[:M]


# ----------- kernel 3: fused conv1d + SiLU + x_proj + lane-packed selective scan ----
# Lane packing: channels 0:d_inner = forward branch, d_inner:2*d_inner = backward branch
# (backward branch data is pre-reversed in L, so both branches share one causal scan).
def _mamba_scan_kernel(xz_ref, convw_ref, convb_ref, wproj_ref, at_ref, d_ref, dtb_ref,
                       o_ref,
                       xc_ref, gate_ref, dt_ref, bc_ref, y_ref, tail_ref, h_ref,
                       *, Lc, dp, d_half, d_state, d_conv, blk, ch, tail):
    f32 = jnp.float32

    @pl.when(pl.program_id(1) == 0)
    def _init():                                  # new (batch) sequence: reset carries
        h_ref[...] = jnp.zeros_like(h_ref)
        tail_ref[...] = jnp.zeros_like(tail_ref)

    convw = convw_ref[...]                        # (d_conv, dp)
    convb = convb_ref[...]                        # (1, dp)
    A_t = at_ref[...]                             # (d_state, dp)
    Dv = d_ref[...]                               # (1, dp)
    dtb = dtb_ref[...]                            # (1, dp)

    # ---- prologue: causal depthwise conv1d + SiLU, z-gate, hoisted dt/B/C projection --
    nch = Lc // ch

    def prologue(c, prev_tail):
        base = pl.multiple_of(c * ch, ch)
        rows = xz_ref[0, pl.ds(base, ch), :]                       # (ch, 2*dp) bf16
        xs_c = rows[:, :dp].astype(f32)
        z_c = rows[:, dp:].astype(f32)
        gate_ref[pl.ds(base, ch), :] = z_c * _sigmoid(z_c)         # silu(z)
        ext = jnp.concatenate([prev_tail, xs_c], axis=0)           # (tail + ch, dp)
        acc = convb + convw[d_conv - 1:d_conv, :] * xs_c
        for s in range(1, d_conv):                                 # causal taps
            acc = acc + convw[d_conv - 1 - s:d_conv - s, :] * ext[tail - s:tail - s + ch, :]
        xc = acc * _sigmoid(acc)                                   # SiLU
        xc_ref[pl.ds(base, ch), :] = xc
        # hoisted projection: one M=ch, K=dp bf16 MXU matmul (dt | B | C packed columns)
        proj = jnp.dot(xc.astype(jnp.bfloat16), wproj_ref[...],
                       preferred_element_type=f32)                 # (ch, 2*dp)
        dt_ref[pl.ds(base, ch), :] = _softplus(proj[:, :dp] + dtb)
        bc_ref[pl.ds(base, ch), :] = proj[:, dp:dp + 4 * d_state]  # [Bf|Bb|Cf|Cb]
        return xs_c[ch - tail:, :]

    tail_ref[...] = jax.lax.fori_loop(0, nch, prologue, tail_ref[...])

    # ---- blocked selective scan: associative within-block combine (serial depth L/blk) -
    nblk = Lc // blk

    def scan_block(lb, h):
        base = pl.multiple_of(lb * blk, blk)
        dt_b = dt_ref[pl.ds(base, blk), :]                         # (blk, dp) softplus'd
        u_b = xc_ref[pl.ds(base, blk), :]                          # (blk, dp)
        g_b = gate_ref[pl.ds(base, blk), :]                        # (blk, dp)
        bc_b = bc_ref[pl.ds(base, blk), :]                         # (blk, 4*d_state)
        du = dt_b * u_b
        Bf = bc_b[:, 0:d_state]
        Bb = bc_b[:, d_state:2 * d_state]
        Cf = bc_b[:, 2 * d_state:3 * d_state]
        Cb = bc_b[:, 3 * d_state:4 * d_state]
        # vectorized, off the serial path: discretized transitions for all blk steps
        dA3 = jnp.exp(dt_b[:, None, :] * A_t[None, :, :])          # (blk, S, dp)  EUP
        dBu3 = jnp.concatenate([Bf[:, :, None] * du[:, None, :d_half],
                                Bb[:, :, None] * du[:, None, d_half:]], axis=2)
        Cx3 = jnp.concatenate([jnp.broadcast_to(Cf[:, :, None], (blk, d_state, d_half)),
                               jnp.broadcast_to(Cb[:, :, None], (blk, d_state, d_half))],
                              axis=2)
        a = [dA3[s] for s in range(blk)]                           # per-step (S, dp) slabs
        bv = [dBu3[s] for s in range(blk)]
        # Hillis-Steele inclusive prefix of affine maps h -> a*h + b  (log2(blk) levels)
        sh = 1
        while sh < blk:
            na, nb = list(a), list(bv)
            for s in range(sh, blk):
                nb[s] = a[s] * bv[s - sh] + bv[s]
                na[s] = a[s] * a[s - sh]
            a, bv = na, nb
            sh *= 2
        hs = [a[s] * h + bv[s] for s in range(blk)]                # h after each step
        y_rows = [jnp.sum(Cx3[s] * hs[s], axis=0, keepdims=True) for s in range(blk)]
        y = jnp.concatenate(y_rows, axis=0)                        # (blk, dp)
        y_ref[pl.ds(base, blk), :] = (y + Dv * u_b) * g_b
        return hs[blk - 1]

    h_ref[...] = jax.lax.fori_loop(0, nblk, scan_block, h_ref[...])
    # single lane-dense bf16 store of the whole chunk
    o_ref[0, :, :] = y_ref[...].astype(o_ref.dtype)


def mamba_scan(xz_packed, P):
    B, Lp, two_dp = xz_packed.shape
    dp = two_dp // 2                      # packed channels = 2 * d_inner
    d_half = dp // 2                      # d_inner per branch
    d_state = P["A_t"].shape[0]
    d_conv = P["conv_w"].shape[0]
    Lc = _pick_seq_chunk(Lp, target=512)
    ch = min(128, Lc)
    while Lc % ch:
        ch -= 8
    blk, tail = 8, 8
    grid = (B, Lp // Lc)

    cost = pl.CostEstimate(
        flops=int(B * Lp * (2 * dp * 2 * dp + 20 * d_state * dp + 20 * dp)),
        transcendentals=int(B * Lp * (d_state * dp + 5 * dp)),
        bytes_accessed=int(B * Lp * (2 * dp + dp) * 2 + dp * 2 * dp * 2))

    return pl.pallas_call(
        partial(_mamba_scan_kernel, Lc=Lc, dp=dp, d_half=d_half, d_state=d_state,
                d_conv=d_conv, blk=blk, ch=ch, tail=tail),
        out_shape=jax.ShapeDtypeStruct((B, Lp, dp), jnp.bfloat16),
        grid=grid,
        in_specs=[pl.BlockSpec((1, Lc, 2 * dp), lambda b, lc: (b, lc, 0)),   # [x | z] packed
                  pl.BlockSpec((d_conv, dp), lambda b, lc: (0, 0)),          # conv_w
                  pl.BlockSpec((1, dp), lambda b, lc: (0, 0)),               # conv_b
                  pl.BlockSpec((dp, 2 * dp), lambda b, lc: (0, 0)),          # [dt|B|C] proj
                  pl.BlockSpec((d_state, dp), lambda b, lc: (0, 0)),         # A_t
                  pl.BlockSpec((1, dp), lambda b, lc: (0, 0)),               # D
                  pl.BlockSpec((1, dp), lambda b, lc: (0, 0))],              # dt_bias
        out_specs=pl.BlockSpec((1, Lc, dp), lambda b, lc: (b, lc, 0)),
        scratch_shapes=[pltpu.VMEM((Lc, dp), jnp.float32),          # xc (conv+SiLU)
                        pltpu.VMEM((Lc, dp), jnp.float32),          # gate = silu(z)
                        pltpu.VMEM((Lc, dp), jnp.float32),          # softplus(dt)
                        pltpu.VMEM((Lc, 4 * d_state), jnp.float32),  # [Bf|Bb|Cf|Cb]
                        pltpu.VMEM((Lc, dp), jnp.float32),          # y chunk accumulator
                        pltpu.VMEM((tail, dp), jnp.float32),        # conv tail carry
                        pltpu.VMEM((d_state, dp), jnp.float32)],    # SSM state carry
        compiler_params=pltpu.CompilerParams(
            dimension_semantics=("parallel", "arbitrary"),
            vmem_limit_bytes=48 * 1024 * 1024),
        cost_estimate=cost,
    )(xz_packed, P["conv_w"], P["conv_b"], P["W_proj"], P["A_t"], P["D"], P["dt_bias"])


# ----------------------------- MambaLayer forward -----------------------------------
def mamba_layer_forward(x, P):
    B, C = x.shape[:2]
    sp = x.shape[2:]
    L = int(np.prod(sp))
    dp = P["A_t"].shape[1]                # 2 * d_inner (fwd+bwd lane-packed channels)
    d_in = dp // 2
    # TODO(synk): NCDHW<->token transpose and the backward-branch L-reverse (and its undo)
    # remain XLA-level glue; an in-kernel sublane reverse has no clean Pallas primitive.
    xt = jnp.transpose(x.reshape(B, C, L), (0, 2, 1)).reshape(B * L, C)
    xz = ln_in_proj(xt, P["ln_w"], P["ln_b"], P["W_in"]).reshape(B, L, 2 * d_in)  # bf16
    x_f = xz[..., :d_in]
    z_f = xz[..., d_in:]
    # lane layout: [x_fwd | x_bwd(reversed) | z_fwd | z_bwd(reversed)]
    packed = jnp.concatenate([x_f, x_f[:, ::-1, :], z_f, z_f[:, ::-1, :]], axis=-1)
    Lp = _round_up(L, 8)
    if Lp != L:
        packed = jnp.pad(packed, ((0, 0), (0, Lp - L), (0, 0)))
    y_pk = mamba_scan(packed, P)                                   # (B, Lp, 2*d_in) bf16
    y_f = y_pk[:, :L, :d_in]
    y_b = y_pk[:, :L, d_in:][:, ::-1, :]
    out = add_out_proj(y_f.reshape(B * L, d_in), y_b.reshape(B * L, d_in), P["W_out"])
    return jnp.transpose(out.reshape(B, L, C), (0, 2, 1)).reshape(B, C, *sp)


# ----------------------------- deterministic synthetic weights ----------------------
def init_params(dim, d_state=16, d_conv=4, expand=2, seed=42):
    d_inner = expand * dim
    dt_rank = math.ceil(dim / 16)
    key = jax.random.PRNGKey(seed)
    cnt = [0]

    def rnd(shape, scale=0.2):
        cnt[0] += 1
        return scale * jax.random.normal(jax.random.fold_in(key, cnt[0]), shape, jnp.float32)

    def branch():
        W_x = rnd((d_inner, dt_rank + 2 * d_state))
        W_dt = rnd((dt_rank, d_inner))
        A_log = jnp.log(jnp.tile(jnp.arange(1, d_state + 1, dtype=jnp.float32)[None, :],
                                 (d_inner, 1)))
        return dict(
            conv_w=rnd((d_inner, d_conv), 0.3).T,        # (d_conv, d_inner)
            conv_b=rnd((1, d_inner), 0.1),
            w_dt=W_x[:, :dt_rank] @ W_dt,                # dt_proj folded into x_proj
            w_b=W_x[:, dt_rank:dt_rank + d_state],
            w_c=W_x[:, dt_rank + d_state:],
            A_t=(-jnp.exp(A_log)).T,                     # (d_state, d_inner)
            D=jnp.ones((1, d_inner), jnp.float32),
            dt_bias=rnd((1, d_inner), 0.1),
        )

    f, b = branch(), branch()
    dp = 2 * d_inner
    # packed projection weight: rows 0:d_inner = fwd channels, d_inner:2*d_inner = bwd.
    # columns: [dt_f | dt_b | B_f | B_b | C_f | C_b | zero pad]  -> width 2*dp (lane dense)
    W_proj = jnp.zeros((dp, 2 * dp), jnp.float32)
    W_proj = W_proj.at[:d_inner, 0:d_inner].set(f["w_dt"])
    W_proj = W_proj.at[d_inner:, d_inner:dp].set(b["w_dt"])
    W_proj = W_proj.at[:d_inner, dp:dp + d_state].set(f["w_b"])
    W_proj = W_proj.at[d_inner:, dp + d_state:dp + 2 * d_state].set(b["w_b"])
    W_proj = W_proj.at[:d_inner, dp + 2 * d_state:dp + 3 * d_state].set(f["w_c"])
    W_proj = W_proj.at[d_inner:, dp + 3 * d_state:dp + 4 * d_state].set(b["w_c"])

    return dict(
        conv_w=jnp.concatenate([f["conv_w"], b["conv_w"]], axis=1),     # (d_conv, dp)
        conv_b=jnp.concatenate([f["conv_b"], b["conv_b"]], axis=1),     # (1, dp)
        A_t=jnp.concatenate([f["A_t"], b["A_t"]], axis=1),              # (d_state, dp)
        D=jnp.concatenate([f["D"], b["D"]], axis=1),                    # (1, dp)
        dt_bias=jnp.concatenate([f["dt_bias"], b["dt_bias"]], axis=1),  # (1, dp)
        W_proj=W_proj.astype(jnp.bfloat16),                             # (dp, 2*dp)
        ln_w=jnp.ones((dim,), jnp.float32),
        ln_b=jnp.zeros((dim,), jnp.float32),
        W_in=rnd((dim, 2 * d_inner)).astype(jnp.bfloat16),              # shared in_proj
        W_out=rnd((d_inner, dim)).astype(jnp.bfloat16),                 # shared out_proj
    )


# ----------------------------- main --------------------------------------------------
if __name__ == "__main__":
    DIM = 32                                                  # MambaLayer(dim=32)
    params = init_params(DIM)
    x_in = jax.random.normal(jax.random.PRNGKey(0), (2, DIM, 8, 8, 8), jnp.float32)

    fwd_fn = jax.jit(lambda inp: mamba_layer_forward(inp, params))
    out = jax.block_until_ready(fwd_fn(x_in))

    assert out.shape == x_in.shape, out.shape
    assert bool(jnp.all(jnp.isfinite(out)))
    print("KERNEL_OK")
</pallas_src>

<mosaic_0001>
module attributes {stable_mosaic.version = 11 : i64} {
  func.func @_ln_in_proj_kernel(%arg0: i32, %arg1: memref<512x32xf32, #tpu.memory_space<vmem>>, %arg2: memref<1x32xf32, #tpu.memory_space<vmem>>, %arg3: memref<1x32xf32, #tpu.memory_space<vmem>>, %arg4: memref<32x128xbf16, #tpu.memory_space<vmem>>, %arg5: memref<512x128xbf16, #tpu.memory_space<vmem>>) attributes {dimension_semantics = [#tpu.dimension_semantics<parallel>], iteration_bounds = array<i64: 2>, scalar_prefetch = 0 : i64, scratch_operands = 0 : i64, tpu.core_type = #tpu.core_type<tc>, window_params = [{transform_indices = @transform_0, window_bounds = array<i64: 512, 32>}, {pipeline_mode = #tpu.pipeline_mode<synchronous>, transform_indices = @transform_1, window_bounds = array<i64: 1, 32>}, {pipeline_mode = #tpu.pipeline_mode<synchronous>, transform_indices = @transform_2, window_bounds = array<i64: 1, 32>}, {pipeline_mode = #tpu.pipeline_mode<synchronous>, transform_indices = @transform_3, window_bounds = array<i64: 32, 128>}, {transform_indices = @transform_4, window_bounds = array<i64: 512, 128>}]} {
    %c0 = arith.constant 0 : index
    %c0_0 = arith.constant 0 : index
    %0 = vector.load %arg1[%c0, %c0_0] : memref<512x32xf32, #tpu.memory_space<vmem>>, vector<512x32xf32>
    %cst = arith.constant dense<0.000000e+00> : vector<512xf32>
    %1 = vector.multi_reduction <add>, %0, %cst [1] : vector<512x32xf32> to vector<512xf32>
    %2 = vector.shape_cast %1 : vector<512xf32> to vector<512x1xf32>
    %cst_1 = arith.constant 3.200000e+01 : f32
    %3 = vector.broadcast %cst_1 : f32 to vector<512x1xf32>
    %4 = arith.divf %2, %3 : vector<512x1xf32>
    %5 = vector.broadcast %4 : vector<512x1xf32> to vector<512x32xf32>
    %6 = arith.subf %0, %5 : vector<512x32xf32>
    %7 = arith.mulf %6, %6 : vector<512x32xf32>
    %cst_2 = arith.constant dense<0.000000e+00> : vector<512xf32>
    %8 = vector.multi_reduction <add>, %7, %cst_2 [1] : vector<512x32xf32> to vector<512xf32>
    %9 = vector.shape_cast %8 : vector<512xf32> to vector<512x1xf32>
    %cst_3 = arith.constant 3.200000e+01 : f32
    %10 = vector.broadcast %cst_3 : f32 to vector<512x1xf32>
    %11 = arith.divf %9, %10 : vector<512x1xf32>
    %cst_4 = arith.constant 9.99999974E-6 : f32
    %12 = vector.broadcast %cst_4 : f32 to vector<512x1xf32>
    %13 = arith.addf %11, %12 : vector<512x1xf32>
    %14 = math.rsqrt %13 : vector<512x1xf32>
    %15 = vector.broadcast %14 : vector<512x1xf32> to vector<512x32xf32>
    %16 = arith.mulf %6, %15 : vector<512x32xf32>
    %c0_5 = arith.constant 0 : index
    %c0_6 = arith.constant 0 : index
    %17 = vector.load %arg2[%c0_5, %c0_6] : memref<1x32xf32, #tpu.memory_space<vmem>>, vector<1x32xf32>
    %18 = vector.broadcast %17 : vector<1x32xf32> to vector<512x32xf32>
    %19 = arith.mulf %16, %18 : vector<512x32xf32>
    %c0_7 = arith.constant 0 : index
    %c0_8 = arith.constant 0 : index
    %20 = vector.load %arg3[%c0_7, %c0_8] : memref<1x32xf32, #tpu.memory_space<vmem>>, vector<1x32xf32>
    %21 = vector.broadcast %20 : vector<1x32xf32> to vector<512x32xf32>
    %22 = arith.addf %19, %21 : vector<512x32xf32>
    %23 = arith.truncf %22 : vector<512x32xf32> to vector<512x32xbf16>
    %c0_9 = arith.constant 0 : index
    %c0_10 = arith.constant 0 : index
    %24 = vector.load %arg4[%c0_9, %c0_10] : memref<32x128xbf16, #tpu.memory_space<vmem>>, vector<32x128xbf16>
    %cst_11 = arith.constant dense<0.000000e+00> : vector<512x128xf32>
    %25 = tpu.matmul %23, %24, %cst_11 {dimension_numbers = #tpu.dot_dimension_numbers<[1], [0], [0], [1], [0, 0, 1, 1], [], []>} : vector<512x32xbf16>, vector<32x128xbf16>, vector<512x128xf32> -> vector<512x128xf32>
    %26 = arith.truncf %25 : vector<512x128xf32> to vector<512x128xbf16>
    %c0_12 = arith.constant 0 : index
    %c0_13 = arith.constant 0 : index
    %27 = vector.load %arg5[%c0_12, %c0_13] : memref<512x128xbf16, #tpu.memory_space<vmem>>, vector<512x128xbf16>
    tpu.vector_store %arg5[%c0_12, %c0_13], %26 {strides = array<i32>} : memref<512x128xbf16, #tpu.memory_space<vmem>>, vector<512x128xbf16>,
    return
  }
  func.func @transform_0(%arg0: i32) -> (i32, i32) {
    %c0_i32 = arith.constant 0 : i32
    %c0_i32_0 = arith.constant 0 : i32
    return %arg0, %c0_i32 : i32, i32
  }
  func.func @transform_1(%arg0: i32) -> (i32, i32) {
    %c0_i32 = arith.constant 0 : i32
    %c0_i32_0 = arith.constant 0 : i32
    %c0_i32_1 = arith.constant 0 : i32
    return %c0_i32, %c0_i32_0 : i32, i32
  }
  func.func @transform_2(%arg0: i32) -> (i32, i32) {
    %c0_i32 = arith.constant 0 : i32
    %c0_i32_0 = arith.constant 0 : i32
    %c0_i32_1 = arith.constant 0 : i32
    return %c0_i32, %c0_i32_0 : i32, i32
  }
  func.func @transform_3(%arg0: i32) -> (i32, i32) {
    %c0_i32 = arith.constant 0 : i32
    %c0_i32_0 = arith.constant 0 : i32
    %c0_i32_1 = arith.constant 0 : i32
    return %c0_i32, %c0_i32_0 : i32, i32
  }
  func.func @transform_4(%arg0: i32) -> (i32, i32) {
    %c0_i32 = arith.constant 0 : i32
    %c0_i32_0 = arith.constant 0 : i32
    return %arg0, %c0_i32 : i32, i32
  }
}

module attributes {stable_mosaic.version = 11 : i64} {
  func.func @_mamba_scan_kernel(%arg0: i32, %arg1: i32, %arg2: memref<1x512x256xbf16, #tpu.memory_space<vmem>>, %arg3: memref<4x128xf32, #tpu.memory_space<vmem>>, %arg4: memref<1x128xf32, #tpu.memory_space<vmem>>, %arg5: memref<128x256xbf16, #tpu.memory_space<vmem>>, %arg6: memref<16x128xf32, #tpu.memory_space<vmem>>, %arg7: memref<1x128xf32, #tpu.memory_space<vmem>>, %arg8: memref<1x128xf32, #tpu.memory_space<vmem>>, %arg9: memref<1x512x128xbf16, #tpu.memory_space<vmem>>, %arg10: memref<512x128xf32, #tpu.memory_space<vmem>>, %arg11: memref<512x128xf32, #tpu.memory_space<vmem>>, %arg12: memref<512x128xf32, #tpu.memory_space<vmem>>, %arg13: memref<512x64xf32, #tpu.memory_space<vmem>>, %arg14: memref<512x128xf32, #tpu.memory_space<vmem>>, %arg15: memref<8x128xf32, #tpu.memory_space<vmem>>, %arg16: memref<16x128xf32, #tpu.memory_space<vmem>>) attributes {dimension_semantics = [#tpu.dimension_semantics<parallel>, #tpu.dimension_semantics<arbitrary>], iteration_bounds = array<i64: 2, 1>, scalar_prefetch = 0 : i64, scratch_operands = 7 : i64, tpu.core_type = #tpu.core_type<tc>, window_params = [{transform_indices = @transform_0, window_bounds = array<i64: 1, 512, 256>}, {pipeline_mode = #tpu.pipeline_mode<synchronous>, transform_indices = @transform_1, window_bounds = array<i64: 4, 128>}, {pipeline_mode = #tpu.pipeline_mode<synchronous>, transform_indices = @transform_2, window_bounds = array<i64: 1, 128>}, {pipeline_mode = #tpu.pipeline_mode<synchronous>, transform_indices = @transform_3, window_bounds = array<i64: 128, 256>}, {pipeline_mode = #tpu.pipeline_mode<synchronous>, transform_indices = @transform_4, window_bounds = array<i64: 16, 128>}, {pipeline_mode = #tpu.pipeline_mode<synchronous>, transform_indices = @transform_5, window_bounds = array<i64: 1, 128>}, {pipeline_mode = #tpu.pipeline_mode<synchronous>, transform_indices = @transform_6, window_bounds = array<i64: 1, 128>}, {transform_indices = @transform_7, window_bounds = array<i64: 1, 512, 128>}]} {
    %c0_i32 = arith.constant 0 : i32
    %0 = arith.cmpi eq, %arg1, %c0_i32 : i32
    %1 = arith.extui %0 : i1 to i32
    %c0_i32_0 = arith.constant 0 : i32
    %2 = arith.cmpi ne, %1, %c0_i32_0 : i32
    scf.if %2 {
      %cst = arith.constant 0.000000e+00 : f32
      %21 = vector.broadcast %cst : f32 to vector<16x128xf32>
      %c0_28 = arith.constant 0 : index
      %c0_29 = arith.constant 0 : index
      %22 = vector.load %arg16[%c0_28, %c0_29] : memref<16x128xf32, #tpu.memory_space<vmem>>, vector<16x128xf32>
      tpu.vector_store %arg16[%c0_28, %c0_29], %21 {strides = array<i32>} : memref<16x128xf32, #tpu.memory_space<vmem>>, vector<16x128xf32>,
      %cst_30 = arith.constant 0.000000e+00 : f32
      %23 = vector.broadcast %cst_30 : f32 to vector<8x128xf32>
      %c0_31 = arith.constant 0 : index
      %c0_32 = arith.constant 0 : index
      %24 = vector.load %arg15[%c0_31, %c0_32] : memref<8x128xf32, #tpu.memory_space<vmem>>, vector<8x128xf32>
      tpu.vector_store %arg15[%c0_31, %c0_32], %23 {strides = array<i32>} : memref<8x128xf32, #tpu.memory_space<vmem>>, vector<8x128xf32>,
    } else {
    }
    %c0 = arith.constant 0 : index
    %c0_1 = arith.constant 0 : index
    %3 = vector.load %arg3[%c0, %c0_1] : memref<4x128xf32, #tpu.memory_space<vmem>>, vector<4x128xf32>
    %c0_2 = arith.constant 0 : index
    %c0_3 = arith.constant 0 : index
    %4 = vector.load %arg4[%c0_2, %c0_3] : memref<1x128xf32, #tpu.memory_space<vmem>>, vector<1x128xf32>
    %c0_4 = arith.constant 0 : index
    %c0_5 = arith.constant 0 : index
    %5 = vector.load %arg6[%c0_4, %c0_5] : memref<16x128xf32, #tpu.memory_space<vmem>>, vector<16x128xf32>
    %c0_6 = arith.constant 0 : index
    %c0_7 = arith.constant 0 : index
    %6 = vector.load %arg7[%c0_6, %c0_7] : memref<1x128xf32, #tpu.memory_space<vmem>>, vector<1x128xf32>
    %c0_8 = arith.constant 0 : index
    %c0_9 = arith.constant 0 : index
    %7 = vector.load %arg8[%c0_8, %c0_9] : memref<1x128xf32, #tpu.memory_space<vmem>>, vector<1x128xf32>
    %c0_10 = arith.constant 0 : index
    %c0_11 = arith.constant 0 : index
    %8 = vector.load %arg15[%c0_10, %c0_11] : memref<8x128xf32, #tpu.memory_space<vmem>>, vector<8x128xf32>
    %c0_i32_12 = arith.constant 0 : i32
    %c4_i32 = arith.constant 4 : i32
    %9 = arith.addi %c0_i32_12, %c4_i32 : i32
    %c1_i32 = arith.constant 1 : i32
    %10 = scf.for %arg17 = %c0_i32_12 to %9 step %c1_i32 iter_args(%arg18 = %8) -> (vector<8x128xf32>)  : i32 {
      %c128_i32 = arith.constant 128 : i32
      %21 = arith.muli %arg17, %c128_i32 : i32
      %22 = tpu.assume_multiple %21, 128 : i32
      %c0_28 = arith.constant 0 : index
      %23 = arith.index_cast %22 : i32 to index
      %c0_29 = arith.constant 0 : index
      %24 = vector.load %arg2[%c0_28, %23, %c0_29] : memref<1x512x256xbf16, #tpu.memory_space<vmem>>, vector<1x128x256xbf16>
      %25 = vector.shape_cast %24 : vector<1x128x256xbf16> to vector<128x256xbf16>
      %26 = vector.extract_strided_slice %25 {offsets = [0, 0], sizes = [128, 128], strides = [1, 1]} : vector<128x256xbf16> to vector<128x128xbf16>
      %27 = arith.extf %26 : vector<128x128xbf16> to vector<128x128xf32>
      %28 = vector.extract_strided_slice %25 {offsets = [0, 128], sizes = [128, 128], strides = [1, 1]} : vector<128x256xbf16> to vector<128x128xbf16>
      %29 = arith.extf %28 : vector<128x128xbf16> to vector<128x128xf32>
      %cst = arith.constant 0.000000e+00 : f32
      %30 = vector.broadcast %cst : f32 to vector<128x128xf32>
      %31 = arith.subf %30, %29 : vector<128x128xf32>
      %32 = math.exp %31 : vector<128x128xf32>
      %cst_30 = arith.constant 1.000000e+00 : f32
      %33 = vector.broadcast %cst_30 : f32 to vector<128x128xf32>
      %34 = arith.addf %33, %32 : vector<128x128xf32>
      %35 = tpu.reciprocal %34 {approx = true} : vector<128x128xf32> -> vector<128x128xf32>
      %36 = arith.mulf %29, %35 : vector<128x128xf32>
      %37 = arith.index_cast %22 : i32 to index
      %c0_31 = arith.constant 0 : index
      %38 = vector.load %arg11[%37, %c0_31] : memref<512x128xf32, #tpu.memory_space<vmem>>, vector<128x128xf32>
      tpu.vector_store %arg11[%37, %c0_31], %36 {strides = array<i32>} : memref<512x128xf32, #tpu.memory_space<vmem>>, vector<128x128xf32>,
      %39 = tpu.concatenate %arg18, %27 in 0 : vector<8x128xf32>, vector<128x128xf32> -> vector<136x128xf32>
      %40 = vector.extract_strided_slice %3 {offsets = [3, 0], sizes = [1, 128], strides = [1, 1]} : vector<4x128xf32> to vector<1x128xf32>
      %41 = vector.broadcast %40 : vector<1x128xf32> to vector<128x128xf32>
      %42 = arith.mulf %41, %27 : vector<128x128xf32>
      %43 = vector.broadcast %4 : vector<1x128xf32> to vector<128x128xf32>
      %44 = arith.addf %43, %42 : vector<128x128xf32>
      %45 = vector.extract_strided_slice %3 {offsets = [2, 0], sizes = [1, 128], strides = [1, 1]} : vector<4x128xf32> to vector<1x128xf32>
      %46 = vector.extract_strided_slice %39 {offsets = [7, 0], sizes = [128, 128], strides = [1, 1]} : vector<136x128xf32> to vector<128x128xf32>
      %47 = vector.broadcast %45 : vector<1x128xf32> to vector<128x128xf32>
      %48 = arith.mulf %47, %46 : vector<128x128xf32>
      %49 = arith.addf %44, %48 : vector<128x128xf32>
      %50 = vector.extract_strided_slice %3 {offsets = [1, 0], sizes = [1, 128], strides = [1, 1]} : vector<4x128xf32> to vector<1x128xf32>
      %51 = vector.extract_strided_slice %39 {offsets = [6, 0], sizes = [128, 128], strides = [1, 1]} : vector<136x128xf32> to vector<128x128xf32>
      %52 = vector.broadcast %50 : vector<1x128xf32> to vector<128x128xf32>
      %53 = arith.mulf %52, %51 : vector<128x128xf32>
      %54 = arith.addf %49, %53 : vector<128x128xf32>
      %55 = vector.extract_strided_slice %3 {offsets = [0, 0], sizes = [1, 128], strides = [1, 1]} : vector<4x128xf32> to vector<1x128xf32>
      %56 = vector.extract_strided_slice %39 {offsets = [5, 0], sizes = [128, 128], strides = [1, 1]} : vector<136x128xf32> to vector<128x128xf32>
      %57 = vector.broadcast %55 : vector<1x128xf32> to vector<128x128xf32>
      %58 = arith.mulf %57, %56 : vector<128x128xf32>
      %59 = arith.addf %54, %58 : vector<128x128xf32>
      %cst_32 = arith.constant 0.000000e+00 : f32
      %60 = vector.broadcast %cst_32 : f32 to vector<128x128xf32>
      %61 = arith.subf %60, %59 : vector<128x128xf32>
      %62 = math.exp %61 : vector<128x128xf32>
      %cst_33 = arith.constant 1.000000e+00 : f32
      %63 = vector.broadcast %cst_33 : f32 to vector<128x128xf32>
      %64 = arith.addf %63, %62 : vector<128x128xf32>
      %65 = tpu.reciprocal %64 {approx = true} : vector<128x128xf32> -> vector<128x128xf32>
      %66 = arith.mulf %59, %65 : vector<128x128xf32>
      %67 = arith.index_cast %22 : i32 to index
      %c0_34 = arith.constant 0 : index
      %68 = vector.load %arg10[%67, %c0_34] : memref<512x128xf32, #tpu.memory_space<vmem>>, vector<128x128xf32>
      tpu.vector_store %arg10[%67, %c0_34], %66 {strides = array<i32>} : memref<512x128xf32, #tpu.memory_space<vmem>>, vector<128x128xf32>,
      %69 = arith.truncf %66 : vector<128x128xf32> to vector<128x128xbf16>
      %c0_35 = arith.constant 0 : index
      %c0_36 = arith.constant 0 : index
      %70 = vector.load %arg5[%c0_35, %c0_36] : memref<128x256xbf16, #tpu.memory_space<vmem>>, vector<128x256xbf16>
      %cst_37 = arith.constant dense<0.000000e+00> : vector<128x256xf32>
      %71 = tpu.matmul %69, %70, %cst_37 {dimension_numbers = #tpu.dot_dimension_numbers<[1], [0], [0], [1], [0, 0, 1, 1], [], []>} : vector<128x128xbf16>, vector<128x256xbf16>, vector<128x256xf32> -> vector<128x256xf32>
      %72 = vector.extract_strided_slice %71 {offsets = [0, 0], sizes = [128, 128], strides = [1, 1]} : vector<128x256xf32> to vector<128x128xf32>
      %73 = vector.broadcast %7 : vector<1x128xf32> to vector<128x128xf32>
      %74 = arith.addf %72, %73 : vector<128x128xf32>
      %cst_38 = arith.constant 0.000000e+00 : f32
      %75 = vector.broadcast %cst_38 : f32 to vector<128x128xf32>
      %76 = arith.maximumf %74, %75 : vector<128x128xf32>
      %77 = math.absf %74 : vector<128x128xf32>
      %cst_39 = arith.constant 0.000000e+00 : f32
      %78 = vector.broadcast %cst_39 : f32 to vector<128x128xf32>
      %79 = arith.subf %78, %77 : vector<128x128xf32>
      %80 = math.exp %79 : vector<128x128xf32>
      %cst_40 = arith.constant 1.000000e+00 : f32
      %81 = vector.broadcast %cst_40 : f32 to vector<128x128xf32>
      %82 = arith.addf %81, %80 : vector<128x128xf32>
      %83 = math.log %82 : vector<128x128xf32>
      %84 = arith.addf %76, %83 : vector<128x128xf32>
      %85 = arith.index_cast %22 : i32 to index
      %c0_41 = arith.constant 0 : index
      %86 = vector.load %arg12[%85, %c0_41] : memref<512x128xf32, #tpu.memory_space<vmem>>, vector<128x128xf32>
      tpu.vector_store %arg12[%85, %c0_41], %84 {strides = array<i32>} : memref<512x128xf32, #tpu.memory_space<vmem>>, vector<128x128xf32>,
      %87 = vector.extract_strided_slice %71 {offsets = [0, 128], sizes = [128, 64], strides = [1, 1]} : vector<128x256xf32> to vector<128x64xf32>
      %88 = arith.index_cast %22 : i32 to index
      %c0_42 = arith.constant 0 : index
      %89 = vector.load %arg13[%88, %c0_42] : memref<512x64xf32, #tpu.memory_space<vmem>>, vector<128x64xf32>
      tpu.vector_store %arg13[%88, %c0_42], %87 {strides = array<i32>} : memref<512x64xf32, #tpu.memory_space<vmem>>, vector<128x64xf32>,
      %90 = vector.extract_strided_slice %27 {offsets = [120, 0], sizes = [8, 128], strides = [1, 1]} : vector<128x128xf32> to vector<8x128xf32>
      scf.yield %90 : vector<8x128xf32>
    }
    %c4_i32_13 = arith.constant 4 : i32
    %c0_14 = arith.constant 0 : index
    %c0_15 = arith.constant 0 : index
    %11 = vector.load %arg15[%c0_14, %c0_15] : memref<8x128xf32, #tpu.memory_space<vmem>>, vector<8x128xf32>
    tpu.vector_store %arg15[%c0_14, %c0_15], %10 {strides = array<i32>} : memref<8x128xf32, #tpu.memory_space<vmem>>, vector<8x128xf32>,
    %c0_16 = arith.constant 0 : index
    %c0_17 = arith.constant 0 : index
    %12 = vector.load %arg16[%c0_16, %c0_17] : memref<16x128xf32, #tpu.memory_space<vmem>>, vector<16x128xf32>
    %c0_i32_18 = arith.constant 0 : i32
    %c64_i32 = arith.constant 64 : i32
    %13 = arith.addi %c0_i32_18, %c64_i32 : i32
    %c1_i32_19 = arith.constant 1 : i32
    %14 = scf.for %arg17 = %c0_i32_18 to %13 step %c1_i32_19 iter_args(%arg18 = %12) -> (vector<16x128xf32>)  : i32 {
      %c8_i32 = arith.constant 8 : i32
      %21 = arith.muli %arg17, %c8_i32 : i32
      %22 = tpu.assume_multiple %21, 8 : i32
      %23 = arith.index_cast %22 : i32 to index
      %c0_28 = arith.constant 0 : index
      %24 = vector.load %arg12[%23, %c0_28] : memref<512x128xf32, #tpu.memory_space<vmem>>, vector<8x128xf32>
      %25 = arith.index_cast %22 : i32 to index
      %c0_29 = arith.constant 0 : index
      %26 = vector.load %arg10[%25, %c0_29] : memref<512x128xf32, #tpu.memory_space<vmem>>, vector<8x128xf32>
      %27 = arith.index_cast %22 : i32 to index
      %c0_30 = arith.constant 0 : index
      %28 = vector.load %arg11[%27, %c0_30] : memref<512x128xf32, #tpu.memory_space<vmem>>, vector<8x128xf32>
      %29 = arith.index_cast %22 : i32 to index
      %c0_31 = arith.constant 0 : index
      %30 = vector.load %arg13[%29, %c0_31] : memref<512x64xf32, #tpu.memory_space<vmem>>, vector<8x64xf32>
      %31 = arith.mulf %24, %26 : vector<8x128xf32>
      %32 = vector.extract_strided_slice %30 {offsets = [0, 0], sizes = [8, 16], strides = [1, 1]} : vector<8x64xf32> to vector<8x16xf32>
      %33 = vector.extract_strided_slice %30 {offsets = [0, 16], sizes = [8, 16], strides = [1, 1]} : vector<8x64xf32> to vector<8x16xf32>
      %34 = vector.extract_strided_slice %30 {offsets = [0, 32], sizes = [8, 16], strides = [1, 1]} : vector<8x64xf32> to vector<8x16xf32>
      %35 = vector.extract_strided_slice %30 {offsets = [0, 48], sizes = [8, 16], strides = [1, 1]} : vector<8x64xf32> to vector<8x16xf32>
      %36 = vector.shape_cast %24 : vector<8x128xf32> to vector<8x1x128xf32>
      %37 = vector.shape_cast %5 : vector<16x128xf32> to vector<1x16x128xf32>
      %38 = vector.broadcast %36 : vector<8x1x128xf32> to vector<8x16x128xf32>
      %39 = vector.broadcast %37 : vector<1x16x128xf32> to vector<8x16x128xf32>
      %40 = arith.mulf %38, %39 : vector<8x16x128xf32>
      %41 = math.exp %40 : vector<8x16x128xf32>
      %42 = vector.shape_cast %32 : vector<8x16xf32> to vector<8x16x1xf32>
      %43 = vector.extract_strided_slice %31 {offsets = [0, 0], sizes = [8, 64], strides = [1, 1]} : vector<8x128xf32> to vector<8x64xf32>
      %44 = vector.shape_cast %43 : vector<8x64xf32> to vector<8x1x64xf32>
      %45 = vector.broadcast %42 : vector<8x16x1xf32> to vector<8x16x64xf32>
      %46 = vector.broadcast %44 : vector<8x1x64xf32> to vector<8x16x64xf32>
      %47 = arith.mulf %45, %46 : vector<8x16x64xf32>
      %48 = vector.shape_cast %33 : vector<8x16xf32> to vector<8x16x1xf32>
      %49 = vector.extract_strided_slice %31 {offsets = [0, 64], sizes = [8, 64], strides = [1, 1]} : vector<8x128xf32> to vector<8x64xf32>
      %50 = vector.shape_cast %49 : vector<8x64xf32> to vector<8x1x64xf32>
      %51 = vector.broadcast %48 : vector<8x16x1xf32> to vector<8x16x64xf32>
      %52 = vector.broadcast %50 : vector<8x1x64xf32> to vector<8x16x64xf32>
      %53 = arith.mulf %51, %52 : vector<8x16x64xf32>
      %54 = tpu.concatenate %47, %53 in 2 : vector<8x16x64xf32>, vector<8x16x64xf32> -> vector<8x16x128xf32>
      %55 = vector.shape_cast %34 : vector<8x16xf32> to vector<8x16x1xf32>
      %56 = vector.shape_cast %55 : vector<8x16x1xf32> to vector<8x16x1xf32>
      %57 = vector.broadcast %56 : vector<8x16x1xf32> to vector<8x16x64xf32>
      %58 = vector.shape_cast %35 : vector<8x16xf32> to vector<8x16x1xf32>
      %59 = vector.shape_cast %58 : vector<8x16x1xf32> to vector<8x16x1xf32>
      %60 = vector.broadcast %59 : vector<8x16x1xf32> to vector<8x16x64xf32>
      %61 = tpu.concatenate %57, %60 in 2 : vector<8x16x64xf32>, vector<8x16x64xf32> -> vector<8x16x128xf32>
      %62 = vector.extract_strided_slice %41 {offsets = [0, 0, 0], sizes = [1, 16, 128], strides = [1, 1, 1]} : vector<8x16x128xf32> to vector<1x16x128xf32>
      %63 = vector.shape_cast %62 : vector<1x16x128xf32> to vector<16x128xf32>
      %64 = vector.extract_strided_slice %41 {offsets = [1, 0, 0], sizes = [1, 16, 128], strides = [1, 1, 1]} : vector<8x16x128xf32> to vector<1x16x128xf32>
      %65 = vector.shape_cast %64 : vector<1x16x128xf32> to vector<16x128xf32>
      %66 = vector.extract_strided_slice %41 {offsets = [2, 0, 0], sizes = [1, 16, 128], strides = [1, 1, 1]} : vector<8x16x128xf32> to vector<1x16x128xf32>
      %67 = vector.shape_cast %66 : vector<1x16x128xf32> to vector<16x128xf32>
      %68 = vector.extract_strided_slice %41 {offsets = [3, 0, 0], sizes = [1, 16, 128], strides = [1, 1, 1]} : vector<8x16x128xf32> to vector<1x16x128xf32>
      %69 = vector.shape_cast %68 : vector<1x16x128xf32> to vector<16x128xf32>
      %70 = vector.extract_strided_slice %41 {offsets = [4, 0, 0], sizes = [1, 16, 128], strides = [1, 1, 1]} : vector<8x16x128xf32> to vector<1x16x128xf32>
      %71 = vector.shape_cast %70 : vector<1x16x128xf32> to vector<16x128xf32>
      %72 = vector.extract_strided_slice %41 {offsets = [5, 0, 0], sizes = [1, 16, 128], strides = [1, 1, 1]} : vector<8x16x128xf32> to vector<1x16x128xf32>
      %73 = vector.shape_cast %72 : vector<1x16x128xf32> to vector<16x128xf32>
      %74 = vector.extract_strided_slice %41 {offsets = [6, 0, 0], sizes = [1, 16, 128], strides = [1, 1, 1]} : vector<8x16x128xf32> to vector<1x16x128xf32>
      %75 = vector.shape_cast %74 : vector<1x16x128xf32> to vector<16x128xf32>
      %76 = vector.extract_strided_slice %41 {offsets = [7, 0, 0], sizes = [1, 16, 128], strides = [1, 1, 1]} : vector<8x16x128xf32> to vector<1x16x128xf32>
      %77 = vector.shape_cast %76 : vector<1x16x128xf32> to vector<16x128xf32>
      %78 = vector.extract_strided_slice %54 {offsets = [0, 0, 0], sizes = [1, 16, 128], strides = [1, 1, 1]} : vector<8x16x128xf32> to vector<1x16x128xf32>
      %79 = vector.shape_cast %78 : vector<1x16x128xf32> to vector<16x128xf32>
      %80 = vector.extract_strided_slice %54 {offsets = [1, 0, 0], sizes = [1, 16, 128], strides = [1, 1, 1]} : vector<8x16x128xf32> to vector<1x16x128xf32>
      %81 = vector.shape_cast %80 : vector<1x16x128xf32> to vector<16x128xf32>
      %82 = vector.extract_strided_slice %54 {offsets = [2, 0, 0], sizes = [1, 16, 128], strides = [1, 1, 1]} : vector<8x16x128xf32> to vector<1x16x128xf32>
      %83 = vector.shape_cast %82 : vector<1x16x128xf32> to vector<16x128xf32>
      %84 = vector.extract_strided_slice %54 {offsets = [3, 0, 0], sizes = [1, 16, 128], strides = [1, 1, 1]} : vector<8x16x128xf32> to vector<1x16x128xf32>
      %85 = vector.shape_cast %84 : vector<1x16x128xf32> to vector<16x128xf32>
      %86 = vector.extract_strided_slice %54 {offsets = [4, 0, 0], sizes = [1, 16, 128], strides = [1, 1, 1]} : vector<8x16x128xf32> to vector<1x16x128xf32>
      %87 = vector.shape_cast %86 : vector<1x16x128xf32> to vector<16x128xf32>
      %88 = vector.extract_strided_slice %54 {offsets = [5, 0, 0], sizes = [1, 16, 128], strides = [1, 1, 1]} : vector<8x16x128xf32> to vector<1x16x128xf32>
      %89 = vector.shape_cast %88 : vector<1x16x128xf32> to vector<16x128xf32>
      %90 = vector.extract_strided_slice %54 {offsets = [6, 0, 0], sizes = [1, 16, 128], strides = [1, 1, 1]} : vector<8x16x128xf32> to vector<1x16x128xf32>
      %91 = vector.shape_cast %90 : vector<1x16x128xf32> to vector<16x128xf32>
      %92 = vector.extract_strided_slice %54 {offsets = [7, 0, 0], sizes = [1, 16, 128], strides = [1, 1, 1]} : vector<8x16x128xf32> to vector<1x16x128xf32>
      %93 = vector.shape_cast %92 : vector<1x16x128xf32> to vector<16x128xf32>
      %94 = arith.mulf %65, %79 : vector<16x128xf32>
      %95 = arith.addf %94, %81 : vector<16x128xf32>
      %96 = arith.mulf %65, %63 : vector<16x128xf32>
      %97 = arith.mulf %67, %81 : vector<16x128xf32>
      %98 = arith.addf %97, %83 : vector<16x128xf32>
      %99 = arith.mulf %67, %65 : vector<16x128xf32>
      %100 = arith.mulf %69, %83 : vector<16x128xf32>
      %101 = arith.addf %100, %85 : vector<16x128xf32>
      %102 = arith.mulf %69, %67 : vector<16x128xf32>
      %103 = arith.mulf %71, %85 : vector<16x128xf32>
      %104 = arith.addf %103, %87 : vector<16x128xf32>
      %105 = arith.mulf %71, %69 : vector<16x128xf32>
      %106 = arith.mulf %73, %87 : vector<16x128xf32>
      %107 = arith.addf %106, %89 : vector<16x128xf32>
      %108 = arith.mulf %73, %71 : vector<16x128xf32>
      %109 = arith.mulf %75, %89 : vector<16x128xf32>
      %110 = arith.addf %109, %91 : vector<16x128xf32>
      %111 = arith.mulf %75, %73 : vector<16x128xf32>
      %112 = arith.mulf %77, %91 : vector<16x128xf32>
      %113 = arith.addf %112, %93 : vector<16x128xf32>
      %114 = arith.mulf %77, %75 : vector<16x128xf32>
      %115 = arith.mulf %99, %79 : vector<16x128xf32>
      %116 = arith.addf %115, %98 : vector<16x128xf32>
      %117 = arith.mulf %99, %63 : vector<16x128xf32>
      %118 = arith.mulf %102, %95 : vector<16x128xf32>
      %119 = arith.addf %118, %101 : vector<16x128xf32>
      %120 = arith.mulf %102, %96 : vector<16x128xf32>
      %121 = arith.mulf %105, %98 : vector<16x128xf32>
      %122 = arith.addf %121, %104 : vector<16x128xf32>
      %123 = arith.mulf %105, %99 : vector<16x128xf32>
      %124 = arith.mulf %108, %101 : vector<16x128xf32>
      %125 = arith.addf %124, %107 : vector<16x128xf32>
      %126 = arith.mulf %108, %102 : vector<16x128xf32>
      %127 = arith.mulf %111, %104 : vector<16x128xf32>
      %128 = arith.addf %127, %110 : vector<16x128xf32>
      %129 = arith.mulf %111, %105 : vector<16x128xf32>
      %130 = arith.mulf %114, %107 : vector<16x128xf32>
      %131 = arith.addf %130, %113 : vector<16x128xf32>
      %132 = arith.mulf %114, %108 : vector<16x128xf32>
      %133 = arith.mulf %123, %79 : vector<16x128xf32>
      %134 = arith.addf %133, %122 : vector<16x128xf32>
      %135 = arith.mulf %123, %63 : vector<16x128xf32>
      %136 = arith.mulf %126, %95 : vector<16x128xf32>
      %137 = arith.addf %136, %125 : vector<16x128xf32>
      %138 = arith.mulf %126, %96 : vector<16x128xf32>
      %139 = arith.mulf %129, %116 : vector<16x128xf32>
      %140 = arith.addf %139, %128 : vector<16x128xf32>
      %141 = arith.mulf %129, %117 : vector<16x128xf32>
      %142 = arith.mulf %132, %119 : vector<16x128xf32>
      %143 = arith.addf %142, %131 : vector<16x128xf32>
      %144 = arith.mulf %132, %120 : vector<16x128xf32>
      %145 = arith.mulf %63, %arg18 : vector<16x128xf32>
      %146 = arith.addf %145, %79 : vector<16x128xf32>
      %147 = arith.mulf %96, %arg18 : vector<16x128xf32>
      %148 = arith.addf %147, %95 : vector<16x128xf32>
      %149 = arith.mulf %117, %arg18 : vector<16x128xf32>
      %150 = arith.addf %149, %116 : vector<16x128xf32>
      %151 = arith.mulf %120, %arg18 : vector<16x128xf32>
      %152 = arith.addf %151, %119 : vector<16x128xf32>
      %153 = arith.mulf %135, %arg18 : vector<16x128xf32>
      %154 = arith.addf %153, %134 : vector<16x128xf32>
      %155 = arith.mulf %138, %arg18 : vector<16x128xf32>
      %156 = arith.addf %155, %137 : vector<16x128xf32>
      %157 = arith.mulf %141, %arg18 : vector<16x128xf32>
      %158 = arith.addf %157, %140 : vector<16x128xf32>
      %159 = arith.mulf %144, %arg18 : vector<16x128xf32>
      %160 = arith.addf %159, %143 : vector<16x128xf32>
      %161 = vector.extract_strided_slice %61 {offsets = [0, 0, 0], sizes = [1, 16, 128], strides = [1, 1, 1]} : vector<8x16x128xf32> to vector<1x16x128xf32>
      %162 = vector.shape_cast %161 : vector<1x16x128xf32> to vector<16x128xf32>
      %163 = arith.mulf %162, %146 : vector<16x128xf32>
      %cst = arith.constant dense<0.000000e+00> : vector<128xf32>
      %164 = vector.multi_reduction <add>, %163, %cst [0] : vector<16x128xf32> to vector<128xf32>
      %165 = vector.shape_cast %164 : vector<128xf32> to vector<1x128xf32>
      %166 = vector.extract_strided_slice %61 {offsets = [1, 0, 0], sizes = [1, 16, 128], strides = [1, 1, 1]} : vector<8x16x128xf32> to vector<1x16x128xf32>
      %167 = vector.shape_cast %166 : vector<1x16x128xf32> to vector<16x128xf32>
      %168 = arith.mulf %167, %148 : vector<16x128xf32>
      %cst_32 = arith.constant dense<0.000000e+00> : vector<128xf32>
      %169 = vector.multi_reduction <add>, %168, %cst_32 [0] : vector<16x128xf32> to vector<128xf32>
      %170 = vector.shape_cast %169 : vector<128xf32> to vector<1x128xf32>
      %171 = vector.extract_strided_slice %61 {offsets = [2, 0, 0], sizes = [1, 16, 128], strides = [1, 1, 1]} : vector<8x16x128xf32> to vector<1x16x128xf32>
      %172 = vector.shape_cast %171 : vector<1x16x128xf32> to vector<16x128xf32>
      %173 = arith.mulf %172, %150 : vector<16x128xf32>
      %cst_33 = arith.constant dense<0.000000e+00> : vector<128xf32>
      %174 = vector.multi_reduction <add>, %173, %cst_33 [0] : vector<16x128xf32> to vector<128xf32>
      %175 = vector.shape_cast %174 : vector<128xf32> to vector<1x128xf32>
      %176 = vector.extract_strided_slice %61 {offsets = [3, 0, 0], sizes = [1, 16, 128], strides = [1, 1, 1]} : vector<8x16x128xf32> to vector<1x16x128xf32>
      %177 = vector.shape_cast %176 : vector<1x16x128xf32> to vector<16x128xf32>
      %178 = arith.mulf %177, %152 : vector<16x128xf32>
      %cst_34 = arith.constant dense<0.000000e+00> : vector<128xf32>
      %179 = vector.multi_reduction <add>, %178, %cst_34 [0] : vector<16x128xf32> to vector<128xf32>
      %180 = vector.shape_cast %179 : vector<128xf32> to vector<1x128xf32>
      %181 = vector.extract_strided_slice %61 {offsets = [4, 0, 0], sizes = [1, 16, 128], strides = [1, 1, 1]} : vector<8x16x128xf32> to vector<1x16x128xf32>
      %182 = vector.shape_cast %181 : vector<1x16x128xf32> to vector<16x128xf32>
      %183 = arith.mulf %182, %154 : vector<16x128xf32>
      %cst_35 = arith.constant dense<0.000000e+00> : vector<128xf32>
      %184 = vector.multi_reduction <add>, %183, %cst_35 [0] : vector<16x128xf32> to vector<128xf32>
      %185 = vector.shape_cast %184 : vector<128xf32> to vector<1x128xf32>
      %186 = vector.extract_strided_slice %61 {offsets = [5, 0, 0], sizes = [1, 16, 128], strides = [1, 1, 1]} : vector<8x16x128xf32> to vector<1x16x128xf32>
      %187 = vector.shape_cast %186 : vector<1x16x128xf32> to vector<16x128xf32>
      %188 = arith.mulf %187, %156 : vector<16x128xf32>
      %cst_36 = arith.constant dense<0.000000e+00> : vector<128xf32>
      %189 = vector.multi_reduction <add>, %188, %cst_36 [0] : vector<16x128xf32> to vector<128xf32>
      %190 = vector.shape_cast %189 : vector<128xf32> to vector<1x128xf32>
      %191 = vector.extract_strided_slice %61 {offsets = [6, 0, 0], sizes = [1, 16, 128], strides = [1, 1, 1]} : vector<8x16x128xf32> to vector<1x16x128xf32>
      %192 = vector.shape_cast %191 : vector<1x16x128xf32> to vector<16x128xf32>
      %193 = arith.mulf %192, %158 : vector<16x128xf32>
      %cst_37 = arith.constant dense<0.000000e+00> : vector<128xf32>
      %194 = vector.multi_reduction <add>, %193, %cst_37 [0] : vector<16x128xf32> to vector<128xf32>
      %195 = vector.shape_cast %194 : vector<128xf32> to vector<1x128xf32>
      %196 = vector.extract_strided_slice %61 {offsets = [7, 0, 0], sizes = [1, 16, 128], strides = [1, 1, 1]} : vector<8x16x128xf32> to vector<1x16x128xf32>
      %197 = vector.shape_cast %196 : vector<1x16x128xf32> to vector<16x128xf32>
      %198 = arith.mulf %197, %160 : vector<16x128xf32>
      %cst_38 = arith.constant dense<0.000000e+00> : vector<128xf32>
      %199 = vector.multi_reduction <add>, %198, %cst_38 [0] : vector<16x128xf32> to vector<128xf32>
      %200 = vector.shape_cast %199 : vector<128xf32> to vector<1x128xf32>
      %201 = tpu.concatenate %165, %170, %175, %180, %185, %190, %195, %200 in 0 : vector<1x128xf32>, vector<1x128xf32>, vector<1x128xf32>, vector<1x128xf32>, vector<1x128xf32>, vector<1x128xf32>, vector<1x128xf32>, vector<1x128xf32> -> vector<8x128xf32>
      %202 = vector.broadcast %6 : vector<1x128xf32> to vector<8x128xf32>
      %203 = arith.mulf %202, %26 : vector<8x128xf32>
      %204 = arith.addf %201, %203 : vector<8x128xf32>
      %205 = arith.mulf %204, %28 : vector<8x128xf32>
      %206 = arith.index_cast %22 : i32 to index
      %c0_39 = arith.constant 0 : index
      %207 = vector.load %arg14[%206, %c0_39] : memref<512x128xf32, #tpu.memory_space<vmem>>, vector<8x128xf32>
      tpu.vector_store %arg14[%206, %c0_39], %205 {strides = array<i32>} : memref<512x128xf32, #tpu.memory_space<vmem>>, vector<8x128xf32>,
      scf.yield %160 : vector<16x128xf32>
    }
    %c64_i32_20 = arith.constant 64 : i32
    %c0_21 = arith.constant 0 : index
    %c0_22 = arith.constant 0 : index
    %15 = vector.load %arg16[%c0_21, %c0_22] : memref<16x128xf32, #tpu.memory_space<vmem>>, vector<16x128xf32>
    tpu.vector_store %arg16[%c0_21, %c0_22], %14 {strides = array<i32>} : memref<16x128xf32, #tpu.memory_space<vmem>>, vector<16x128xf32>,
    %c0_23 = arith.constant 0 : index
    %c0_24 = arith.constant 0 : index
    %16 = vector.load %arg14[%c0_23, %c0_24] : memref<512x128xf32, #tpu.memory_space<vmem>>, vector<512x128xf32>
    %17 = arith.truncf %16 : vector<512x128xf32> to vector<512x128xbf16>
    %c0_25 = arith.constant 0 : index
    %c0_26 = arith.constant 0 : index
    %c0_27 = arith.constant 0 : index
    %18 = vector.load %arg9[%c0_25, %c0_26, %c0_27] : memref<1x512x128xbf16, #tpu.memory_space<vmem>>, vector<1x512x128xbf16>
    %19 = vector.shape_cast %18 : vector<1x512x128xbf16> to vector<512x128xbf16>
    %20 = vector.shape_cast %17 : vector<512x128xbf16> to vector<1x512x128xbf16>
    tpu.vector_store %arg9[%c0_25, %c0_26, %c0_27], %20 {strides = array<i32>} : memref<1x512x128xbf16, #tpu.memory_space<vmem>>, vector<1x512x128xbf16>,
    return
  }
  func.func @transform_0(%arg0: i32, %arg1: i32) -> (i32, i32, i32) {
    %c0_i32 = arith.constant 0 : i32
    %c0_i32_0 = arith.constant 0 : i32
    return %arg0, %arg1, %c0_i32 : i32, i32, i32
  }
  func.func @transform_1(%arg0: i32, %arg1: i32) -> (i32, i32) {
    %c0_i32 = arith.constant 0 : i32
    %c0_i32_0 = arith.constant 0 : i32
    %c0_i32_1 = arith.constant 0 : i32
    return %c0_i32, %c0_i32_0 : i32, i32
  }
  func.func @transform_2(%arg0: i32, %arg1: i32) -> (i32, i32) {
    %c0_i32 = arith.constant 0 : i32
    %c0_i32_0 = arith.constant 0 : i32
    %c0_i32_1 = arith.constant 0 : i32
    return %c0_i32, %c0_i32_0 : i32, i32
  }
  func.func @transform_3(%arg0: i32, %arg1: i32) -> (i32, i32) {
    %c0_i32 = arith.constant 0 : i32
    %c0_i32_0 = arith.constant 0 : i32
    %c0_i32_1 = arith.constant 0 : i32
    return %c0_i32, %c0_i32_0 : i32, i32
  }
  func.func @transform_4(%arg0: i32, %arg1: i32) -> (i32, i32) {
    %c0_i32 = arith.constant 0 : i32
    %c0_i32_0 = arith.constant 0 : i32
    %c0_i32_1 = arith.constant 0 : i32
    return %c0_i32, %c0_i32_0 : i32, i32
  }
  func.func @transform_5(%arg0: i32, %arg1: i32) -> (i32, i32) {
    %c0_i32 = arith.constant 0 : i32
    %c0_i32_0 = arith.constant 0 : i32
    %c0_i32_1 = arith.constant 0 : i32
    return %c0_i32, %c0_i32_0 : i32, i32
  }
  func.func @transform_6(%arg0: i32, %arg1: i32) -> (i32, i32) {
    %c0_i32 = arith.constant 0 : i32
    %c0_i32_0 = arith.constant 0 : i32
    %c0_i32_1 = arith.constant 0 : i32
    return %c0_i32, %c0_i32_0 : i32, i32
  }
  func.func @transform_7(%arg0: i32, %arg1: i32) -> (i32, i32, i32) {
    %c0_i32 = arith.constant 0 : i32
    %c0_i32_0 = arith.constant 0 : i32
    return %arg0, %arg1, %c0_i32 : i32, i32, i32
  }
}

module attributes {stable_mosaic.version = 11 : i64} {
  func.func @_add_out_proj_kernel(%arg0: i32, %arg1: memref<512x64xbf16, #tpu.memory_space<vmem>>, %arg2: memref<512x64xbf16, #tpu.memory_space<vmem>>, %arg3: memref<64x32xbf16, #tpu.memory_space<vmem>>, %arg4: memref<512x32xf32, #tpu.memory_space<vmem>>) attributes {dimension_semantics = [#tpu.dimension_semantics<parallel>], iteration_bounds = array<i64: 2>, scalar_prefetch = 0 : i64, scratch_operands = 0 : i64, tpu.core_type = #tpu.core_type<tc>, window_params = [{transform_indices = @transform_0, window_bounds = array<i64: 512, 64>}, {transform_indices = @transform_1, window_bounds = array<i64: 512, 64>}, {pipeline_mode = #tpu.pipeline_mode<synchronous>, transform_indices = @transform_2, window_bounds = array<i64: 64, 32>}, {transform_indices = @transform_3, window_bounds = array<i64: 512, 32>}]} {
    %c0 = arith.constant 0 : index
    %c0_0 = arith.constant 0 : index
    %0 = vector.load %arg1[%c0, %c0_0] : memref<512x64xbf16, #tpu.memory_space<vmem>>, vector<512x64xbf16>
    %1 = arith.extf %0 : vector<512x64xbf16> to vector<512x64xf32>
    %c0_1 = arith.constant 0 : index
    %c0_2 = arith.constant 0 : index
    %2 = vector.load %arg2[%c0_1, %c0_2] : memref<512x64xbf16, #tpu.memory_space<vmem>>, vector<512x64xbf16>
    %3 = arith.extf %2 : vector<512x64xbf16> to vector<512x64xf32>
    %4 = arith.addf %1, %3 : vector<512x64xf32>
    %5 = arith.truncf %4 : vector<512x64xf32> to vector<512x64xbf16>
    %c0_3 = arith.constant 0 : index
    %c0_4 = arith.constant 0 : index
    %6 = vector.load %arg3[%c0_3, %c0_4] : memref<64x32xbf16, #tpu.memory_space<vmem>>, vector<64x32xbf16>
    %cst = arith.constant dense<0.000000e+00> : vector<512x32xf32>
    %7 = tpu.matmul %5, %6, %cst {dimension_numbers = #tpu.dot_dimension_numbers<[1], [0], [0], [1], [0, 0, 1, 1], [], []>} : vector<512x64xbf16>, vector<64x32xbf16>, vector<512x32xf32> -> vector<512x32xf32>
    %c0_5 = arith.constant 0 : index
    %c0_6 = arith.constant 0 : index
    %8 = vector.load %arg4[%c0_5, %c0_6] : memref<512x32xf32, #tpu.memory_space<vmem>>, vector<512x32xf32>
    tpu.vector_store %arg4[%c0_5, %c0_6], %7 {strides = array<i32>} : memref<512x32xf32, #tpu.memory_space<vmem>>, vector<512x32xf32>,
    return
  }
  func.func @transform_0(%arg0: i32) -> (i32, i32) {
    %c0_i32 = arith.constant 0 : i32
    %c0_i32_0 = arith.constant 0 : i32
    return %arg0, %c0_i32 : i32, i32
  }
  func.func @transform_1(%arg0: i32) -> (i32, i32) {
    %c0_i32 = arith.constant 0 : i32
    %c0_i32_0 = arith.constant 0 : i32
    return %arg0, %c0_i32 : i32, i32
  }
  func.func @transform_2(%arg0: i32) -> (i32, i32) {
    %c0_i32 = arith.constant 0 : i32
    %c0_i32_0 = arith.constant 0 : i32
    %c0_i32_1 = arith.constant 0 : i32
    return %c0_i32, %c0_i32_0 : i32, i32
  }
  func.func @transform_3(%arg0: i32) -> (i32, i32) {
    %c0_i32 = arith.constant 0 : i32
    %c0_i32_0 = arith.constant 0 : i32
    return %arg0, %c0_i32 : i32, i32
  }
}

</mosaic_0001>

<llo_original>
// kernel: _lambda_.4
$region0: #{_lambda_.4}
  #allocation0 [shape = 'u32[]', space=smem, size = 0x4, offset = 0x4, fixed_abs, tag = 'smem constant byte address 0x4 - core index']
  #allocation1 [shape = 'u32[72,128]{1,0:T(1,128)}', space=vmem, size = 0x9000, scoped, tag = 'internal scratch']
  #allocation2 [shape = 'f32[512,128]{1,0:T(8,128)}', space=vmem, size = 0x40000, scoped, tag = 'scratch operand']
  #allocation3 [shape = 'f32[512,128]{1,0:T(8,128)}', space=vmem, size = 0x40000, scoped, tag = 'scratch operand']
  #allocation4 [shape = 'f32[512,128]{1,0:T(8,128)}', space=vmem, size = 0x40000, scoped, tag = 'scratch operand']
  #allocation5 [shape = 'f32[512,64]{1,0:T(8,128)}', space=vmem, size = 0x40000, scoped, tag = 'scratch operand']
  #allocation6 [shape = 'f32[512,128]{1,0:T(8,128)}', space=vmem, size = 0x40000, scoped, tag = 'scratch operand']
  #allocation7 [shape = 'f32[8,128]{1,0:T(8,128)}', space=vmem, size = 0x1000, scoped, tag = 'scratch operand']
  #allocation8 [shape = 'f32[16,128]{1,0:T(8,128)}', space=vmem, size = 0x2000, scoped, tag = 'scratch operand']
  %s0 = inlined_call_operand.vmem [shape: bf16[2,512,256], index: 0, kind: input, shape index: {}]
  %s1 = inlined_call_operand.vmem [shape: f32[4,128], index: 1, kind: input, shape index: {}]
  %s2 = inlined_call_operand.vmem [shape: f32[1,128], index: 2, kind: input, shape index: {}]
  %s3 = inlined_call_operand.vmem [shape: bf16[128,256], index: 3, kind: input, shape index: {}]
  %s4 = inlined_call_operand.vmem [shape: f32[16,128], index: 4, kind: input, shape index: {}]
  %s5 = inlined_call_operand.vmem [shape: f32[1,128], index: 5, kind: input, shape index: {}]
  %s6 = inlined_call_operand.vmem [shape: f32[1,128], index: 6, kind: input, shape index: {}]
  %s7 = inlined_call_operand.vmem [shape: bf16[2,512,128], index: 7, kind: output, shape index: {}]
  %s8 = sld [smem:[#allocation0]]
  $region79: #{_lambda_.4} parent=0
    _
  %s10 = ssub.s32 1, %s8
  %s11 = scalar_select 0, %s10, %s8
  loop: start=0, step=1, limit=4
  $region2: #{_lambda_.4} parent=0 // loop_pre_header
    _
  $region3: #{_lambda_.4} parent=0 // loop_header
    %s13 = sphi 0, %s17
    %p14 = scmp.ge.s32.totalorder %s13, 4
    %s20 = sphi 0, %s32
    %s21 = sphi 0, %s28
    %s22 = sphi 0, %s20
    %s23 = sphi 0, %s21
    %s24 = sphi 0, %s22
    %s25 = sphi 0, %s23
    %s37 = sphi 0, %s39
    %s40 = sphi 0, %s37
    %s41 = sphi 0, %s40
    %s57 = sphi 0, %s41
    %s61 = sphi 0, %s61
    %s63 = sphi 0, %s61
    %s64 = sphi 0, %s63
    %s78 = sphi 0, %s64
    %s82 = sphi 0, %s82
    %s84 = sphi 0, %s82
    %s85 = sphi 0, %s84
    %s99 = sphi 0, %s85
    %s103 = sphi 0, %s103
    %s105 = sphi 0, %s103
    %s106 = sphi 0, %s105
    %s120 = sphi 0, %s106
    %s124 = sphi 0, %s124
    %s126 = sphi 0, %s124
    %s127 = sphi 0, %s126
    %s141 = sphi 0, %s127
    %s145 = sphi 0, %s145
    %s147 = sphi 0, %s145
    %s148 = sphi 0, %s147
    %s162 = sphi 0, %s148
    %s166 = sphi 0, %s166
    %s168 = sphi 0, %s166
    %s169 = sphi 0, %s168
    %s183 = sphi 0, %s169
    %s191 = sphi 0, %s193
    %s194 = sphi 0, %s191
    %s195 = sphi 0, %s194
    %s211 = sphi 0, %s195
  $region4: #{_lambda_.4} parent=0 // loop_header_branch
    %16 = sbr.rel (%p14) target = $region8
  $region5: #{_lambda_.4} parent=0 // loop_body
    %s18 = ssub.s32 %s13, 1
    %s19 = ssub.s32 %s13, 2
    %s26 = sadd.s32 1, %s21
    %p27 = scmp.ge.s32.totalorder %s26, 1
    %s28 = scalar_select %p27, 0, %s26
    %s29 = sadd.s32 1, %s20
    %s30 = scalar_select %p27, %s29, %s20
    %p31 = scmp.ge.s32.totalorder %s30, 2
    %s32 = scalar_select %p31, 0, %s30
    %s33 = ssub.s32 %s20, %s32
    %s34 = ssub.s32 %s21, %s28
    %s35 = sor.u32 %s33, %s34
    %p36 = scmp.eq.s32.totalorder %s35, 0
    %s38 = sadd.s32 %s37, 1
    %s39 = scalar_select %p36, %s37, %s38
    %p42 = pneg %p36
    %p43 = scmp.eq.s32.totalorder %s13, 1
    %p44 = por %p42, %p43
    %p45 = scmp.ne.s32.totalorder %s37, %s40
    %p46 = scmp.eq.s32.totalorder %s13, 0
    %p47 = por %p45, %p46
    %p48 = scmp.ne.s32.totalorder %s37, %s40
    %p49 = scmp.eq.s32.totalorder %s18, 1
    %p50 = por %p48, %p49
    %p51 = scmp.ne.s32.totalorder %s40, %s41
    %p52 = scmp.eq.s32.totalorder %s18, 0
    %p53 = por %p51, %p52
    %p54 = scmp.ne.s32.totalorder %s40, %s41
    %p55 = scmp.eq.s32.totalorder %s19, 1
    %p56 = por %p54, %p55
    %p58 = scmp.ne.s32.totalorder %s41, %s57
    %p59 = scmp.eq.s32.totalorder %s19, 0
    %p60 = por %p58, %p59
    %s62 = sadd.s32 %s61, 1
    %p65 = scmp.eq.s32.totalorder %s13, 1
    %p66 = scmp.ne.s32.totalorder %s61, %s63
    %p67 = scmp.eq.s32.totalorder %s13, 0
    %p68 = por %p66, %p67
    %p69 = scmp.ne.s32.totalorder %s61, %s63
    %p70 = scmp.eq.s32.totalorder %s18, 1
    %p71 = por %p69, %p70
    %p72 = scmp.ne.s32.totalorder %s63, %s64
    %p73 = scmp.eq.s32.totalorder %s18, 0
    %p74 = por %p72, %p73
    %p75 = scmp.ne.s32.totalorder %s63, %s64
    %p76 = scmp.eq.s32.totalorder %s19, 1
    %p77 = por %p75, %p76
    %p79 = scmp.ne.s32.totalorder %s64, %s78
    %p80 = scmp.eq.s32.totalorder %s19, 0
    %p81 = por %p79, %p80
    %s83 = sadd.s32 %s82, 1
    %p86 = scmp.eq.s32.totalorder %s13, 1
    %p87 = scmp.ne.s32.totalorder %s82, %s84
    %p88 = scmp.eq.s32.totalorder %s13, 0
    %p89 = por %p87, %p88
    %p90 = scmp.ne.s32.totalorder %s82, %s84
    %p91 = scmp.eq.s32.totalorder %s18, 1
    %p92 = por %p90, %p91
    %p93 = scmp.ne.s32.totalorder %s84, %s85
    %p94 = scmp.eq.s32.totalorder %s18, 0
    %p95 = por %p93, %p94
    %p96 = scmp.ne.s32.totalorder %s84, %s85
    %p97 = scmp.eq.s32.totalorder %s19, 1
    %p98 = por %p96, %p97
    %p100 = scmp.ne.s32.totalorder %s85, %s99
    %p101 = scmp.eq.s32.totalorder %s19, 0
    %p102 = por %p100, %p101
    %s104 = sadd.s32 %s103, 1
    %p107 = scmp.eq.s32.totalorder %s13, 1
    %p108 = scmp.ne.s32.totalorder %s103, %s105
    %p109 = scmp.eq.s32.totalorder %s13, 0
    %p110 = por %p108, %p109
    %p111 = scmp.ne.s32.totalorder %s103, %s105
    %p112 = scmp.eq.s32.totalorder %s18, 1
    %p113 = por %p111, %p112
    %p114 = scmp.ne.s32.totalorder %s105, %s106
    %p115 = scmp.eq.s32.totalorder %s18, 0
    %p116 = por %p114, %p115
    %p117 = scmp.ne.s32.totalorder %s105, %s106
    %p118 = scmp.eq.s32.totalorder %s19, 1
    %p119 = por %p117, %p118
    %p121 = scmp.ne.s32.totalorder %s106, %s120
    %p122 = scmp.eq.s32.totalorder %s19, 0
    %p123 = por %p121, %p122
    %s125 = sadd.s32 %s124, 1
    %p128 = scmp.eq.s32.totalorder %s13, 1
    %p129 = scmp.ne.s32.totalorder %s124, %s126
    %p130 = scmp.eq.s32.totalorder %s13, 0
    %p131 = por %p129, %p130
    %p132 = scmp.ne.s32.totalorder %s124, %s126
    %p133 = scmp.eq.s32.totalorder %s18, 1
    %p134 = por %p132, %p133
    %p135 = scmp.ne.s32.totalorder %s126, %s127
    %p136 = scmp.eq.s32.totalorder %s18, 0
    %p137 = por %p135, %p136
    %p138 = scmp.ne.s32.totalorder %s126, %s127
    %p139 = scmp.eq.s32.totalorder %s19, 1
    %p140 = por %p138, %p139
    %p142 = scmp.ne.s32.totalorder %s127, %s141
    %p143 = scmp.eq.s32.totalorder %s19, 0
    %p144 = por %p142, %p143
    %s146 = sadd.s32 %s145, 1
    %p149 = scmp.eq.s32.totalorder %s13, 1
    %p150 = scmp.ne.s32.totalorder %s145, %s147
    %p151 = scmp.eq.s32.totalorder %s13, 0
    %p152 = por %p150, %p151
    %p153 = scmp.ne.s32.totalorder %s145, %s147
    %p154 = scmp.eq.s32.totalorder %s18, 1
    %p155 = por %p153, %p154
    %p156 = scmp.ne.s32.totalorder %s147, %s148
    %p157 = scmp.eq.s32.totalorder %s18, 0
    %p158 = por %p156, %p157
    %p159 = scmp.ne.s32.totalorder %s147, %s148
    %p160 = scmp.eq.s32.totalorder %s19, 1
    %p161 = por %p159, %p160
    %p163 = scmp.ne.s32.totalorder %s148, %s162
    %p164 = scmp.eq.s32.totalorder %s19, 0
    %p165 = por %p163, %p164
    %s167 = sadd.s32 %s166, 1
    %p170 = scmp.eq.s32.totalorder %s13, 1
    %p171 = scmp.ne.s32.totalorder %s166, %s168
    %p172 = scmp.eq.s32.totalorder %s13, 0
    %p173 = por %p171, %p172
    %p174 = scmp.ne.s32.totalorder %s166, %s168
    %p175 = scmp.eq.s32.totalorder %s18, 1
    %p176 = por %p174, %p175
    %p177 = scmp.ne.s32.totalorder %s168, %s169
    %p178 = scmp.eq.s32.totalorder %s18, 0
    %p179 = por %p177, %p178
    %p180 = scmp.ne.s32.totalorder %s168, %s169
    %p181 = scmp.eq.s32.totalorder %s19, 1
    %p182 = por %p180, %p181
    %p184 = scmp.ne.s32.totalorder %s169, %s183
    %p185 = scmp.eq.s32.totalorder %s19, 0
    %p186 = por %p184, %p185
    %s187 = ssub.s32 %s20, %s32
    %s188 = ssub.s32 %s21, %s28
    %s189 = sor.u32 %s187, %s188
    %p190 = scmp.eq.s32.totalorder %s189, 0
    %s192 = sadd.s32 %s191, 1
    %s193 = scalar_select %p190, %s191, %s192
    %p196 = pneg %p190
    %p197 = scmp.eq.s32.totalorder %s13, 1
    %p198 = por %p196, %p197
    %p199 = scmp.ne.s32.totalorder %s191, %s194
    %p200 = scmp.eq.s32.totalorder %s13, 0
    %p201 = por %p199, %p200
    %p202 = scmp.ne.s32.totalorder %s191, %s194
    %p203 = scmp.eq.s32.totalorder %s18, 1
    %p204 = por %p202, %p203
    %p205 = scmp.ne.s32.totalorder %s194, %s195
    %p206 = scmp.eq.s32.totalorder %s18, 0
    %p207 = por %p205, %p206
    %p208 = scmp.ne.s32.totalorder %s194, %s195
    %p209 = scmp.eq.s32.totalorder %s19, 1
    %p210 = por %p208, %p209
    %p212 = scmp.ne.s32.totalorder %s195, %s211
    %p213 = scmp.eq.s32.totalorder %s19, 0
    %p214 = por %p212, %p213
    %p215 = scmp.le.s32.totalorder 1, %s13
    %p216 = scmp.lt.s32.totalorder %s13, 3
    %p217 = pnand %p215, %p216
    %p218 = pneg %p217
    // Predicated region
    $region9: #{_lambda_.4} parent=5 // pred_check
      _
    $region10: #{_lambda_.4} parent=5 // pred_check_branch
      %220 = sbr.rel (%p217) target = $region12
    $region11: #{_lambda_.4} parent=5 // pred_region
      %s221 = ssub.s32 %s13, 1
      // Predicated region
      $region13: #{_lambda_.4} parent=11 // pred_check
        %p222 = pneg %p74
      $region14: #{_lambda_.4} parent=11 // pred_check_branch
        %224 = sbr.rel (%p222) target = $region16
      $region15: #{_lambda_.4} parent=11 // pred_region
        _
      $region16: #{_lambda_.4} parent=11 // pred_fallthru
        _
      // Predicated region
      $region17: #{_lambda_.4} parent=11 // pred_check
        %p225 = pneg %p95
      $region18: #{_lambda_.4} parent=11 // pred_check_branch
        %227 = sbr.rel (%p225) target = $region20
      $region19: #{_lambda_.4} parent=11 // pred_region
        _
      $region20: #{_lambda_.4} parent=11 // pred_fallthru
        _
      // Predicated region
      $region21: #{_lambda_.4} parent=11 // pred_check
        %p228 = pneg %p116
      $region22: #{_lambda_.4} parent=11 // pred_check_branch
        %230 = sbr.rel (%p228) target = $region24
      $region23: #{_lambda_.4} parent=11 // pred_region
        _
      $region24: #{_lambda_.4} parent=11 // pred_fallthru
        _
      // Predicated region
      $region25: #{_lambda_.4} parent=11 // pred_check
        %p231 = pneg %p137
      $region26: #{_lambda_.4} parent=11 // pred_check_branch
        %233 = sbr.rel (%p231) target = $region28
      $region27: #{_lambda_.4} parent=11 // pred_region
        _
      $region28: #{_lambda_.4} parent=11 // pred_fallthru
        _
      // Predicated region
      $region29: #{_lambda_.4} parent=11 // pred_check
        %p234 = pneg %p158
      $region30: #{_lambda_.4} parent=11 // pred_check_branch
        %236 = sbr.rel (%p234) target = $region32
      $region31: #{_lambda_.4} parent=11 // pred_region
        _
      $region32: #{_lambda_.4} parent=11 // pred_fallthru
        _
      // Predicated region
      $region33: #{_lambda_.4} parent=11 // pred_check
        %p237 = pneg %p179
      $region34: #{_lambda_.4} parent=11 // pred_check_branch
        %239 = sbr.rel (%p237) target = $region36
      $region35: #{_lambda_.4} parent=11 // pred_region
        _
      $region36: #{_lambda_.4} parent=11 // pred_fallthru
        _
    $region12: #{_lambda_.4} parent=5 // pred_fallthru
      _
    %p240 = scmp.lt.s32.totalorder %s13, 2
    // Predicated region
    $region37: #{_lambda_.4} parent=5 // pred_check
      %p241 = pneg %p240
    $region38: #{_lambda_.4} parent=5 // pred_check_branch
      %243 = sbr.rel (%p241) target = $region40
    $region39: #{_lambda_.4} parent=5 // pred_region
      // Predicated region
      $region41: #{_lambda_.4} parent=39 // pred_check
        %p244 = pneg %p47
      $region42: #{_lambda_.4} parent=39 // pred_check_branch
        %246 = sbr.rel (%p244) target = $region44
      $region43: #{_lambda_.4} parent=39 // pred_region
        %s247 = smul.u32 64, %s21
        %p248 = scmp.lt.s32.totalorder %s20, 1
        %s249 = scalar_select %p248, %s20, 1
        %p250 = scmp.lt.s32.totalorder %s247, 63
        %s251 = scalar_select %p250, %s247, 63
        %s252 = smul.addr %s251, 2
        %s253 = smul.addr %s249, 128
        %s254 = sadd.s32 %s252, %s253
        %s255 = smul.addr %s254, 4
        %s256 = scalar_lea.vmem %s0, %s255
        %s257 = smul.u32 64, %s21
      $region44: #{_lambda_.4} parent=39 // pred_fallthru
        _
    $region40: #{_lambda_.4} parent=5 // pred_fallthru
      _
    %p258 = scmp.le.s32.totalorder 1, %s13
    %p259 = scmp.lt.s32.totalorder %s13, 3
    %p260 = pnand %p258, %p259
    %p261 = pneg %p260
    // Predicated region
    $region45: #{_lambda_.4} parent=5 // pred_check
      _
    $region46: #{_lambda_.4} parent=5 // pred_check_branch
      %263 = sbr.rel (%p260) target = $region48
    $region47: #{_lambda_.4} parent=5 // pred_region
      %s264 = ssub.s32 %s13, 1
      %s265 = smul.u32 64, %s23
      %p266 = scmp.lt.s32.totalorder %s22, 1
      %s267 = scalar_select %p266, %s22, 1
      %p268 = scmp.lt.s32.totalorder %s265, 63
      %s269 = scalar_select %p268, %s265, 63
      %s270 = smul.addr %s269, 2
      %s271 = smul.addr %s267, 128
      %s272 = sadd.s32 %s270, %s271
      %s273 = smul.addr %s272, 4
      %s274 = scalar_lea.vmem %s0, %s273
      %p275 = pneg %p53
      %p276 = pneg %p50
      %p277 = pneg %p74
      %p278 = pneg %p71
      %p279 = pneg %p95
      %p280 = pneg %p92
      %p281 = pneg %p116
      %p282 = pneg %p113
      %p283 = pneg %p137
      %p284 = pneg %p134
      %p285 = pneg %p158
      %p286 = pneg %p155
      %p287 = pneg %p179
      %p288 = pneg %p176
      %p289 = pneg %p207
      %p290 = pneg %p204
      %s291 = smul.u32 64, %s23
      %p292 = scmp.lt.s32.totalorder %s22, 1
      %s293 = scalar_select %p292, %s22, 1
      %p294 = scmp.lt.s32.totalorder %s291, 63
      %s295 = scalar_select %p294, %s291, 63
      %s296 = smul.addr %s293, 64
      %s297 = sadd.s32 %s295, %s296
      %s298 = smul.addr %s297, 4
      %s299 = scalar_lea.vmem %s7, %s298
      %s300 = smul.u32 64, %s23
      %p301 = scmp.lt.s32.totalorder %s22, 1
      %s302 = scalar_select %p301, %s22, 1
      %p303 = scmp.lt.s32.totalorder %s300, 63
      %s304 = scalar_select %p303, %s300, 63
      %s305 = smul.addr %s304, 2
      %s306 = smul.addr %s302, 128
      %s307 = sadd.s32 %s305, %s306
      %s308 = smul.addr %s307, 4
      %s309 = scalar_lea.vmem %s0, %s308
      %s310 = smul.u32 64, %s23
      %s311 = smul.u32 64, %s23
      %p312 = scmp.lt.s32.totalorder %s22, 1
      %s313 = scalar_select %p312, %s22, 1
      %p314 = scmp.lt.s32.totalorder %s311, 63
      %s315 = scalar_select %p314, %s311, 63
      %s316 = smul.addr %s313, 64
      %s317 = sadd.s32 %s315, %s316
      %s318 = smul.addr %s317, 4
      %s319 = scalar_lea.vmem %s7, %s318
      %s320 = smul.u32 64, %s23
      %p321 = scmp.eq.s32.totalorder %s23, 0
      // Predicated region
      $region49: #{_lambda_.4} parent=47 // pred_check
        %p322 = pneg %p321
      $region50: #{_lambda_.4} parent=47 // pred_check_branch
        %324 = sbr.rel (%p322) target = $region52
      $region51: #{_lambda_.4} parent=47 // pred_region
        %325 = vst [vmem:[#allocation8] sm:$0xff] 0.0
        %326 = vst [vmem:[#allocation8 + $0x8] sm:$0xff] 0.0
        %327 = vst [vmem:[#allocation7] sm:$0xff] 0.0
      $region52: #{_lambda_.4} parent=47 // pred_fallthru
        _
      %v328 = vld [vmem:[%s1] sm:$0xf]
      %v329 = vld [vmem:[%s2] sm:$0x1]
      %v330 = vld [vmem:[%s4] sm:$0xff]
      %v331 = vld [vmem:[%s4 + $0x8] sm:$0xff]
      %v332 = vld [vmem:[%s5] sm:$0x1]
      %v333 = vld [vmem:[%s6] sm:$0x1]
      %v334 = vld [vmem:[#allocation7] sm:$0xff]
      loop: start=0, step=1, limit=4
      $region53: #{_lambda_.4} parent=47 // loop_pre_header
        _
      $region54: #{_lambda_.4} parent=47 // loop_header
        %s336 = sphi 0, %s340
        %p337 = scmp.ge.s32.totalorder %s336, 4
        %v341 = vphi %v334, %v379
      $region55: #{_lambda_.4} parent=47 // loop_header_branch
        %339 = sbr.rel (%p337) target = $region59
      $region56: #{_lambda_.4} parent=47 // loop_body
        %s342 = smul.u32 %s336, 128
        %s343 = sshra.s32 %s342, 3
        %s344 = sand.u32 %s342, 7
        %s345 = smul.u32 %s343, 2
        %s346 = smul.addr %s345, 4
        %s347 = scalar_lea.vmem %s309, %s346
        %v348 = vld [vmem:[%s347] sm:$0xff]
        %v349 = vld [vmem:[%s347 + $0x8] sm:$0xff]
        %v350 = vld [vmem:[%s347 + $0x10] sm:$0xff]
        %v351 = vld [vmem:[%s347 + $0x18] sm:$0xff]
        %v352 = vld [vmem:[%s347 + $0x20] sm:$0xff]
        %v353 = vld [vmem:[%s347 + $0x28] sm:$0xff]
        %v354 = vld [vmem:[%s347 + $0x30] sm:$0xff]
        %v355 = vld [vmem:[%s347 + $0x38] sm:$0xff]
        %v356 = vld [vmem:[%s347 + $0x40] sm:$0xff]
        %v357 = vld [vmem:[%s347 + $0x48] sm:$0xff]
        %v358 = vld [vmem:[%s347 + $0x50] sm:$0xff]
        %v359 = vld [vmem:[%s347 + $0x58] sm:$0xff]
        %v360 = vld [vmem:[%s347 + $0x60] sm:$0xff]
        %v361 = vld [vmem:[%s347 + $0x68] sm:$0xff]
        %v362 = vld [vmem:[%s347 + $0x70] sm:$0xff]
        %v363 = vld [vmem:[%s347 + $0x78] sm:$0xff]
        %v364 = vunpack.c.l.bf16 %v348
        %v365 = vunpack.c.l.bf16 %v349
        %v366 = vunpack.c.l.bf16 %v350
        %v367 = vunpack.c.l.bf16 %v351
        %v368 = vunpack.c.l.bf16 %v352
        %v369 = vunpack.c.l.bf16 %v353
        %v370 = vunpack.c.l.bf16 %v354
        %v371 = vunpack.c.l.bf16 %v355
        %v372 = vunpack.c.l.bf16 %v356
        %v373 = vunpack.c.l.bf16 %v357
        %v374 = vunpack.c.l.bf16 %v358
        %v375 = vunpack.c.l.bf16 %v359
        %v376 = vunpack.c.l.bf16 %v360
        %v377 = vunpack.c.l.bf16 %v361
        %v378 = vunpack.c.l.bf16 %v362
        %v379 = vunpack.c.l.bf16 %v363
        %v396 = vrot.slane %v348, 4
        %v397 = vrot.slane %v349, 4
        %v398 = vrot.slane %v350, 4
        %v399 = vrot.slane %v351, 4
        %v400 = vrot.slane %v352, 4
        %v401 = vrot.slane %v353, 4
        %v402 = vrot.slane %v354, 4
        %v403 = vrot.slane %v355, 4
        %v404 = vrot.slane %v356, 4
        %v405 = vrot.slane %v357, 4
        %v406 = vrot.slane %v358, 4
        %v407 = vrot.slane %v359, 4
        %v408 = vrot.slane %v360, 4
        %v409 = vrot.slane %v361, 4
        %v410 = vrot.slane %v362, 4
        %v411 = vrot.slane %v363, 4
        %v428 = vunpack.c.l.bf16 %v396
        %v429 = vunpack.c.l.bf16 %v397
        %v430 = vunpack.c.l.bf16 %v398
        %v431 = vunpack.c.l.bf16 %v399
        %v432 = vunpack.c.l.bf16 %v400
        %v433 = vunpack.c.l.bf16 %v401
        %v434 = vunpack.c.l.bf16 %v402
        %v435 = vunpack.c.l.bf16 %v403
        %v436 = vunpack.c.l.bf16 %v404
        %v437 = vunpack.c.l.bf16 %v405
        %v438 = vunpack.c.l.bf16 %v406
        %v439 = vunpack.c.l.bf16 %v407
        %v440 = vunpack.c.l.bf16 %v408
        %v441 = vunpack.c.l.bf16 %v409
        %v442 = vunpack.c.l.bf16 %v410
        %v443 = vunpack.c.l.bf16 %v411
        %v444 = vsub.f32 0.0, %v428
        %v445 = vsub.f32 0.0, %v429
        %v446 = vsub.f32 0.0, %v430
        %v447 = vsub.f32 0.0, %v431
        %v448 = vsub.f32 0.0, %v432
        %v449 = vsub.f32 0.0, %v433
        %v450 = vsub.f32 0.0, %v434
        %v451 = vsub.f32 0.0, %v435
        %v452 = vsub.f32 0.0, %v436
        %v453 = vsub.f32 0.0, %v437
        %v454 = vsub.f32 0.0, %v438
        %v455 = vsub.f32 0.0, %v439
        %v456 = vsub.f32 0.0, %v440
        %v457 = vsub.f32 0.0, %v441
        %v458 = vsub.f32 0.0, %v442
        %v459 = vsub.f32 0.0, %v443
        %v460 = vmul.f32 %v444, 1.442695
        %v461 = vpow.pop %v460
        %v462 = vmul.f32 %v445, 1.442695
        %v463 = vpow.pop %v462
        %v464 = vmul.f32 %v446, 1.442695
        %v465 = vpow.pop %v464
        %v466 = vmul.f32 %v447, 1.442695
        %v467 = vpow.pop %v466
        %v468 = vmul.f32 %v448, 1.442695
        %v469 = vpow.pop %v468
        %v470 = vmul.f32 %v449, 1.442695
        %v471 = vpow.pop %v470
        %v472 = vmul.f32 %v450, 1.442695
        %v473 = vpow.pop %v472
        %v474 = vmul.f32 %v451, 1.442695
        %v475 = vpow.pop %v474
        %v476 = vmul.f32 %v452, 1.442695
        %v477 = vpow.pop %v476
        %v478 = vmul.f32 %v453, 1.442695
        %v479 = vpow.pop %v478
        %v480 = vmul.f32 %v454, 1.442695
        %v481 = vpow.pop %v480
        %v482 = vmul.f32 %v455, 1.442695
        %v483 = vpow.pop %v482
        %v484 = vmul.f32 %v456, 1.442695
        %v485 = vpow.pop %v484
        %v486 = vmul.f32 %v457, 1.442695
        %v487 = vpow.pop %v486
        %v488 = vmul.f32 %v458, 1.442695
        %v489 = vpow.pop %v488
        %v490 = vmul.f32 %v459, 1.442695
        %v491 = vpow.pop %v490
        %v492 = vadd.f32 %v461, 1.0
        %v493 = vadd.f32 %v463, 1.0
        %v494 = vadd.f32 %v465, 1.0
        %v495 = vadd.f32 %v467, 1.0
        %v496 = vadd.f32 %v469, 1.0
        %v497 = vadd.f32 %v471, 1.0
        %v498 = vadd.f32 %v473, 1.0
        %v499 = vadd.f32 %v475, 1.0
        %v500 = vadd.f32 %v477, 1.0
        %v501 = vadd.f32 %v479, 1.0
        %v502 = vadd.f32 %v481, 1.0
        %v503 = vadd.f32 %v483, 1.0
        %v504 = vadd.f32 %v485, 1.0
        %v505 = vadd.f32 %v487, 1.0
        %v506 = vadd.f32 %v489, 1.0
        %v507 = vadd.f32 %v491, 1.0
        %v508 = vrcp.pop %v492
        %v509 = vrcp.pop %v493
        %v510 = vrcp.pop %v494
        %v511 = vrcp.pop %v495
        %v512 = vrcp.pop %v496
        %v513 = vrcp.pop %v497
        %v514 = vrcp.pop %v498
        %v515 = vrcp.pop %v499
        %v516 = vrcp.pop %v500
        %v517 = vrcp.pop %v501
        %v518 = vrcp.pop %v502
        %v519 = vrcp.pop %v503
        %v520 = vrcp.pop %v504
        %v521 = vrcp.pop %v505
        %v522 = vrcp.pop %v506
        %v523 = vrcp.pop %v507
        %v524 = vmul.f32 %v428, %v508
        %v525 = vmul.f32 %v429, %v509
        %v526 = vmul.f32 %v430, %v510
        %v527 = vmul.f32 %v431, %v511
        %v528 = vmul.f32 %v432, %v512
        %v529 = vmul.f32 %v433, %v513
        %v530 = vmul.f32 %v434, %v514
        %v531 = vmul.f32 %v435, %v515
        %v532 = vmul.f32 %v436, %v516
        %v533 = vmul.f32 %v437, %v517
        %v534 = vmul.f32 %v438, %v518
        %v535 = vmul.f32 %v439, %v519
        %v536 = vmul.f32 %v440, %v520
        %v537 = vmul.f32 %v441, %v521
        %v538 = vmul.f32 %v442, %v522
        %v539 = vmul.f32 %v443, %v523
        %s540 = scalar_lea.vmem [#allocation3], %s342
        %541 = vst [vmem:[%s540] sm:$0xff] %v524
        %542 = vst [vmem:[%s540 + $0x8] sm:$0xff] %v525
        %543 = vst [vmem:[%s540 + $0x10] sm:$0xff] %v526
        %544 = vst [vmem:[%s540 + $0x18] sm:$0xff] %v527
        %545 = vst [vmem:[%s540 + $0x20] sm:$0xff] %v528
        %546 = vst [vmem:[%s540 + $0x28] sm:$0xff] %v529
        %547 = vst [vmem:[%s540 + $0x30] sm:$0xff] %v530
        %548 = vst [vmem:[%s540 + $0x38] sm:$0xff] %v531
        %549 = vst [vmem:[%s540 + $0x40] sm:$0xff] %v532
        %550 = vst [vmem:[%s540 + $0x48] sm:$0xff] %v533
        %551 = vst [vmem:[%s540 + $0x50] sm:$0xff] %v534
        %552 = vst [vmem:[%s540 + $0x58] sm:$0xff] %v535
        %553 = vst [vmem:[%s540 + $0x60] sm:$0xff] %v536
        %554 = vst [vmem:[%s540 + $0x68] sm:$0xff] %v537
        %555 = vst [vmem:[%s540 + $0x70] sm:$0xff] %v538
        %556 = vst [vmem:[%s540 + $0x78] sm:$0xff] %v539
        %v557 = vperm.slane %v328, 3
        %v558 = vmul.f32 %v557, %v364
        %v559 = vmul.f32 %v557, %v365
        %v560 = vmul.f32 %v557, %v366
        %v561 = vmul.f32 %v557, %v367
        %v562 = vmul.f32 %v557, %v368
        %v563 = vmul.f32 %v557, %v369
        %v564 = vmul.f32 %v557, %v370
        %v565 = vmul.f32 %v557, %v371
        %v566 = vmul.f32 %v557, %v372
        %v567 = vmul.f32 %v557, %v373
        %v568 = vmul.f32 %v557, %v374
        %v569 = vmul.f32 %v557, %v375
        %v570 = vmul.f32 %v557, %v376
        %v571 = vmul.f32 %v557, %v377
        %v572 = vmul.f32 %v557, %v378
        %v573 = vmul.f32 %v557, %v379
        %v575 = vperm.slane %v329, 0
        %v577 = vadd.f32 %v575, %v558
        %v578 = vadd.f32 %v575, %v559
        %v579 = vadd.f32 %v575, %v560
        %v580 = vadd.f32 %v575, %v561
        %v581 = vadd.f32 %v575, %v562
        %v582 = vadd.f32 %v575, %v563
        %v583 = vadd.f32 %v575, %v564
        %v584 = vadd.f32 %v575, %v565
        %v585 = vadd.f32 %v575, %v566
        %v586 = vadd.f32 %v575, %v567
        %v587 = vadd.f32 %v575, %v568
        %v588 = vadd.f32 %v575, %v569
        %v589 = vadd.f32 %v575, %v570
        %v590 = vadd.f32 %v575, %v571
        %v591 = vadd.f32 %v575, %v572
        %v592 = vadd.f32 %v575, %v573
        %v593 = vperm.slane %v328, 2
        %v594 = vmul.f32 %v593, %v341
        %v595 = vmul.f32 %v593, %v364
        %v596 = vmul.f32 %v593, %v365
        %v597 = vmul.f32 %v593, %v366
        %v598 = vmul.f32 %v593, %v367
        %v599 = vmul.f32 %v593, %v368
        %v600 = vmul.f32 %v593, %v369
        %v601 = vmul.f32 %v593, %v370
        %v602 = vmul.f32 %v593, %v371
        %v603 = vmul.f32 %v593, %v372
        %v604 = vmul.f32 %v593, %v373
        %v605 = vmul.f32 %v593, %v374
        %v606 = vmul.f32 %v593, %v375
        %v607 = vmul.f32 %v593, %v376
        %v608 = vmul.f32 %v593, %v377
        %v609 = vmul.f32 %v593, %v378
        %v610 = vmul.f32 %v593, %v379
        %vm628 = vcmask 1040384
        %v629 = vrot.slane %v594, 7
        %v630 = vrot.slane %v595, 7
        %v631 = vsel %vm628, %v629, %v630
        %v632 = vrot.slane %v596, 7
        %v633 = vsel %vm628, %v630, %v632
        %v634 = vrot.slane %v597, 7
        %v635 = vsel %vm628, %v632, %v634
        %v636 = vrot.slane %v598, 7
        %v637 = vsel %vm628, %v634, %v636
        %v638 = vrot.slane %v599, 7
        %v639 = vsel %vm628, %v636, %v638
        %v640 = vrot.slane %v600, 7
        %v641 = vsel %vm628, %v638, %v640
        %v642 = vrot.slane %v601, 7
        %v643 = vsel %vm628, %v640, %v642
        %v644 = vrot.slane %v602, 7
        %v645 = vsel %vm628, %v642, %v644
        %v646 = vrot.slane %v603, 7
        %v647 = vsel %vm628, %v644, %v646
        %v648 = vrot.slane %v604, 7
        %v649 = vsel %vm628, %v646, %v648
        %v650 = vrot.slane %v605, 7
        %v651 = vsel %vm628, %v648, %v650
        %v652 = vrot.slane %v606, 7
        %v653 = vsel %vm628, %v650, %v652
        %v654 = vrot.slane %v607, 7
        %v655 = vsel %vm628, %v652, %v654
        %v656 = vrot.slane %v608, 7
        %v657 = vsel %vm628, %v654, %v656
        %v658 = vrot.slane %v609, 7
        %v659 = vsel %vm628, %v656, %v658
        %v660 = vrot.slane %v610, 7
        %v661 = vsel %vm628, %v658, %v660
        %v678 = vadd.f32 %v577, %v631
        %v679 = vadd.f32 %v578, %v633
        %v680 = vadd.f32 %v579, %v635
        %v681 = vadd.f32 %v580, %v637
        %v682 = vadd.f32 %v581, %v639
        %v683 = vadd.f32 %v582, %v641
        %v684 = vadd.f32 %v583, %v643
        %v685 = vadd.f32 %v584, %v645
        %v686 = vadd.f32 %v585, %v647
        %v687 = vadd.f32 %v586, %v649
        %v688 = vadd.f32 %v587, %v651
        %v689 = vadd.f32 %v588, %v653
        %v690 = vadd.f32 %v589, %v655
        %v691 = vadd.f32 %v590, %v657
        %v692 = vadd.f32 %v591, %v659
        %v693 = vadd.f32 %v592, %v661
        %v694 = vperm.slane %v328, 1
        %v695 = vmul.f32 %v694, %v341
        %v696 = vmul.f32 %v694, %v364
        %v697 = vmul.f32 %v694, %v365
        %v698 = vmul.f32 %v694, %v366
        %v699 = vmul.f32 %v694, %v367
        %v700 = vmul.f32 %v694, %v368
        %v701 = vmul.f32 %v694, %v369
        %v702 = vmul.f32 %v694, %v370
        %v703 = vmul.f32 %v694, %v371
        %v704 = vmul.f32 %v694, %v372
        %v705 = vmul.f32 %v694, %v373
        %v706 = vmul.f32 %v694, %v374
        %v707 = vmul.f32 %v694, %v375
        %v708 = vmul.f32 %v694, %v376
        %v709 = vmul.f32 %v694, %v377
        %v710 = vmul.f32 %v694, %v378
        %v711 = vmul.f32 %v694, %v379
        %vm729 = vcmask 1041408
        %v730 = vrot.slane %v695, 6
        %v731 = vrot.slane %v696, 6
        %v732 = vsel %vm729, %v730, %v731
        %v733 = vrot.slane %v697, 6
        %v734 = vsel %vm729, %v731, %v733
        %v735 = vrot.slane %v698, 6
        %v736 = vsel %vm729, %v733, %v735
        %v737 = vrot.slane %v699, 6
        %v738 = vsel %vm729, %v735, %v737
        %v739 = vrot.slane %v700, 6
        %v740 = vsel %vm729, %v737, %v739
        %v741 = vrot.slane %v701, 6
        %v742 = vsel %vm729, %v739, %v741
        %v743 = vrot.slane %v702, 6
        %v744 = vsel %vm729, %v741, %v743
        %v745 = vrot.slane %v703, 6
        %v746 = vsel %vm729, %v743, %v745
        %v747 = vrot.slane %v704, 6
        %v748 = vsel %vm729, %v745, %v747
        %v749 = vrot.slane %v705, 6
        %v750 = vsel %vm729, %v747, %v749
        %v751 = vrot.slane %v706, 6
        %v752 = vsel %vm729, %v749, %v751
        %v753 = vrot.slane %v707, 6
        %v754 = vsel %vm729, %v751, %v753
        %v755 = vrot.slane %v708, 6
        %v756 = vsel %vm729, %v753, %v755
        %v757 = vrot.slane %v709, 6
        %v758 = vsel %vm729, %v755, %v757
        %v759 = vrot.slane %v710, 6
        %v760 = vsel %vm729, %v757, %v759
        %v761 = vrot.slane %v711, 6
        %v762 = vsel %vm729, %v759, %v761
        %v779 = vadd.f32 %v678, %v732
        %v780 = vadd.f32 %v679, %v734
        %v781 = vadd.f32 %v680, %v736
        %v782 = vadd.f32 %v681, %v738
        %v783 = vadd.f32 %v682, %v740
        %v784 = vadd.f32 %v683, %v742
        %v785 = vadd.f32 %v684, %v744
        %v786 = vadd.f32 %v685, %v746
        %v787 = vadd.f32 %v686, %v748
        %v788 = vadd.f32 %v687, %v750
        %v789 = vadd.f32 %v688, %v752
        %v790 = vadd.f32 %v689, %v754
        %v791 = vadd.f32 %v690, %v756
        %v792 = vadd.f32 %v691, %v758
        %v793 = vadd.f32 %v692, %v760
        %v794 = vadd.f32 %v693, %v762
        %v795 = vperm.slane %v328, 0
        %v796 = vmul.f32 %v795, %v341
        %v797 = vmul.f32 %v795, %v364
        %v798 = vmul.f32 %v795, %v365
        %v799 = vmul.f32 %v795, %v366
        %v800 = vmul.f32 %v795, %v367
        %v801 = vmul.f32 %v795, %v368
        %v802 = vmul.f32 %v795, %v369
        %v803 = vmul.f32 %v795, %v370
        %v804 = vmul.f32 %v795, %v371
        %v805 = vmul.f32 %v795, %v372
        %v806 = vmul.f32 %v795, %v373
        %v807 = vmul.f32 %v795, %v374
        %v808 = vmul.f32 %v795, %v375
        %v809 = vmul.f32 %v795, %v376
        %v810 = vmul.f32 %v795, %v377
        %v811 = vmul.f32 %v795, %v378
        %v812 = vmul.f32 %v795, %v379
        %vm830 = vcmask 1042432
        %v831 = vrot.slane %v796, 5
        %v832 = vrot.slane %v797, 5
        %v833 = vsel %vm830, %v831, %v832
        %v834 = vrot.slane %v798, 5
        %v835 = vsel %vm830, %v832, %v834
        %v836 = vrot.slane %v799, 5
        %v837 = vsel %vm830, %v834, %v836
        %v838 = vrot.slane %v800, 5
        %v839 = vsel %vm830, %v836, %v838
        %v840 = vrot.slane %v801, 5
        %v841 = vsel %vm830, %v838, %v840
        %v842 = vrot.slane %v802, 5
        %v843 = vsel %vm830, %v840, %v842
        %v844 = vrot.slane %v803, 5
        %v845 = vsel %vm830, %v842, %v844
        %v846 = vrot.slane %v804, 5
        %v847 = vsel %vm830, %v844, %v846
        %v848 = vrot.slane %v805, 5
        %v849 = vsel %vm830, %v846, %v848
        %v850 = vrot.slane %v806, 5
        %v851 = vsel %vm830, %v848, %v850
        %v852 = vrot.slane %v807, 5
        %v853 = vsel %vm830, %v850, %v852
        %v854 = vrot.slane %v808, 5
        %v855 = vsel %vm830, %v852, %v854
        %v856 = vrot.slane %v809, 5
        %v857 = vsel %vm830, %v854, %v856
        %v858 = vrot.slane %v810, 5
        %v859 = vsel %vm830, %v856, %v858
        %v860 = vrot.slane %v811, 5
        %v861 = vsel %vm830, %v858, %v860
        %v862 = vrot.slane %v812, 5
        %v863 = vsel %vm830, %v860, %v862
        %v880 = vadd.f32 %v779, %v833
        %v881 = vadd.f32 %v780, %v835
        %v882 = vadd.f32 %v781, %v837
        %v883 = vadd.f32 %v782, %v839
        %v884 = vadd.f32 %v783, %v841
        %v885 = vadd.f32 %v784, %v843
        %v886 = vadd.f32 %v785, %v845
        %v887 = vadd.f32 %v786, %v847
        %v888 = vadd.f32 %v787, %v849
        %v889 = vadd.f32 %v788, %v851
        %v890 = vadd.f32 %v789, %v853
        %v891 = vadd.f32 %v790, %v855
        %v892 = vadd.f32 %v791, %v857
        %v893 = vadd.f32 %v792, %v859
        %v894 = vadd.f32 %v793, %v861
        %v895 = vadd.f32 %v794, %v863
        %v896 = vsub.f32 0.0, %v880
        %v897 = vsub.f32 0.0, %v881
        %v898 = vsub.f32 0.0, %v882
        %v899 = vsub.f32 0.0, %v883
        %v900 = vsub.f32 0.0, %v884
        %v901 = vsub.f32 0.0, %v885
        %v902 = vsub.f32 0.0, %v886
        %v903 = vsub.f32 0.0, %v887
        %v904 = vsub.f32 0.0, %v888
        %v905 = vsub.f32 0.0, %v889
        %v906 = vsub.f32 0.0, %v890
        %v907 = vsub.f32 0.0, %v891
        %v908 = vsub.f32 0.0, %v892
        %v909 = vsub.f32 0.0, %v893
        %v910 = vsub.f32 0.0, %v894
        %v911 = vsub.f32 0.0, %v895
        %v912 = vmul.f32 %v896, 1.442695
        %v913 = vpow.pop %v912
        %v914 = vmul.f32 %v897, 1.442695
        %v915 = vpow.pop %v914
        %v916 = vmul.f32 %v898, 1.442695
        %v917 = vpow.pop %v916
        %v918 = vmul.f32 %v899, 1.442695
        %v919 = vpow.pop %v918
        %v920 = vmul.f32 %v900, 1.442695
        %v921 = vpow.pop %v920
        %v922 = vmul.f32 %v901, 1.442695
        %v923 = vpow.pop %v922
        %v924 = vmul.f32 %v902, 1.442695
        %v925 = vpow.pop %v924
        %v926 = vmul.f32 %v903, 1.442695
        %v927 = vpow.pop %v926
        %v928 = vmul.f32 %v904, 1.442695
        %v929 = vpow.pop %v928
        %v930 = vmul.f32 %v905, 1.442695
        %v931 = vpow.pop %v930
        %v932 = vmul.f32 %v906, 1.442695
        %v933 = vpow.pop %v932
        %v934 = vmul.f32 %v907, 1.442695
        %v935 = vpow.pop %v934
        %v936 = vmul.f32 %v908, 1.442695
        %v937 = vpow.pop %v936
        %v938 = vmul.f32 %v909, 1.442695
        %v939 = vpow.pop %v938
        %v940 = vmul.f32 %v910, 1.442695
        %v941 = vpow.pop %v940
        %v942 = vmul.f32 %v911, 1.442695
        %v943 = vpow.pop %v942
        %v944 = vadd.f32 %v913, 1.0
        %v945 = vadd.f32 %v915, 1.0
        %v946 = vadd.f32 %v917, 1.0
        %v947 = vadd.f32 %v919, 1.0
        %v948 = vadd.f32 %v921, 1.0
        %v949 = vadd.f32 %v923, 1.0
        %v950 = vadd.f32 %v925, 1.0
        %v951 = vadd.f32 %v927, 1.0
        %v952 = vadd.f32 %v929, 1.0
        %v953 = vadd.f32 %v931, 1.0
        %v954 = vadd.f32 %v933, 1.0
        %v955 = vadd.f32 %v935, 1.0
        %v956 = vadd.f32 %v937, 1.0
        %v957 = vadd.f32 %v939, 1.0
        %v958 = vadd.f32 %v941, 1.0
        %v959 = vadd.f32 %v943, 1.0
        %v960 = vrcp.pop %v944
        %v961 = vrcp.pop %v945
        %v962 = vrcp.pop %v946
        %v963 = vrcp.pop %v947
        %v964 = vrcp.pop %v948
        %v965 = vrcp.pop %v949
        %v966 = vrcp.pop %v950
        %v967 = vrcp.pop %v951
        %v968 = vrcp.pop %v952
        %v969 = vrcp.pop %v953
        %v970 = vrcp.pop %v954
        %v971 = vrcp.pop %v955
        %v972 = vrcp.pop %v956
        %v973 = vrcp.pop %v957
        %v974 = vrcp.pop %v958
        %v975 = vrcp.pop %v959
        %v976 = vmul.f32 %v880, %v960
        %v977 = vmul.f32 %v881, %v961
        %v978 = vmul.f32 %v882, %v962
        %v979 = vmul.f32 %v883, %v963
        %v980 = vmul.f32 %v884, %v964
        %v981 = vmul.f32 %v885, %v965
        %v982 = vmul.f32 %v886, %v966
        %v983 = vmul.f32 %v887, %v967
        %v984 = vmul.f32 %v888, %v968
        %v985 = vmul.f32 %v889, %v969
        %v986 = vmul.f32 %v890, %v970
        %v987 = vmul.f32 %v891, %v971
        %v988 = vmul.f32 %v892, %v972
        %v989 = vmul.f32 %v893, %v973
        %v990 = vmul.f32 %v894, %v974
        %v991 = vmul.f32 %v895, %v975
        %s992 = scalar_lea.vmem [#allocation2], %s342
        %993 = vst [vmem:[%s992] sm:$0xff] %v976
        %994 = vst [vmem:[%s992 + $0x8] sm:$0xff] %v977
        %995 = vst [vmem:[%s992 + $0x10] sm:$0xff] %v978
        %996 = vst [vmem:[%s992 + $0x18] sm:$0xff] %v979
        %997 = vst [vmem:[%s992 + $0x20] sm:$0xff] %v980
        %998 = vst [vmem:[%s992 + $0x28] sm:$0xff] %v981
        %999 = vst [vmem:[%s992 + $0x30] sm:$0xff] %v982
        %1000 = vst [vmem:[%s992 + $0x38] sm:$0xff] %v983
        %1001 = vst [vmem:[%s992 + $0x40] sm:$0xff] %v984
        %1002 = vst [vmem:[%s992 + $0x48] sm:$0xff] %v985
        %1003 = vst [vmem:[%s992 + $0x50] sm:$0xff] %v986
        %1004 = vst [vmem:[%s992 + $0x58] sm:$0xff] %v987
        %1005 = vst [vmem:[%s992 + $0x60] sm:$0xff] %v988
        %1006 = vst [vmem:[%s992 + $0x68] sm:$0xff] %v989
        %1007 = vst [vmem:[%s992 + $0x70] sm:$0xff] %v990
        %1008 = vst [vmem:[%s992 + $0x78] sm:$0xff] %v991
        %v1009 = vpack.c.bf16 %v977, %v976
        %v1010 = vpack.c.bf16 %v979, %v978
        %v1011 = vpack.c.bf16 %v981, %v980
        %v1012 = vpack.c.bf16 %v983, %v982
        %v1013 = vpack.c.bf16 %v985, %v984
        %v1014 = vpack.c.bf16 %v987, %v986
        %v1015 = vpack.c.bf16 %v989, %v988
        %v1016 = vpack.c.bf16 %v991, %v990
        %v1017 = vld [vmem:[%s3] sm:$0xff]
        %v1018 = vld [vmem:[%s3 + $0x8] sm:$0xff]
        %v1019 = vld [vmem:[%s3 + $0x10] sm:$0xff]
        %v1020 = vld [vmem:[%s3 + $0x18] sm:$0xff]
        %v1021 = vld [vmem:[%s3 + $0x20] sm:$0xff]
        %v1022 = vld [vmem:[%s3 + $0x28] sm:$0xff]
        %v1023 = vld [vmem:[%s3 + $0x30] sm:$0xff]
        %v1024 = vld [vmem:[%s3 + $0x38] sm:$0xff]
        %v1025 = vld [vmem:[%s3 + $0x40] sm:$0xff]
        %v1026 = vld [vmem:[%s3 + $0x48] sm:$0xff]
        %v1027 = vld [vmem:[%s3 + $0x50] sm:$0xff]
        %v1028 = vld [vmem:[%s3 + $0x58] sm:$0xff]
        %v1029 = vld [vmem:[%s3 + $0x60] sm:$0xff]
        %v1030 = vld [vmem:[%s3 + $0x68] sm:$0xff]
        %v1031 = vld [vmem:[%s3 + $0x70] sm:$0xff]
        %v1032 = vld [vmem:[%s3 + $0x78] sm:$0xff]
        %v1049 = vunpack.c.l.b16 %v1017
        %v1050 = vunpack.c.h.b16 %v1017
        %v1051 = vunpack.c.l.b16 %v1018
        %v1052 = vunpack.c.h.b16 %v1018
        %v1053 = vunpack.c.l.b16 %v1019
        %v1054 = vunpack.c.h.b16 %v1019
        %v1055 = vunpack.c.l.b16 %v1020
        %v1056 = vunpack.c.h.b16 %v1020
        %v1057 = vunpack.c.l.b16 %v1021
        %v1058 = vunpack.c.h.b16 %v1021
        %v1059 = vunpack.c.l.b16 %v1022
        %v1060 = vunpack.c.h.b16 %v1022
        %v1061 = vunpack.c.l.b16 %v1023
        %v1062 = vunpack.c.h.b16 %v1023
        %v1063 = vunpack.c.l.b16 %v1024
        %v1064 = vunpack.c.h.b16 %v1024
        %v1065 = vunpack.c.l.b16 %v1025
        %v1066 = vunpack.c.h.b16 %v1025
        %v1067 = vunpack.c.l.b16 %v1026
        %v1068 = vunpack.c.h.b16 %v1026
        %v1069 = vunpack.c.l.b16 %v1027
        %v1070 = vunpack.c.h.b16 %v1027
        %v1071 = vunpack.c.l.b16 %v1028
        %v1072 = vunpack.c.h.b16 %v1028
        %v1073 = vunpack.c.l.b16 %v1029
        %v1074 = vunpack.c.h.b16 %v1029
        %v1075 = vunpack.c.l.b16 %v1030
        %v1076 = vunpack.c.h.b16 %v1030
        %v1077 = vunpack.c.l.b16 %v1031
        %v1078 = vunpack.c.h.b16 %v1031
        %v1079 = vunpack.c.l.b16 %v1032
        %v1080 = vunpack.c.h.b16 %v1032
        %v1081 = vpack.c.b16 %v1051, %v1049
        %v1082 = vpack.c.b16 %v1052, %v1050
        %v1083 = vpack.c.b16 %v1055, %v1053
        %v1084 = vpack.c.b16 %v1056, %v1054
        %v1085 = vpack.c.b16 %v1059, %v1057
        %v1086 = vpack.c.b16 %v1060, %v1058
        %v1087 = vpack.c.b16 %v1063, %v1061
        %v1088 = vpack.c.b16 %v1064, %v1062
        %v1089 = vpack.c.b16 %v1067, %v1065
        %v1090 = vpack.c.b16 %v1068, %v1066
        %v1091 = vpack.c.b16 %v1071, %v1069
        %v1092 = vpack.c.b16 %v1072, %v1070
        %v1093 = vpack.c.b16 %v1075, %v1073
        %v1094 = vpack.c.b16 %v1076, %v1074
        %v1095 = vpack.c.b16 %v1079, %v1077
        %v1096 = vpack.c.b16 %v1080, %v1078
        %1113 = vmatpush.bf16.msra.mxu0 %v1095
        %1114 = vmatpush.bf16.msra.mxu0 %v1093
        %1115 = vmatpush.bf16.msra.mxu0 %v1091
        %1116 = vmatpush.bf16.msra.mxu0 %v1089
        %1117 = vmatpush.bf16.msra.mxu0 %v1087
        %1118 = vmatpush.bf16.msra.mxu0 %v1085
        %1119 = vmatpush.bf16.msra.mxu0 %v1083
        %1120 = vmatpush.bf16.msra.mxu0 %v1081
        %1121 = vmatmul.bf16.gmra.mxu0 %v1009
        %v1122 = vpop.f32.mrf.mxu0
        %v1123 = vadd.f32 0.0, %v1122
        %v1124 = vpop.f32.mrf.mxu0
        %v1125 = vadd.f32 0.0, %v1124
        %1126 = vmatmul.bf16.gmra.mxu0 %v1010
        %v1127 = vpop.f32.mrf.mxu0
        %v1128 = vadd.f32 0.0, %v1127
        %v1129 = vpop.f32.mrf.mxu0
        %v1130 = vadd.f32 0.0, %v1129
        %1131 = vmatmul.bf16.gmra.mxu0 %v1011
        %v1132 = vpop.f32.mrf.mxu0
        %v1133 = vadd.f32 0.0, %v1132
        %v1134 = vpop.f32.mrf.mxu0
        %v1135 = vadd.f32 0.0, %v1134
        %1136 = vmatmul.bf16.gmra.mxu0 %v1012
        %v1137 = vpop.f32.mrf.mxu0
        %v1138 = vadd.f32 0.0, %v1137
        %v1139 = vpop.f32.mrf.mxu0
        %v1140 = vadd.f32 0.0, %v1139
        %1141 = vmatmul.bf16.gmra.mxu0 %v1013
        %v1142 = vpop.f32.mrf.mxu0
        %v1143 = vadd.f32 0.0, %v1142
        %v1144 = vpop.f32.mrf.mxu0
        %v1145 = vadd.f32 0.0, %v1144
        %1146 = vmatmul.bf16.gmra.mxu0 %v1014
        %v1147 = vpop.f32.mrf.mxu0
        %v1148 = vadd.f32 0.0, %v1147
        %v1149 = vpop.f32.mrf.mxu0
        %v1150 = vadd.f32 0.0, %v1149
        %1151 = vmatmul.bf16.gmra.mxu0 %v1015
        %v1152 = vpop.f32.mrf.mxu0
        %v1153 = vadd.f32 0.0, %v1152
        %v1154 = vpop.f32.mrf.mxu0
        %v1155 = vadd.f32 0.0, %v1154
        %1156 = vmatmul.bf16.gmra.mxu0 %v1016
        %v1157 = vpop.f32.mrf.mxu0
        %v1158 = vadd.f32 0.0, %v1157
        %v1159 = vpop.f32.mrf.mxu0
        %v1160 = vadd.f32 0.0, %v1159
        %1161 = vdwg.mxu0
        %1162 = vmatpush.bf16.msra.mxu0 %v1096
        %1163 = vmatpush.bf16.msra.mxu0 %v1094
        %1164 = vmatpush.bf16.msra.mxu0 %v1092
        %1165 = vmatpush.bf16.msra.mxu0 %v1090
        %1166 = vmatpush.bf16.msra.mxu0 %v1088
        %1167 = vmatpush.bf16.msra.mxu0 %v1086
        %1168 = vmatpush.bf16.msra.mxu0 %v1084
        %1169 = vmatpush.bf16.msra.mxu0 %v1082
        %1170 = vmatmul.bf16.gmra.mxu0 %v1009
        %v1171 = vpop.f32.mrf.mxu0
        %v1172 = vadd.f32 0.0, %v1171
        %v1173 = vpop.f32.mrf.mxu0
        %v1174 = vadd.f32 0.0, %v1173
        %1175 = vmatmul.bf16.gmra.mxu0 %v1010
        %v1176 = vpop.f32.mrf.mxu0
        %v1177 = vadd.f32 0.0, %v1176
        %v1178 = vpop.f32.mrf.mxu0
        %v1179 = vadd.f32 0.0, %v1178
        %1180 = vmatmul.bf16.gmra.mxu0 %v1011
        %v1181 = vpop.f32.mrf.mxu0
        %v1182 = vadd.f32 0.0, %v1181
        %v1183 = vpop.f32.mrf.mxu0
        %v1184 = vadd.f32 0.0, %v1183
        %1185 = vmatmul.bf16.gmra.mxu0 %v1012
        %v1186 = vpop.f32.mrf.mxu0
        %v1187 = vadd.f32 0.0, %v1186
        %v1188 = vpop.f32.mrf.mxu0
        %v1189 = vadd.f32 0.0, %v1188
        %1190 = vmatmul.bf16.gmra.mxu0 %v1013
        %v1191 = vpop.f32.mrf.mxu0
        %v1192 = vadd.f32 0.0, %v1191
        %v1193 = vpop.f32.mrf.mxu0
        %v1194 = vadd.f32 0.0, %v1193
        %1195 = vmatmul.bf16.gmra.mxu0 %v1014
        %v1196 = vpop.f32.mrf.mxu0
        %v1197 = vadd.f32 0.0, %v1196
        %v1198 = vpop.f32.mrf.mxu0
        %v1199 = vadd.f32 0.0, %v1198
        %1200 = vmatmul.bf16.gmra.mxu0 %v1015
        %v1201 = vpop.f32.mrf.mxu0
        %v1202 = vadd.f32 0.0, %v1201
        %v1203 = vpop.f32.mrf.mxu0
        %v1204 = vadd.f32 0.0, %v1203
        %1205 = vmatmul.bf16.gmra.mxu0 %v1016
        %v1206 = vpop.f32.mrf.mxu0
        %v1207 = vadd.f32 0.0, %v1206
        %v1208 = vpop.f32.mrf.mxu0
        %v1209 = vadd.f32 0.0, %v1208
        %1210 = vdwg.mxu0
        %v1212 = vperm.slane %v333, 0
        %v1214 = vadd.f32 %v1123, %v1212
        %v1215 = vadd.f32 %v1125, %v1212
        %v1216 = vadd.f32 %v1128, %v1212
        %v1217 = vadd.f32 %v1130, %v1212
        %v1218 = vadd.f32 %v1133, %v1212
        %v1219 = vadd.f32 %v1135, %v1212
        %v1220 = vadd.f32 %v1138, %v1212
        %v1221 = vadd.f32 %v1140, %v1212
        %v1222 = vadd.f32 %v1143, %v1212
        %v1223 = vadd.f32 %v1145, %v1212
        %v1224 = vadd.f32 %v1148, %v1212
        %v1225 = vadd.f32 %v1150, %v1212
        %v1226 = vadd.f32 %v1153, %v1212
        %v1227 = vadd.f32 %v1155, %v1212
        %v1228 = vadd.f32 %v1158, %v1212
        %v1229 = vadd.f32 %v1160, %v1212
        %v1230 = vmax.f32 %v1214, 0.0
        %v1231 = vmax.f32 %v1215, 0.0
        %v1232 = vmax.f32 %v1216, 0.0
        %v1233 = vmax.f32 %v1217, 0.0
        %v1234 = vmax.f32 %v1218, 0.0
        %v1235 = vmax.f32 %v1219, 0.0
        %v1236 = vmax.f32 %v1220, 0.0
        %v1237 = vmax.f32 %v1221, 0.0
        %v1238 = vmax.f32 %v1222, 0.0
        %v1239 = vmax.f32 %v1223, 0.0
        %v1240 = vmax.f32 %v1224, 0.0
        %v1241 = vmax.f32 %v1225, 0.0
        %v1242 = vmax.f32 %v1226, 0.0
        %v1243 = vmax.f32 %v1227, 0.0
        %v1244 = vmax.f32 %v1228, 0.0
        %v1245 = vmax.f32 %v1229, 0.0
        %v1246 = vand.u32 2147483647, %v1214
        %v1247 = vand.u32 2147483647, %v1215
        %v1248 = vand.u32 2147483647, %v1216
        %v1249 = vand.u32 2147483647, %v1217
        %v1250 = vand.u32 2147483647, %v1218
        %v1251 = vand.u32 2147483647, %v1219
        %v1252 = vand.u32 2147483647, %v1220
        %v1253 = vand.u32 2147483647, %v1221
        %v1254 = vand.u32 2147483647, %v1222
        %v1255 = vand.u32 2147483647, %v1223
        %v1256 = vand.u32 2147483647, %v1224
        %v1257 = vand.u32 2147483647, %v1225
        %v1258 = vand.u32 2147483647, %v1226
        %v1259 = vand.u32 2147483647, %v1227
        %v1260 = vand.u32 2147483647, %v1228
        %v1261 = vand.u32 2147483647, %v1229
        %v1262 = vsub.f32 0.0, %v1246
        %v1263 = vsub.f32 0.0, %v1247
        %v1264 = vsub.f32 0.0, %v1248
        %v1265 = vsub.f32 0.0, %v1249
        %v1266 = vsub.f32 0.0, %v1250
        %v1267 = vsub.f32 0.0, %v1251
        %v1268 = vsub.f32 0.0, %v1252
        %v1269 = vsub.f32 0.0, %v1253
        %v1270 = vsub.f32 0.0, %v1254
        %v1271 = vsub.f32 0.0, %v1255
        %v1272 = vsub.f32 0.0, %v1256
        %v1273 = vsub.f32 0.0, %v1257
        %v1274 = vsub.f32 0.0, %v1258
        %v1275 = vsub.f32 0.0, %v1259
        %v1276 = vsub.f32 0.0, %v1260
        %v1277 = vsub.f32 0.0, %v1261
        %v1278 = vmul.f32 %v1262, 1.442695
        %v1279 = vpow.pop %v1278
        %v1280 = vmul.f32 %v1263, 1.442695
        %v1281 = vpow.pop %v1280
        %v1282 = vmul.f32 %v1264, 1.442695
        %v1283 = vpow.pop %v1282
        %v1284 = vmul.f32 %v1265, 1.442695
        %v1285 = vpow.pop %v1284
        %v1286 = vmul.f32 %v1266, 1.442695
        %v1287 = vpow.pop %v1286
        %v1288 = vmul.f32 %v1267, 1.442695
        %v1289 = vpow.pop %v1288
        %v1290 = vmul.f32 %v1268, 1.442695
        %v1291 = vpow.pop %v1290
        %v1292 = vmul.f32 %v1269, 1.442695
        %v1293 = vpow.pop %v1292
        %v1294 = vmul.f32 %v1270, 1.442695
        %v1295 = vpow.pop %v1294
        %v1296 = vmul.f32 %v1271, 1.442695
        %v1297 = vpow.pop %v1296
        %v1298 = vmul.f32 %v1272, 1.442695
        %v1299 = vpow.pop %v1298
        %v1300 = vmul.f32 %v1273, 1.442695
        %v1301 = vpow.pop %v1300
        %v1302 = vmul.f32 %v1274, 1.442695
        %v1303 = vpow.pop %v1302
        %v1304 = vmul.f32 %v1275, 1.442695
        %v1305 = vpow.pop %v1304
        %v1306 = vmul.f32 %v1276, 1.442695
        %v1307 = vpow.pop %v1306
        %v1308 = vmul.f32 %v1277, 1.442695
        %v1309 = vpow.pop %v1308
        %v1310 = vadd.f32 %v1279, 1.0
        %v1311 = vadd.f32 %v1281, 1.0
        %v1312 = vadd.f32 %v1283, 1.0
        %v1313 = vadd.f32 %v1285, 1.0
        %v1314 = vadd.f32 %v1287, 1.0
        %v1315 = vadd.f32 %v1289, 1.0
        %v1316 = vadd.f32 %v1291, 1.0
        %v1317 = vadd.f32 %v1293, 1.0
        %v1318 = vadd.f32 %v1295, 1.0
        %v1319 = vadd.f32 %v1297, 1.0
        %v1320 = vadd.f32 %v1299, 1.0
        %v1321 = vadd.f32 %v1301, 1.0
        %v1322 = vadd.f32 %v1303, 1.0
        %v1323 = vadd.f32 %v1305, 1.0
        %v1324 = vadd.f32 %v1307, 1.0
        %v1325 = vadd.f32 %v1309, 1.0
        %v1326 = vlog2.pop %v1310
        %v1327 = vmul.f32 %v1326, 0.6931472
        %v1328 = vlog2.pop %v1311
        %v1329 = vmul.f32 %v1328, 0.6931472
        %v1330 = vlog2.pop %v1312
        %v1331 = vmul.f32 %v1330, 0.6931472
        %v1332 = vlog2.pop %v1313
        %v1333 = vmul.f32 %v1332, 0.6931472
        %v1334 = vlog2.pop %v1314
        %v1335 = vmul.f32 %v1334, 0.6931472
        %v1336 = vlog2.pop %v1315
        %v1337 = vmul.f32 %v1336, 0.6931472
        %v1338 = vlog2.pop %v1316
        %v1339 = vmul.f32 %v1338, 0.6931472
        %v1340 = vlog2.pop %v1317
        %v1341 = vmul.f32 %v1340, 0.6931472
        %v1342 = vlog2.pop %v1318
        %v1343 = vmul.f32 %v1342, 0.6931472
        %v1344 = vlog2.pop %v1319
        %v1345 = vmul.f32 %v1344, 0.6931472
        %v1346 = vlog2.pop %v1320
        %v1347 = vmul.f32 %v1346, 0.6931472
        %v1348 = vlog2.pop %v1321
        %v1349 = vmul.f32 %v1348, 0.6931472
        %v1350 = vlog2.pop %v1322
        %v1351 = vmul.f32 %v1350, 0.6931472
        %v1352 = vlog2.pop %v1323
        %v1353 = vmul.f32 %v1352, 0.6931472
        %v1354 = vlog2.pop %v1324
        %v1355 = vmul.f32 %v1354, 0.6931472
        %v1356 = vlog2.pop %v1325
        %v1357 = vmul.f32 %v1356, 0.6931472
        %v1358 = vadd.f32 %v1230, %v1327
        %v1359 = vadd.f32 %v1231, %v1329
        %v1360 = vadd.f32 %v1232, %v1331
        %v1361 = vadd.f32 %v1233, %v1333
        %v1362 = vadd.f32 %v1234, %v1335
        %v1363 = vadd.f32 %v1235, %v1337
        %v1364 = vadd.f32 %v1236, %v1339
        %v1365 = vadd.f32 %v1237, %v1341
        %v1366 = vadd.f32 %v1238, %v1343
        %v1367 = vadd.f32 %v1239, %v1345
        %v1368 = vadd.f32 %v1240, %v1347
        %v1369 = vadd.f32 %v1241, %v1349
        %v1370 = vadd.f32 %v1242, %v1351
        %v1371 = vadd.f32 %v1243, %v1353
        %v1372 = vadd.f32 %v1244, %v1355
        %v1373 = vadd.f32 %v1245, %v1357
        %s1374 = scalar_lea.vmem [#allocation4], %s342
        %1375 = vst [vmem:[%s1374] sm:$0xff] %v1358
        %1376 = vst [vmem:[%s1374 + $0x8] sm:$0xff] %v1359
        %1377 = vst [vmem:[%s1374 + $0x10] sm:$0xff] %v1360
        %1378 = vst [vmem:[%s1374 + $0x18] sm:$0xff] %v1361
        %1379 = vst [vmem:[%s1374 + $0x20] sm:$0xff] %v1362
        %1380 = vst [vmem:[%s1374 + $0x28] sm:$0xff] %v1363
        %1381 = vst [vmem:[%s1374 + $0x30] sm:$0xff] %v1364
        %1382 = vst [vmem:[%s1374 + $0x38] sm:$0xff] %v1365
        %1383 = vst [vmem:[%s1374 + $0x40] sm:$0xff] %v1366
        %1384 = vst [vmem:[%s1374 + $0x48] sm:$0xff] %v1367
        %1385 = vst [vmem:[%s1374 + $0x50] sm:$0xff] %v1368
        %1386 = vst [vmem:[%s1374 + $0x58] sm:$0xff] %v1369
        %1387 = vst [vmem:[%s1374 + $0x60] sm:$0xff] %v1370
        %1388 = vst [vmem:[%s1374 + $0x68] sm:$0xff] %v1371
        %1389 = vst [vmem:[%s1374 + $0x70] sm:$0xff] %v1372
        %1390 = vst [vmem:[%s1374 + $0x78] sm:$0xff] %v1373
        %s1391 = scalar_lea.vmem [#allocation5], %s342
        %vm1392 = vcmask 523264
        %1393 = vst.msk [vmem:[%s1391] sm:$0xff] %vm1392, %v1172
        %1394 = vst.msk [vmem:[%s1391 + $0x8] sm:$0xff] %vm1392, %v1174
        %1395 = vst.msk [vmem:[%s1391 + $0x10] sm:$0xff] %vm1392, %v1177
        %1396 = vst.msk [vmem:[%s1391 + $0x18] sm:$0xff] %vm1392, %v1179
        %1397 = vst.msk [vmem:[%s1391 + $0x20] sm:$0xff] %vm1392, %v1182
        %1398 = vst.msk [vmem:[%s1391 + $0x28] sm:$0xff] %vm1392, %v1184
        %1399 = vst.msk [vmem:[%s1391 + $0x30] sm:$0xff] %vm1392, %v1187
        %1400 = vst.msk [vmem:[%s1391 + $0x38] sm:$0xff] %vm1392, %v1189
        %1401 = vst.msk [vmem:[%s1391 + $0x40] sm:$0xff] %vm1392, %v1192
        %1402 = vst.msk [vmem:[%s1391 + $0x48] sm:$0xff] %vm1392, %v1194
        %1403 = vst.msk [vmem:[%s1391 + $0x50] sm:$0xff] %vm1392, %v1197
        %1404 = vst.msk [vmem:[%s1391 + $0x58] sm:$0xff] %vm1392, %v1199
        %1405 = vst.msk [vmem:[%s1391 + $0x60] sm:$0xff] %vm1392, %v1202
        %1406 = vst.msk [vmem:[%s1391 + $0x68] sm:$0xff] %vm1392, %v1204
        %1407 = vst.msk [vmem:[%s1391 + $0x70] sm:$0xff] %vm1392, %v1207
        %1408 = vst.msk [vmem:[%s1391 + $0x78] sm:$0xff] %vm1392, %v1209
      $region57: #{_lambda_.4} parent=47 // loop_footer
        %s340 = sadd.s32 1, %s336
      $region58: #{_lambda_.4} parent=47 // loop_footer_branch
        %335 = sbr.rel target = $region54
      $region59: #{_lambda_.4} parent=47 // loop_exit
        _
      %1409 = vst [vmem:[#allocation7] sm:$0xff] %v341
      %v1410 = vld [vmem:[#allocation8] sm:$0xff]
      %v1411 = vld [vmem:[#allocation8 + $0x8] sm:$0xff]
      loop: start=0, step=1, limit=64
      $region60: #{_lambda_.4} parent=47 // loop_pre_header
        _
      $region61: #{_lambda_.4} parent=47 // loop_header
        %s1413 = sphi 0, %s1417
        %p1414 = scmp.ge.s32.totalorder %s1413, 64
        %v1418 = vphi %v1410, %v2115
        %v1419 = vphi %v1411, %v2116
      $region62: #{_lambda_.4} parent=47 // loop_header_branch
        %1416 = sbr.rel (%p1414) target = $region66
      $region63: #{_lambda_.4} parent=47 // loop_body
        %s1420 = smul.u32 %s1413, 8
        %s1421 = scalar_lea.vmem [#allocation4], %s1420
        %v1422 = vld [vmem:[%s1421] sm:$0xff]
        %s1423 = scalar_lea.vmem [#allocation2], %s1420
        %v1424 = vld [vmem:[%s1423] sm:$0xff]
        %s1425 = scalar_lea.vmem [#allocation3], %s1420
        %v1426 = vld [vmem:[%s1425] sm:$0xff]
        %s1427 = scalar_lea.vmem [#allocation5], %s1420
        %v1428 = vld [vmem:[%s1427] sm:$0xff]
        %v1429 = vmul.f32 %v1422, %v1424
        %v1431 = vrot.slane %v1422, 1
        %v1432 = vrot.slane %v1422, 2
        %v1433 = vrot.slane %v1422, 3
        %v1434 = vrot.slane %v1422, 4
        %v1435 = vrot.slane %v1422, 5
        %v1436 = vrot.slane %v1422, 6
        %v1437 = vrot.slane %v1422, 7
        %v1438 = vperm.slane %v1422, 0
        %v1439 = vperm.slane %v1431, 0
        %v1440 = vperm.slane %v1432, 0
        %v1441 = vperm.slane %v1433, 0
        %v1442 = vperm.slane %v1434, 0
        %v1443 = vperm.slane %v1435, 0
        %v1444 = vperm.slane %v1436, 0
        %v1445 = vperm.slane %v1437, 0
        %v1454 = vmul.f32 %v1438, %v330
        %v1455 = vmul.f32 %v1438, %v331
        %v1456 = vmul.f32 %v1439, %v330
        %v1457 = vmul.f32 %v1439, %v331
        %v1458 = vmul.f32 %v1440, %v330
        %v1459 = vmul.f32 %v1440, %v331
        %v1460 = vmul.f32 %v1441, %v330
        %v1461 = vmul.f32 %v1441, %v331
        %v1462 = vmul.f32 %v1442, %v330
        %v1463 = vmul.f32 %v1442, %v331
        %v1464 = vmul.f32 %v1443, %v330
        %v1465 = vmul.f32 %v1443, %v331
        %v1466 = vmul.f32 %v1444, %v330
        %v1467 = vmul.f32 %v1444, %v331
        %v1468 = vmul.f32 %v1445, %v330
        %v1469 = vmul.f32 %v1445, %v331
        %v1470 = vmul.f32 %v1454, 1.442695
        %v1471 = vpow.pop %v1470
        %v1472 = vmul.f32 %v1455, 1.442695
        %v1473 = vpow.pop %v1472
        %v1474 = vmul.f32 %v1456, 1.442695
        %v1475 = vpow.pop %v1474
        %v1476 = vmul.f32 %v1457, 1.442695
        %v1477 = vpow.pop %v1476
        %v1478 = vmul.f32 %v1458, 1.442695
        %v1479 = vpow.pop %v1478
        %v1480 = vmul.f32 %v1459, 1.442695
        %v1481 = vpow.pop %v1480
        %v1482 = vmul.f32 %v1460, 1.442695
        %v1483 = vpow.pop %v1482
        %v1484 = vmul.f32 %v1461, 1.442695
        %v1485 = vpow.pop %v1484
        %v1486 = vmul.f32 %v1462, 1.442695
        %v1487 = vpow.pop %v1486
        %v1488 = vmul.f32 %v1463, 1.442695
        %v1489 = vpow.pop %v1488
        %v1490 = vmul.f32 %v1464, 1.442695
        %v1491 = vpow.pop %v1490
        %v1492 = vmul.f32 %v1465, 1.442695
        %v1493 = vpow.pop %v1492
        %v1494 = vmul.f32 %v1466, 1.442695
        %v1495 = vpow.pop %v1494
        %v1496 = vmul.f32 %v1467, 1.442695
        %v1497 = vpow.pop %v1496
        %v1498 = vmul.f32 %v1468, 1.442695
        %v1499 = vpow.pop %v1498
        %v1500 = vmul.f32 %v1469, 1.442695
        %v1501 = vpow.pop %v1500
        %v1502 = vperm.slane %v1428, 0
        %v1503 = vlaneseq
        %v1504 = vshrl.u32 %v1503, 7
        %1506 = vset.pattern.permute.xlu0 %v1504
        %1507 = vperm.xlu0 %1506, %v1502
        %v1508 = vpop.permute.xlu0 %1507
        %v1509 = vlaneseq
        %v1510 = vshrl.u32 %v1509, 7
        %v1511 = vadd.s32 %v1510, 8
        %1512 = vset.pattern.permute.xlu0 %v1511
        %1513 = vperm.xlu0 %1512, %v1502
        %v1514 = vpop.permute.xlu0 %1513
        %v1515 = vperm.slane %v1428, 1
        %v1516 = vlaneseq
        %v1517 = vshrl.u32 %v1516, 7
        %1519 = vset.pattern.permute.xlu0 %v1517
        %1520 = vperm.xlu0 %1519, %v1515
        %v1521 = vpop.permute.xlu0 %1520
        %v1522 = vlaneseq
        %v1523 = vshrl.u32 %v1522, 7
        %v1524 = vadd.s32 %v1523, 8
        %1525 = vset.pattern.permute.xlu0 %v1524
        %1526 = vperm.xlu0 %1525, %v1515
        %v1527 = vpop.permute.xlu0 %1526
        %v1528 = vperm.slane %v1428, 2
        %v1529 = vlaneseq
        %v1530 = vshrl.u32 %v1529, 7
        %1532 = vset.pattern.permute.xlu0 %v1530
        %1533 = vperm.xlu0 %1532, %v1528
        %v1534 = vpop.permute.xlu0 %1533
        %v1535 = vlaneseq
        %v1536 = vshrl.u32 %v1535, 7
        %v1537 = vadd.s32 %v1536, 8
        %1538 = vset.pattern.permute.xlu0 %v1537
        %1539 = vperm.xlu0 %1538, %v1528
        %v1540 = vpop.permute.xlu0 %1539
        %v1541 = vperm.slane %v1428, 3
        %v1542 = vlaneseq
        %v1543 = vshrl.u32 %v1542, 7
        %1545 = vset.pattern.permute.xlu0 %v1543
        %1546 = vperm.xlu0 %1545, %v1541
        %v1547 = vpop.permute.xlu0 %1546
        %v1548 = vlaneseq
        %v1549 = vshrl.u32 %v1548, 7
        %v1550 = vadd.s32 %v1549, 8
        %1551 = vset.pattern.permute.xlu0 %v1550
        %1552 = vperm.xlu0 %1551, %v1541
        %v1553 = vpop.permute.xlu0 %1552
        %v1554 = vperm.slane %v1428, 4
        %v1555 = vlaneseq
        %v1556 = vshrl.u32 %v1555, 7
        %1558 = vset.pattern.permute.xlu0 %v1556
        %1559 = vperm.xlu0 %1558, %v1554
        %v1560 = vpop.permute.xlu0 %1559
        %v1561 = vlaneseq
        %v1562 = vshrl.u32 %v1561, 7
        %v1563 = vadd.s32 %v1562, 8
        %1564 = vset.pattern.permute.xlu0 %v1563
        %1565 = vperm.xlu0 %1564, %v1554
        %v1566 = vpop.permute.xlu0 %1565
        %v1567 = vperm.slane %v1428, 5
        %v1568 = vlaneseq
        %v1569 = vshrl.u32 %v1568, 7
        %1571 = vset.pattern.permute.xlu0 %v1569
        %1572 = vperm.xlu0 %1571, %v1567
        %v1573 = vpop.permute.xlu0 %1572
        %v1574 = vlaneseq
        %v1575 = vshrl.u32 %v1574, 7
        %v1576 = vadd.s32 %v1575, 8
        %1577 = vset.pattern.permute.xlu0 %v1576
        %1578 = vperm.xlu0 %1577, %v1567
        %v1579 = vpop.permute.xlu0 %1578
        %v1580 = vperm.slane %v1428, 6
        %v1581 = vlaneseq
        %v1582 = vshrl.u32 %v1581, 7
        %1584 = vset.pattern.permute.xlu0 %v1582
        %1585 = vperm.xlu0 %1584, %v1580
        %v1586 = vpop.permute.xlu0 %1585
        %v1587 = vlaneseq
        %v1588 = vshrl.u32 %v1587, 7
        %v1589 = vadd.s32 %v1588, 8
        %1590 = vset.pattern.permute.xlu0 %v1589
        %1591 = vperm.xlu0 %1590, %v1580
        %v1592 = vpop.permute.xlu0 %1591
        %v1593 = vperm.slane %v1428, 7
        %v1594 = vlaneseq
        %v1595 = vshrl.u32 %v1594, 7
        %1597 = vset.pattern.permute.xlu0 %v1595
        %1598 = vperm.xlu0 %1597, %v1593
        %v1599 = vpop.permute.xlu0 %1598
        %v1600 = vlaneseq
        %v1601 = vshrl.u32 %v1600, 7
        %v1602 = vadd.s32 %v1601, 8
        %1603 = vset.pattern.permute.xlu0 %v1602
        %1604 = vperm.xlu0 %1603, %v1593
        %v1605 = vpop.permute.xlu0 %1604
        %v1607 = vrot.slane %v1429, 1
        %v1608 = vrot.slane %v1429, 2
        %v1609 = vrot.slane %v1429, 3
        %v1610 = vrot.slane %v1429, 4
        %v1611 = vrot.slane %v1429, 5
        %v1612 = vrot.slane %v1429, 6
        %v1613 = vrot.slane %v1429, 7
        %v1614 = vperm.slane %v1429, 0
        %v1615 = vperm.slane %v1607, 0
        %v1616 = vperm.slane %v1608, 0
        %v1617 = vperm.slane %v1609, 0
        %v1618 = vperm.slane %v1610, 0
        %v1619 = vperm.slane %v1611, 0
        %v1620 = vperm.slane %v1612, 0
        %v1621 = vperm.slane %v1613, 0
        %v1630 = vmul.f32 %v1508, %v1614
        %v1631 = vmul.f32 %v1514, %v1614
        %v1632 = vmul.f32 %v1521, %v1615
        %v1633 = vmul.f32 %v1527, %v1615
        %v1634 = vmul.f32 %v1534, %v1616
        %v1635 = vmul.f32 %v1540, %v1616
        %v1636 = vmul.f32 %v1547, %v1617
        %v1637 = vmul.f32 %v1553, %v1617
        %v1638 = vmul.f32 %v1560, %v1618
        %v1639 = vmul.f32 %v1566, %v1618
        %v1640 = vmul.f32 %v1573, %v1619
        %v1641 = vmul.f32 %v1579, %v1619
        %v1642 = vmul.f32 %v1586, %v1620
        %v1643 = vmul.f32 %v1592, %v1620
        %v1644 = vmul.f32 %v1599, %v1621
        %v1645 = vmul.f32 %v1605, %v1621
        %v1646 = vlaneseq
        %v1647 = vshrl.u32 %v1646, 7
        %v1648 = vadd.s32 %v1647, 16
        %1649 = vset.pattern.permute.xlu0 %v1648
        %1650 = vperm.xlu0 %1649, %v1502
        %v1651 = vpop.permute.xlu0 %1650
        %v1652 = vlaneseq
        %v1653 = vshrl.u32 %v1652, 7
        %v1654 = vadd.s32 %v1653, 24
        %1655 = vset.pattern.permute.xlu0 %v1654
        %1656 = vperm.xlu0 %1655, %v1502
        %v1657 = vpop.permute.xlu0 %1656
        %v1658 = vlaneseq
        %v1659 = vshrl.u32 %v1658, 7
        %v1660 = vadd.s32 %v1659, 16
        %1661 = vset.pattern.permute.xlu0 %v1660
        %1662 = vperm.xlu0 %1661, %v1515
        %v1663 = vpop.permute.xlu0 %1662
        %v1664 = vlaneseq
        %v1665 = vshrl.u32 %v1664, 7
        %v1666 = vadd.s32 %v1665, 24
        %1667 = vset.pattern.permute.xlu0 %v1666
        %1668 = vperm.xlu0 %1667, %v1515
        %v1669 = vpop.permute.xlu0 %1668
        %v1670 = vlaneseq
        %v1671 = vshrl.u32 %v1670, 7
        %v1672 = vadd.s32 %v1671, 16
        %1673 = vset.pattern.permute.xlu0 %v1672
        %1674 = vperm.xlu0 %1673, %v1528
        %v1675 = vpop.permute.xlu0 %1674
        %v1676 = vlaneseq
        %v1677 = vshrl.u32 %v1676, 7
        %v1678 = vadd.s32 %v1677, 24
        %1679 = vset.pattern.permute.xlu0 %v1678
        %1680 = vperm.xlu0 %1679, %v1528
        %v1681 = vpop.permute.xlu0 %1680
        %v1682 = vlaneseq
        %v1683 = vshrl.u32 %v1682, 7
        %v1684 = vadd.s32 %v1683, 16
        %1685 = vset.pattern.permute.xlu0 %v1684
        %1686 = vperm.xlu0 %1685, %v1541
        %v1687 = vpop.permute.xlu0 %1686
        %v1688 = vlaneseq
        %v1689 = vshrl.u32 %v1688, 7
        %v1690 = vadd.s32 %v1689, 24
        %1691 = vset.pattern.permute.xlu0 %v1690
        %1692 = vperm.xlu0 %1691, %v1541
        %v1693 = vpop.permute.xlu0 %1692
        %v1694 = vlaneseq
        %v1695 = vshrl.u32 %v1694, 7
        %v1696 = vadd.s32 %v1695, 16
        %1697 = vset.pattern.permute.xlu0 %v1696
        %1698 = vperm.xlu0 %1697, %v1554
        %v1699 = vpop.permute.xlu0 %1698
        %v1700 = vlaneseq
        %v1701 = vshrl.u32 %v1700, 7
        %v1702 = vadd.s32 %v1701, 24
        %1703 = vset.pattern.permute.xlu0 %v1702
        %1704 = vperm.xlu0 %1703, %v1554
        %v1705 = vpop.permute.xlu0 %1704
        %v1706 = vlaneseq
        %v1707 = vshrl.u32 %v1706, 7
        %v1708 = vadd.s32 %v1707, 16
        %1709 = vset.pattern.permute.xlu0 %v1708
        %1710 = vperm.xlu0 %1709, %v1567
        %v1711 = vpop.permute.xlu0 %1710
        %v1712 = vlaneseq
        %v1713 = vshrl.u32 %v1712, 7
        %v1714 = vadd.s32 %v1713, 24
        %1715 = vset.pattern.permute.xlu0 %v1714
        %1716 = vperm.xlu0 %1715, %v1567
        %v1717 = vpop.permute.xlu0 %1716
        %v1718 = vlaneseq
        %v1719 = vshrl.u32 %v1718, 7
        %v1720 = vadd.s32 %v1719, 16
        %1721 = vset.pattern.permute.xlu0 %v1720
        %1722 = vperm.xlu0 %1721, %v1580
        %v1723 = vpop.permute.xlu0 %1722
        %v1724 = vlaneseq
        %v1725 = vshrl.u32 %v1724, 7
        %v1726 = vadd.s32 %v1725, 24
        %1727 = vset.pattern.permute.xlu0 %v1726
        %1728 = vperm.xlu0 %1727, %v1580
        %v1729 = vpop.permute.xlu0 %1728
        %v1730 = vlaneseq
        %v1731 = vshrl.u32 %v1730, 7
        %v1732 = vadd.s32 %v1731, 16
        %1733 = vset.pattern.permute.xlu0 %v1732
        %1734 = vperm.xlu0 %1733, %v1593
        %v1735 = vpop.permute.xlu0 %1734
        %v1736 = vlaneseq
        %v1737 = vshrl.u32 %v1736, 7
        %v1738 = vadd.s32 %v1737, 24
        %1739 = vset.pattern.permute.xlu0 %v1738
        %1740 = vperm.xlu0 %1739, %v1593
        %v1741 = vpop.permute.xlu0 %1740
        %v1742 = vmul.f32 %v1651, %v1614
        %v1743 = vmul.f32 %v1657, %v1614
        %v1744 = vmul.f32 %v1663, %v1615
        %v1745 = vmul.f32 %v1669, %v1615
        %v1746 = vmul.f32 %v1675, %v1616
        %v1747 = vmul.f32 %v1681, %v1616
        %v1748 = vmul.f32 %v1687, %v1617
        %v1749 = vmul.f32 %v1693, %v1617
        %v1750 = vmul.f32 %v1699, %v1618
        %v1751 = vmul.f32 %v1705, %v1618
        %v1752 = vmul.f32 %v1711, %v1619
        %v1753 = vmul.f32 %v1717, %v1619
        %v1754 = vmul.f32 %v1723, %v1620
        %v1755 = vmul.f32 %v1729, %v1620
        %v1756 = vmul.f32 %v1735, %v1621
        %v1757 = vmul.f32 %v1741, %v1621
        %vm1758 = vcmask 523264
        %v1759 = vsel %vm1758, %v1630, %v1742
        %v1760 = vsel %vm1758, %v1631, %v1743
        %v1761 = vsel %vm1758, %v1632, %v1744
        %v1762 = vsel %vm1758, %v1633, %v1745
        %v1763 = vsel %vm1758, %v1634, %v1746
        %v1764 = vsel %vm1758, %v1635, %v1747
        %v1765 = vsel %vm1758, %v1636, %v1748
        %v1766 = vsel %vm1758, %v1637, %v1749
        %v1767 = vsel %vm1758, %v1638, %v1750
        %v1768 = vsel %vm1758, %v1639, %v1751
        %v1769 = vsel %vm1758, %v1640, %v1752
        %v1770 = vsel %vm1758, %v1641, %v1753
        %v1771 = vsel %vm1758, %v1642, %v1754
        %v1772 = vsel %vm1758, %v1643, %v1755
        %v1773 = vsel %vm1758, %v1644, %v1756
        %v1774 = vsel %vm1758, %v1645, %v1757
        %v1775 = vlaneseq
        %v1776 = vshrl.u32 %v1775, 7
        %v1777 = vadd.s32 %v1776, 32
        %1778 = vset.pattern.permute.xlu0 %v1777
        %1779 = vperm.xlu0 %1778, %v1502
        %v1780 = vpop.permute.xlu0 %1779
        %v1781 = vlaneseq
        %v1782 = vshrl.u32 %v1781, 7
        %v1783 = vadd.s32 %v1782, 40
        %1784 = vset.pattern.permute.xlu0 %v1783
        %1785 = vperm.xlu0 %1784, %v1502
        %v1786 = vpop.permute.xlu0 %1785
        %v1787 = vlaneseq
        %v1788 = vshrl.u32 %v1787, 7
        %v1789 = vadd.s32 %v1788, 32
        %1790 = vset.pattern.permute.xlu0 %v1789
        %1791 = vperm.xlu0 %1790, %v1515
        %v1792 = vpop.permute.xlu0 %1791
        %v1793 = vlaneseq
        %v1794 = vshrl.u32 %v1793, 7
        %v1795 = vadd.s32 %v1794, 40
        %1796 = vset.pattern.permute.xlu0 %v1795
        %1797 = vperm.xlu0 %1796, %v1515
        %v1798 = vpop.permute.xlu0 %1797
        %v1799 = vlaneseq
        %v1800 = vshrl.u32 %v1799, 7
        %v1801 = vadd.s32 %v1800, 32
        %1802 = vset.pattern.permute.xlu0 %v1801
        %1803 = vperm.xlu0 %1802, %v1528
        %v1804 = vpop.permute.xlu0 %1803
        %v1805 = vlaneseq
        %v1806 = vshrl.u32 %v1805, 7
        %v1807 = vadd.s32 %v1806, 40
        %1808 = vset.pattern.permute.xlu0 %v1807
        %1809 = vperm.xlu0 %1808, %v1528
        %v1810 = vpop.permute.xlu0 %1809
        %v1811 = vlaneseq
        %v1812 = vshrl.u32 %v1811, 7
        %v1813 = vadd.s32 %v1812, 32
        %1814 = vset.pattern.permute.xlu0 %v1813
        %1815 = vperm.xlu0 %1814, %v1541
        %v1816 = vpop.permute.xlu0 %1815
        %v1817 = vlaneseq
        %v1818 = vshrl.u32 %v1817, 7
        %v1819 = vadd.s32 %v1818, 40
        %1820 = vset.pattern.permute.xlu0 %v1819
        %1821 = vperm.xlu0 %1820, %v1541
        %v1822 = vpop.permute.xlu0 %1821
        %v1823 = vlaneseq
        %v1824 = vshrl.u32 %v1823, 7
        %v1825 = vadd.s32 %v1824, 32
        %1826 = vset.pattern.permute.xlu0 %v1825
        %1827 = vperm.xlu0 %1826, %v1554
        %v1828 = vpop.permute.xlu0 %1827
        %v1829 = vlaneseq
        %v1830 = vshrl.u32 %v1829, 7
        %v1831 = vadd.s32 %v1830, 40
        %1832 = vset.pattern.permute.xlu0 %v1831
        %1833 = vperm.xlu0 %1832, %v1554
        %v1834 = vpop.permute.xlu0 %1833
        %v1835 = vlaneseq
        %v1836 = vshrl.u32 %v1835, 7
        %v1837 = vadd.s32 %v1836, 32
        %1838 = vset.pattern.permute.xlu0 %v1837
        %1839 = vperm.xlu0 %1838, %v1567
        %v1840 = vpop.permute.xlu0 %1839
        %v1841 = vlaneseq
        %v1842 = vshrl.u32 %v1841, 7
        %v1843 = vadd.s32 %v1842, 40
        %1844 = vset.pattern.permute.xlu0 %v1843
        %1845 = vperm.xlu0 %1844, %v1567
        %v1846 = vpop.permute.xlu0 %1845
        %v1847 = vlaneseq
        %v1848 = vshrl.u32 %v1847, 7
        %v1849 = vadd.s32 %v1848, 32
        %1850 = vset.pattern.permute.xlu0 %v1849
        %1851 = vperm.xlu0 %1850, %v1580
        %v1852 = vpop.permute.xlu0 %1851
        %v1853 = vlaneseq
        %v1854 = vshrl.u32 %v1853, 7
        %v1855 = vadd.s32 %v1854, 40
        %1856 = vset.pattern.permute.xlu0 %v1855
        %1857 = vperm.xlu0 %1856, %v1580
        %v1858 = vpop.permute.xlu0 %1857
        %v1859 = vlaneseq
        %v1860 = vshrl.u32 %v1859, 7
        %v1861 = vadd.s32 %v1860, 32
        %1862 = vset.pattern.permute.xlu0 %v1861
        %1863 = vperm.xlu0 %1862, %v1593
        %v1864 = vpop.permute.xlu0 %1863
        %v1865 = vlaneseq
        %v1866 = vshrl.u32 %v1865, 7
        %v1867 = vadd.s32 %v1866, 40
        %1868 = vset.pattern.permute.xlu0 %v1867
        %1869 = vperm.xlu0 %1868, %v1593
        %v1870 = vpop.permute.xlu0 %1869
        %v1871 = vlaneseq
        %v1872 = vshrl.u32 %v1871, 7
        %v1873 = vadd.s32 %v1872, 48
        %1874 = vset.pattern.permute.xlu0 %v1873
        %1875 = vperm.xlu0 %1874, %v1502
        %v1876 = vpop.permute.xlu0 %1875
        %v1877 = vlaneseq
        %v1878 = vshrl.u32 %v1877, 7
        %v1879 = vadd.s32 %v1878, 56
        %1880 = vset.pattern.permute.xlu0 %v1879
        %1881 = vperm.xlu0 %1880, %v1502
        %v1882 = vpop.permute.xlu0 %1881
        %v1883 = vlaneseq
        %v1884 = vshrl.u32 %v1883, 7
        %v1885 = vadd.s32 %v1884, 48
        %1886 = vset.pattern.permute.xlu0 %v1885
        %1887 = vperm.xlu0 %1886, %v1515
        %v1888 = vpop.permute.xlu0 %1887
        %v1889 = vlaneseq
        %v1890 = vshrl.u32 %v1889, 7
        %v1891 = vadd.s32 %v1890, 56
        %1892 = vset.pattern.permute.xlu0 %v1891
        %1893 = vperm.xlu0 %1892, %v1515
        %v1894 = vpop.permute.xlu0 %1893
        %v1895 = vlaneseq
        %v1896 = vshrl.u32 %v1895, 7
        %v1897 = vadd.s32 %v1896, 48
        %1898 = vset.pattern.permute.xlu0 %v1897
        %1899 = vperm.xlu0 %1898, %v1528
        %v1900 = vpop.permute.xlu0 %1899
        %v1901 = vlaneseq
        %v1902 = vshrl.u32 %v1901, 7
        %v1903 = vadd.s32 %v1902, 56
        %1904 = vset.pattern.permute.xlu0 %v1903
        %1905 = vperm.xlu0 %1904, %v1528
        %v1906 = vpop.permute.xlu0 %1905
        %v1907 = vlaneseq
        %v1908 = vshrl.u32 %v1907, 7
        %v1909 = vadd.s32 %v1908, 48
        %1910 = vset.pattern.permute.xlu0 %v1909
        %1911 = vperm.xlu0 %1910, %v1541
        %v1912 = vpop.permute.xlu0 %1911
        %v1913 = vlaneseq
        %v1914 = vshrl.u32 %v1913, 7
        %v1915 = vadd.s32 %v1914, 56
        %1916 = vset.pattern.permute.xlu0 %v1915
        %1917 = vperm.xlu0 %1916, %v1541
        %v1918 = vpop.permute.xlu0 %1917
        %v1919 = vlaneseq
        %v1920 = vshrl.u32 %v1919, 7
        %v1921 = vadd.s32 %v1920, 48
        %1922 = vset.pattern.permute.xlu0 %v1921
        %1923 = vperm.xlu0 %1922, %v1554
        %v1924 = vpop.permute.xlu0 %1923
        %v1925 = vlaneseq
        %v1926 = vshrl.u32 %v1925, 7
        %v1927 = vadd.s32 %v1926, 56
        %1928 = vset.pattern.permute.xlu0 %v1927
        %1929 = vperm.xlu0 %1928, %v1554
        %v1930 = vpop.permute.xlu0 %1929
        %v1931 = vlaneseq
        %v1932 = vshrl.u32 %v1931, 7
        %v1933 = vadd.s32 %v1932, 48
        %1934 = vset.pattern.permute.xlu0 %v1933
        %1935 = vperm.xlu0 %1934, %v1567
        %v1936 = vpop.permute.xlu0 %1935
        %v1937 = vlaneseq
        %v1938 = vshrl.u32 %v1937, 7
        %v1939 = vadd.s32 %v1938, 56
        %1940 = vset.pattern.permute.xlu0 %v1939
        %1941 = vperm.xlu0 %1940, %v1567
        %v1942 = vpop.permute.xlu0 %1941
        %v1943 = vlaneseq
        %v1944 = vshrl.u32 %v1943, 7
        %v1945 = vadd.s32 %v1944, 48
        %1946 = vset.pattern.permute.xlu0 %v1945
        %1947 = vperm.xlu0 %1946, %v1580
        %v1948 = vpop.permute.xlu0 %1947
        %v1949 = vlaneseq
        %v1950 = vshrl.u32 %v1949, 7
        %v1951 = vadd.s32 %v1950, 56
        %1952 = vset.pattern.permute.xlu0 %v1951
        %1953 = vperm.xlu0 %1952, %v1580
        %v1954 = vpop.permute.xlu0 %1953
        %v1955 = vlaneseq
        %v1956 = vshrl.u32 %v1955, 7
        %v1957 = vadd.s32 %v1956, 48
        %1958 = vset.pattern.permute.xlu0 %v1957
        %1959 = vperm.xlu0 %1958, %v1593
        %v1960 = vpop.permute.xlu0 %1959
        %v1961 = vlaneseq
        %v1962 = vshrl.u32 %v1961, 7
        %v1963 = vadd.s32 %v1962, 56
        %1964 = vset.pattern.permute.xlu0 %v1963
        %1965 = vperm.xlu0 %1964, %v1593
        %v1966 = vpop.permute.xlu0 %1965
        %v1967 = vsel %vm1758, %v1780, %v1876
        %v1968 = vsel %vm1758, %v1786, %v1882
        %v1969 = vsel %vm1758, %v1792, %v1888
        %v1970 = vsel %vm1758, %v1798, %v1894
        %v1971 = vsel %vm1758, %v1804, %v1900
        %v1972 = vsel %vm1758, %v1810, %v1906
        %v1973 = vsel %vm1758, %v1816, %v1912
        %v1974 = vsel %vm1758, %v1822, %v1918
        %v1975 = vsel %vm1758, %v1828, %v1924
        %v1976 = vsel %vm1758, %v1834, %v1930
        %v1977 = vsel %vm1758, %v1840, %v1936
        %v1978 = vsel %vm1758, %v1846, %v1942
        %v1979 = vsel %vm1758, %v1852, %v1948
        %v1980 = vsel %vm1758, %v1858, %v1954
        %v1981 = vsel %vm1758, %v1864, %v1960
        %v1982 = vsel %vm1758, %v1870, %v1966
        %v1983 = vmul.f32 %v1475, %v1759
        %v1984 = vmul.f32 %v1477, %v1760
        %v1985 = vadd.f32 %v1983, %v1761
        %v1986 = vadd.f32 %v1984, %v1762
        %v1987 = vmul.f32 %v1475, %v1471
        %v1988 = vmul.f32 %v1477, %v1473
        %v1989 = vmul.f32 %v1479, %v1761
        %v1990 = vmul.f32 %v1481, %v1762
        %v1991 = vadd.f32 %v1989, %v1763
        %v1992 = vadd.f32 %v1990, %v1764
        %v1993 = vmul.f32 %v1479, %v1475
        %v1994 = vmul.f32 %v1481, %v1477
        %v1995 = vmul.f32 %v1483, %v1763
        %v1996 = vmul.f32 %v1485, %v1764
        %v1997 = vadd.f32 %v1995, %v1765
        %v1998 = vadd.f32 %v1996, %v1766
        %v1999 = vmul.f32 %v1483, %v1479
        %v2000 = vmul.f32 %v1485, %v1481
        %v2001 = vmul.f32 %v1487, %v1765
        %v2002 = vmul.f32 %v1489, %v1766
        %v2003 = vadd.f32 %v2001, %v1767
        %v2004 = vadd.f32 %v2002, %v1768
        %v2005 = vmul.f32 %v1487, %v1483
        %v2006 = vmul.f32 %v1489, %v1485
        %v2007 = vmul.f32 %v1491, %v1767
        %v2008 = vmul.f32 %v1493, %v1768
        %v2009 = vadd.f32 %v2007, %v1769
        %v2010 = vadd.f32 %v2008, %v1770
        %v2011 = vmul.f32 %v1491, %v1487
        %v2012 = vmul.f32 %v1493, %v1489
        %v2013 = vmul.f32 %v1495, %v1769
        %v2014 = vmul.f32 %v1497, %v1770
        %v2015 = vadd.f32 %v2013, %v1771
        %v2016 = vadd.f32 %v2014, %v1772
        %v2017 = vmul.f32 %v1495, %v1491
        %v2018 = vmul.f32 %v1497, %v1493
        %v2019 = vmul.f32 %v1499, %v1771
        %v2020 = vmul.f32 %v1501, %v1772
        %v2021 = vadd.f32 %v2019, %v1773
        %v2022 = vadd.f32 %v2020, %v1774
        %v2023 = vmul.f32 %v1499, %v1495
        %v2024 = vmul.f32 %v1501, %v1497
        %v2025 = vmul.f32 %v1993, %v1759
        %v2026 = vmul.f32 %v1994, %v1760
        %v2027 = vadd.f32 %v2025, %v1991
        %v2028 = vadd.f32 %v2026, %v1992
        %v2029 = vmul.f32 %v1993, %v1471
        %v2030 = vmul.f32 %v1994, %v1473
        %v2031 = vmul.f32 %v1999, %v1985
        %v2032 = vmul.f32 %v2000, %v1986
        %v2033 = vadd.f32 %v2031, %v1997
        %v2034 = vadd.f32 %v2032, %v1998
        %v2035 = vmul.f32 %v1999, %v1987
        %v2036 = vmul.f32 %v2000, %v1988
        %v2037 = vmul.f32 %v2005, %v1991
        %v2038 = vmul.f32 %v2006, %v1992
        %v2039 = vadd.f32 %v2037, %v2003
        %v2040 = vadd.f32 %v2038, %v2004
        %v2041 = vmul.f32 %v2005, %v1993
        %v2042 = vmul.f32 %v2006, %v1994
        %v2043 = vmul.f32 %v2011, %v1997
        %v2044 = vmul.f32 %v2012, %v1998
        %v2045 = vadd.f32 %v2043, %v2009
        %v2046 = vadd.f32 %v2044, %v2010
        %v2047 = vmul.f32 %v2011, %v1999
        %v2048 = vmul.f32 %v2012, %v2000
        %v2049 = vmul.f32 %v2017, %v2003
        %v2050 = vmul.f32 %v2018, %v2004
        %v2051 = vadd.f32 %v2049, %v2015
        %v2052 = vadd.f32 %v2050, %v2016
        %v2053 = vmul.f32 %v2017, %v2005
        %v2054 = vmul.f32 %v2018, %v2006
        %v2055 = vmul.f32 %v2023, %v2009
        %v2056 = vmul.f32 %v2024, %v2010
        %v2057 = vadd.f32 %v2055, %v2021
        %v2058 = vadd.f32 %v2056, %v2022
        %v2059 = vmul.f32 %v2023, %v2011
        %v2060 = vmul.f32 %v2024, %v2012
        %v2061 = vmul.f32 %v2041, %v1759
        %v2062 = vmul.f32 %v2042, %v1760
        %v2063 = vadd.f32 %v2061, %v2039
        %v2064 = vadd.f32 %v2062, %v2040
        %v2065 = vmul.f32 %v2041, %v1471
        %v2066 = vmul.f32 %v2042, %v1473
        %v2067 = vmul.f32 %v2047, %v1985
        %v2068 = vmul.f32 %v2048, %v1986
        %v2069 = vadd.f32 %v2067, %v2045
        %v2070 = vadd.f32 %v2068, %v2046
        %v2071 = vmul.f32 %v2047, %v1987
        %v2072 = vmul.f32 %v2048, %v1988
        %v2073 = vmul.f32 %v2053, %v2027
        %v2074 = vmul.f32 %v2054, %v2028
        %v2075 = vadd.f32 %v2073, %v2051
        %v2076 = vadd.f32 %v2074, %v2052
        %v2077 = vmul.f32 %v2053, %v2029
        %v2078 = vmul.f32 %v2054, %v2030
        %v2079 = vmul.f32 %v2059, %v2033
        %v2080 = vmul.f32 %v2060, %v2034
        %v2081 = vadd.f32 %v2079, %v2057
        %v2082 = vadd.f32 %v2080, %v2058
        %v2083 = vmul.f32 %v2059, %v2035
        %v2084 = vmul.f32 %v2060, %v2036
        %v2085 = vmul.f32 %v1471, %v1418
        %v2086 = vmul.f32 %v1473, %v1419
        %v2087 = vadd.f32 %v2085, %v1759
        %v2088 = vadd.f32 %v2086, %v1760
        %v2089 = vmul.f32 %v1987, %v1418
        %v2090 = vmul.f32 %v1988, %v1419
        %v2091 = vadd.f32 %v2089, %v1985
        %v2092 = vadd.f32 %v2090, %v1986
        %v2093 = vmul.f32 %v2029, %v1418
        %v2094 = vmul.f32 %v2030, %v1419
        %v2095 = vadd.f32 %v2093, %v2027
        %v2096 = vadd.f32 %v2094, %v2028
        %v2097 = vmul.f32 %v2035, %v1418
        %v2098 = vmul.f32 %v2036, %v1419
        %v2099 = vadd.f32 %v2097, %v2033
        %v2100 = vadd.f32 %v2098, %v2034
        %v2101 = vmul.f32 %v2065, %v1418
        %v2102 = vmul.f32 %v2066, %v1419
        %v2103 = vadd.f32 %v2101, %v2063
        %v2104 = vadd.f32 %v2102, %v2064
        %v2105 = vmul.f32 %v2071, %v1418
        %v2106 = vmul.f32 %v2072, %v1419
        %v2107 = vadd.f32 %v2105, %v2069
        %v2108 = vadd.f32 %v2106, %v2070
        %v2109 = vmul.f32 %v2077, %v1418
        %v2110 = vmul.f32 %v2078, %v1419
        %v2111 = vadd.f32 %v2109, %v2075
        %v2112 = vadd.f32 %v2110, %v2076
        %v2113 = vmul.f32 %v2083, %v1418
        %v2114 = vmul.f32 %v2084, %v1419
        %v2115 = vadd.f32 %v2113, %v2081
        %v2116 = vadd.f32 %v2114, %v2082
        %v2117 = vmul.f32 %v1967, %v2087
        %v2118 = vmul.f32 %v1968, %v2088
        %v2119 = vadd.f32 %v2117, %v2118
        %v2120 = vrot.slane %v2119, 4
        %v2121 = vadd.f32 %v2119, %v2120
        %v2122 = vrot.slane %v2121, 2
        %v2123 = vadd.f32 %v2121, %v2122
        %v2124 = vrot.slane %v2123, 1
        %v2125 = vadd.f32 %v2123, %v2124
        %v2126 = vmul.f32 %v1969, %v2091
        %v2127 = vmul.f32 %v1970, %v2092
        %v2128 = vadd.f32 %v2126, %v2127
        %v2129 = vrot.slane %v2128, 4
        %v2130 = vadd.f32 %v2128, %v2129
        %v2131 = vrot.slane %v2130, 2
        %v2132 = vadd.f32 %v2130, %v2131
        %v2133 = vrot.slane %v2132, 1
        %v2134 = vadd.f32 %v2132, %v2133
        %v2135 = vmul.f32 %v1971, %v2095
        %v2136 = vmul.f32 %v1972, %v2096
        %v2137 = vadd.f32 %v2135, %v2136
        %v2138 = vrot.slane %v2137, 4
        %v2139 = vadd.f32 %v2137, %v2138
        %v2140 = vrot.slane %v2139, 2
        %v2141 = vadd.f32 %v2139, %v2140
        %v2142 = vrot.slane %v2141, 1
        %v2143 = vadd.f32 %v2141, %v2142
        %v2144 = vmul.f32 %v1973, %v2099
        %v2145 = vmul.f32 %v1974, %v2100
        %v2146 = vadd.f32 %v2144, %v2145
        %v2147 = vrot.slane %v2146, 4
        %v2148 = vadd.f32 %v2146, %v2147
        %v2149 = vrot.slane %v2148, 2
        %v2150 = vadd.f32 %v2148, %v2149
        %v2151 = vrot.slane %v2150, 1
        %v2152 = vadd.f32 %v2150, %v2151
        %v2153 = vmul.f32 %v1975, %v2103
        %v2154 = vmul.f32 %v1976, %v2104
        %v2155 = vadd.f32 %v2153, %v2154
        %v2156 = vrot.slane %v2155, 4
        %v2157 = vadd.f32 %v2155, %v2156
        %v2158 = vrot.slane %v2157, 2
        %v2159 = vadd.f32 %v2157, %v2158
        %v2160 = vrot.slane %v2159, 1
        %v2161 = vadd.f32 %v2159, %v2160
        %v2162 = vmul.f32 %v1977, %v2107
        %v2163 = vmul.f32 %v1978, %v2108
        %v2164 = vadd.f32 %v2162, %v2163
        %v2165 = vrot.slane %v2164, 4
        %v2166 = vadd.f32 %v2164, %v2165
        %v2167 = vrot.slane %v2166, 2
        %v2168 = vadd.f32 %v2166, %v2167
        %v2169 = vrot.slane %v2168, 1
        %v2170 = vadd.f32 %v2168, %v2169
        %v2171 = vmul.f32 %v1979, %v2111
        %v2172 = vmul.f32 %v1980, %v2112
        %v2173 = vadd.f32 %v2171, %v2172
        %v2174 = vrot.slane %v2173, 4
        %v2175 = vadd.f32 %v2173, %v2174
        %v2176 = vrot.slane %v2175, 2
        %v2177 = vadd.f32 %v2175, %v2176
        %v2178 = vrot.slane %v2177, 1
        %v2179 = vadd.f32 %v2177, %v2178
        %v2180 = vmul.f32 %v1981, %v2115
        %v2181 = vmul.f32 %v1982, %v2116
        %v2182 = vadd.f32 %v2180, %v2181
        %v2183 = vrot.slane %v2182, 4
        %v2184 = vadd.f32 %v2182, %v2183
        %v2185 = vrot.slane %v2184, 2
        %v2186 = vadd.f32 %v2184, %v2185
        %v2187 = vrot.slane %v2186, 1
        %v2188 = vadd.f32 %v2186, %v2187
        %vm2189 = vcmask 1040384
        %v2190 = vsel %vm2189, %v2125, %v2134
        %vm2191 = vcmask 1041408
        %v2192 = vsel %vm2191, %v2190, %v2143
        %vm2193 = vcmask 1042432
        %v2194 = vsel %vm2193, %v2192, %v2152
        %vm2195 = vcmask 1043456
        %v2196 = vsel %vm2195, %v2194, %v2161
        %vm2197 = vcmask 1044480
        %v2198 = vsel %vm2197, %v2196, %v2170
        %vm2199 = vcmask 1045504
        %v2200 = vsel %vm2199, %v2198, %v2179
        %vm2201 = vcmask 1046528
        %v2202 = vsel %vm2201, %v2200, %v2188
        %v2204 = vperm.slane %v332, 0
        %v2206 = vmul.f32 %v2204, %v1424
        %v2207 = vadd.f32 %v2202, %v2206
        %v2208 = vmul.f32 %v2207, %v1426
        %s2209 = scalar_lea.vmem [#allocation6], %s1420
        %2210 = vst [vmem:[%s2209] sm:$0xff] %v2208
      $region64: #{_lambda_.4} parent=47 // loop_footer
        %s1417 = sadd.s32 1, %s1413
      $region65: #{_lambda_.4} parent=47 // loop_footer_branch
        %1412 = sbr.rel target = $region61
      $region66: #{_lambda_.4} parent=47 // loop_exit
        _
      %2211 = vst [vmem:[#allocation8] sm:$0xff] %v1418
      %2212 = vst [vmem:[#allocation8 + $0x8] sm:$0xff] %v1419
      %v2213 = vld [vmem:[#allocation6] sm:$0xff]
      %v2214 = vld [vmem:[#allocation6 + $0x8] sm:$0xff]
      %v2215 = vld [vmem:[#allocation6 + $0x10] sm:$0xff]
      %v2216 = vld [vmem:[#allocation6 + $0x18] sm:$0xff]
      %v2217 = vld [vmem:[#allocation6 + $0x20] sm:$0xff]
      %v2218 = vld [vmem:[#allocation6 + $0x28] sm:$0xff]
      %v2219 = vld [vmem:[#allocation6 + $0x30] sm:$0xff]
      %v2220 = vld [vmem:[#allocation6 + $0x38] sm:$0xff]
      %v2221 = vld [vmem:[#allocation6 + $0x40] sm:$0xff]
      %v2222 = vld [vmem:[#allocation6 + $0x48] sm:$0xff]
      %v2223 = vld [vmem:[#allocation6 + $0x50] sm:$0xff]
      %v2224 = vld [vmem:[#allocation6 + $0x58] sm:$0xff]
      %v2225 = vld [vmem:[#allocation6 + $0x60] sm:$0xff]
      %v2226 = vld [vmem:[#allocation6 + $0x68] sm:$0xff]
      %v2227 = vld [vmem:[#allocation6 + $0x70] sm:$0xff]
      %v2228 = vld [vmem:[#allocation6 + $0x78] sm:$0xff]
      %v2229 = vld [vmem:[#allocation6 + $0x80] sm:$0xff]
      %v2230 = vld [vmem:[#allocation6 + $0x88] sm:$0xff]
      %v2231 = vld [vmem:[#allocation6 + $0x90] sm:$0xff]
      %v2232 = vld [vmem:[#allocation6 + $0x98] sm:$0xff]
      %v2233 = vld [vmem:[#allocation6 + $0xa0] sm:$0xff]
      %v2234 = vld [vmem:[#allocation6 + $0xa8] sm:$0xff]
      %v2235 = vld [vmem:[#allocation6 + $0xb0] sm:$0xff]
      %v2236 = vld [vmem:[#allocation6 + $0xb8] sm:$0xff]
      %v2237 = vld [vmem:[#allocation6 + $0xc0] sm:$0xff]
      %v2238 = vld [vmem:[#allocation6 + $0xc8] sm:$0xff]
      %v2239 = vld [vmem:[#allocation6 + $0xd0] sm:$0xff]
      %v2240 = vld [vmem:[#allocation6 + $0xd8] sm:$0xff]
      %v2241 = vld [vmem:[#allocation6 + $0xe0] sm:$0xff]
      %v2242 = vld [vmem:[#allocation6 + $0xe8] sm:$0xff]
      %v2243 = vld [vmem:[#allocation6 + $0xf0] sm:$0xff]
      %v2244 = vld [vmem:[#allocation6 + $0xf8] sm:$0xff]
      %v2245 = vld [vmem:[#allocation6 + $0x100] sm:$0xff]
      %v2246 = vld [vmem:[#allocation6 + $0x108] sm:$0xff]
      %v2247 = vld [vmem:[#allocation6 + $0x110] sm:$0xff]
      %v2248 = vld [vmem:[#allocation6 + $0x118] sm:$0xff]
      %v2249 = vld [vmem:[#allocation6 + $0x120] sm:$0xff]
      %v2250 = vld [vmem:[#allocation6 + $0x128] sm:$0xff]
      %v2251 = vld [vmem:[#allocation6 + $0x130] sm:$0xff]
      %v2252 = vld [vmem:[#allocation6 + $0x138] sm:$0xff]
      %v2253 = vld [vmem:[#allocation6 + $0x140] sm:$0xff]
      %v2254 = vld [vmem:[#allocation6 + $0x148] sm:$0xff]
      %v2255 = vld [vmem:[#allocation6 + $0x150] sm:$0xff]
      %v2256 = vld [vmem:[#allocation6 + $0x158] sm:$0xff]
      %v2257 = vld [vmem:[#allocation6 + $0x160] sm:$0xff]
      %v2258 = vld [vmem:[#allocation6 + $0x168] sm:$0xff]
      %v2259 = vld [vmem:[#allocation6 + $0x170] sm:$0xff]
      %v2260 = vld [vmem:[#allocation6 + $0x178] sm:$0xff]
      %v2261 = vld [vmem:[#allocation6 + $0x180] sm:$0xff]
      %v2262 = vld [vmem:[#allocation6 + $0x188] sm:$0xff]
      %v2263 = vld [vmem:[#allocation6 + $0x190] sm:$0xff]
      %v2264 = vld [vmem:[#allocation6 + $0x198] sm:$0xff]
      %v2265 = vld [vmem:[#allocation6 + $0x1a0] sm:$0xff]
      %v2266 = vld [vmem:[#allocation6 + $0x1a8] sm:$0xff]
      %v2267 = vld [vmem:[#allocation6 + $0x1b0] sm:$0xff]
      %v2268 = vld [vmem:[#allocation6 + $0x1b8] sm:$0xff]
      %v2269 = vld [vmem:[#allocation6 + $0x1c0] sm:$0xff]
      %v2270 = vld [vmem:[#allocation6 + $0x1c8] sm:$0xff]
      %v2271 = vld [vmem:[#allocation6 + $0x1d0] sm:$0xff]
      %v2272 = vld [vmem:[#allocation6 + $0x1d8] sm:$0xff]
      %v2273 = vld [vmem:[#allocation6 + $0x1e0] sm:$0xff]
      %v2274 = vld [vmem:[#allocation6 + $0x1e8] sm:$0xff]
      %v2275 = vld [vmem:[#allocation6 + $0x1f0] sm:$0xff]
      %v2276 = vld [vmem:[#allocation6 + $0x1f8] sm:$0xff]
      %v2277 = vpack.c.bf16 %v2213, %v2213
      %v2278 = vpack.c.bf16 %v2214, %v2214
      %v2279 = vpack.c.bf16 %v2215, %v2215
      %v2280 = vpack.c.bf16 %v2216, %v2216
      %v2281 = vpack.c.bf16 %v2217, %v2217
      %v2282 = vpack.c.bf16 %v2218, %v2218
      %v2283 = vpack.c.bf16 %v2219, %v2219
      %v2284 = vpack.c.bf16 %v2220, %v2220
      %v2285 = vpack.c.bf16 %v2221, %v2221
      %v2286 = vpack.c.bf16 %v2222, %v2222
      %v2287 = vpack.c.bf16 %v2223, %v2223
      %v2288 = vpack.c.bf16 %v2224, %v2224
      %v2289 = vpack.c.bf16 %v2225, %v2225
      %v2290 = vpack.c.bf16 %v2226, %v2226
      %v2291 = vpack.c.bf16 %v2227, %v2227
      %v2292 = vpack.c.bf16 %v2228, %v2228
      %v2293 = vpack.c.bf16 %v2229, %v2229
      %v2294 = vpack.c.bf16 %v2230, %v2230
      %v2295 = vpack.c.bf16 %v2231, %v2231
      %v2296 = vpack.c.bf16 %v2232, %v2232
      %v2297 = vpack.c.bf16 %v2233, %v2233
      %v2298 = vpack.c.bf16 %v2234, %v2234
      %v2299 = vpack.c.bf16 %v2235, %v2235
      %v2300 = vpack.c.bf16 %v2236, %v2236
      %v2301 = vpack.c.bf16 %v2237, %v2237
      %v2302 = vpack.c.bf16 %v2238, %v2238
      %v2303 = vpack.c.bf16 %v2239, %v2239
      %v2304 = vpack.c.bf16 %v2240, %v2240
      %v2305 = vpack.c.bf16 %v2241, %v2241
      %v2306 = vpack.c.bf16 %v2242, %v2242
      %v2307 = vpack.c.bf16 %v2243, %v2243
      %v2308 = vpack.c.bf16 %v2244, %v2244
      %v2309 = vpack.c.bf16 %v2245, %v2245
      %v2310 = vpack.c.bf16 %v2246, %v2246
      %v2311 = vpack.c.bf16 %v2247, %v2247
      %v2312 = vpack.c.bf16 %v2248, %v2248
      %v2313 = vpack.c.bf16 %v2249, %v2249
      %v2314 = vpack.c.bf16 %v2250, %v2250
      %v2315 = vpack.c.bf16 %v2251, %v2251
      %v2316 = vpack.c.bf16 %v2252, %v2252
      %v2317 = vpack.c.bf16 %v2253, %v2253
      %v2318 = vpack.c.bf16 %v2254, %v2254
      %v2319 = vpack.c.bf16 %v2255, %v2255
      %v2320 = vpack.c.bf16 %v2256, %v2256
      %v2321 = vpack.c.bf16 %v2257, %v2257
      %v2322 = vpack.c.bf16 %v2258, %v2258
      %v2323 = vpack.c.bf16 %v2259, %v2259
      %v2324 = vpack.c.bf16 %v2260, %v2260
      %v2325 = vpack.c.bf16 %v2261, %v2261
      %v2326 = vpack.c.bf16 %v2262, %v2262
      %v2327 = vpack.c.bf16 %v2263, %v2263
      %v2328 = vpack.c.bf16 %v2264, %v2264
      %v2329 = vpack.c.bf16 %v2265, %v2265
      %v2330 = vpack.c.bf16 %v2266, %v2266
      %v2331 = vpack.c.bf16 %v2267, %v2267
      %v2332 = vpack.c.bf16 %v2268, %v2268
      %v2333 = vpack.c.bf16 %v2269, %v2269
      %v2334 = vpack.c.bf16 %v2270, %v2270
      %v2335 = vpack.c.bf16 %v2271, %v2271
      %v2336 = vpack.c.bf16 %v2272, %v2272
      %v2337 = vpack.c.bf16 %v2273, %v2273
      %v2338 = vpack.c.bf16 %v2274, %v2274
      %v2339 = vpack.c.bf16 %v2275, %v2275
      %v2340 = vpack.c.bf16 %v2276, %v2276
      %2341 = vst [vmem:[%s319] sm:$0xf] %v2277
      %2342 = vst [vmem:[%s319 + $0x4] sm:$0xf] %v2278
      %2343 = vst [vmem:[%s319 + $0x8] sm:$0xf] %v2279
      %2344 = vst [vmem:[%s319 + $0xc] sm:$0xf] %v2280
      %2345 = vst [vmem:[%s319 + $0x10] sm:$0xf] %v2281
      %2346 = vst [vmem:[%s319 + $0x14] sm:$0xf] %v2282
      %2347 = vst [vmem:[%s319 + $0x18] sm:$0xf] %v2283
      %2348 = vst [vmem:[%s319 + $0x1c] sm:$0xf] %v2284
      %2349 = vst [vmem:[%s319 + $0x20] sm:$0xf] %v2285
      %2350 = vst [vmem:[%s319 + $0x24] sm:$0xf] %v2286
      %2351 = vst [vmem:[%s319 + $0x28] sm:$0xf] %v2287
      %2352 = vst [vmem:[%s319 + $0x2c] sm:$0xf] %v2288
      %2353 = vst [vmem:[%s319 + $0x30] sm:$0xf] %v2289
      %2354 = vst [vmem:[%s319 + $0x34] sm:$0xf] %v2290
      %2355 = vst [vmem:[%s319 + $0x38] sm:$0xf] %v2291
      %2356 = vst [vmem:[%s319 + $0x3c] sm:$0xf] %v2292
      %2357 = vst [vmem:[%s319 + $0x40] sm:$0xf] %v2293
      %2358 = vst [vmem:[%s319 + $0x44] sm:$0xf] %v2294
      %2359 = vst [vmem:[%s319 + $0x48] sm:$0xf] %v2295
      %2360 = vst [vmem:[%s319 + $0x4c] sm:$0xf] %v2296
      %2361 = vst [vmem:[%s319 + $0x50] sm:$0xf] %v2297
      %2362 = vst [vmem:[%s319 + $0x54] sm:$0xf] %v2298
      %2363 = vst [vmem:[%s319 + $0x58] sm:$0xf] %v2299
      %2364 = vst [vmem:[%s319 + $0x5c] sm:$0xf] %v2300
      %2365 = vst [vmem:[%s319 + $0x60] sm:$0xf] %v2301
      %2366 = vst [vmem:[%s319 + $0x64] sm:$0xf] %v2302
      %2367 = vst [vmem:[%s319 + $0x68] sm:$0xf] %v2303
      %2368 = vst [vmem:[%s319 + $0x6c] sm:$0xf] %v2304
      %2369 = vst [vmem:[%s319 + $0x70] sm:$0xf] %v2305
      %2370 = vst [vmem:[%s319 + $0x74] sm:$0xf] %v2306
      %2371 = vst [vmem:[%s319 + $0x78] sm:$0xf] %v2307
      %2372 = vst [vmem:[%s319 + $0x7c] sm:$0xf] %v2308
      %2373 = vst [vmem:[%s319 + $0x80] sm:$0xf] %v2309
      %2374 = vst [vmem:[%s319 + $0x84] sm:$0xf] %v2310
      %2375 = vst [vmem:[%s319 + $0x88] sm:$0xf] %v2311
      %2376 = vst [vmem:[%s319 + $0x8c] sm:$0xf] %v2312
      %2377 = vst [vmem:[%s319 + $0x90] sm:$0xf] %v2313
      %2378 = vst [vmem:[%s319 + $0x94] sm:$0xf] %v2314
      %2379 = vst [vmem:[%s319 + $0x98] sm:$0xf] %v2315
      %2380 = vst [vmem:[%s319 + $0x9c] sm:$0xf] %v2316
      %2381 = vst [vmem:[%s319 + $0xa0] sm:$0xf] %v2317
      %2382 = vst [vmem:[%s319 + $0xa4] sm:$0xf] %v2318
      %2383 = vst [vmem:[%s319 + $0xa8] sm:$0xf] %v2319
      %2384 = vst [vmem:[%s319 + $0xac] sm:$0xf] %v2320
      %2385 = vst [vmem:[%s319 + $0xb0] sm:$0xf] %v2321
      %2386 = vst [vmem:[%s319 + $0xb4] sm:$0xf] %v2322
      %2387 = vst [vmem:[%s319 + $0xb8] sm:$0xf] %v2323
      %2388 = vst [vmem:[%s319 + $0xbc] sm:$0xf] %v2324
      %2389 = vst [vmem:[%s319 + $0xc0] sm:$0xf] %v2325
      %2390 = vst [vmem:[%s319 + $0xc4] sm:$0xf] %v2326
      %2391 = vst [vmem:[%s319 + $0xc8] sm:$0xf] %v2327
      %2392 = vst [vmem:[%s319 + $0xcc] sm:$0xf] %v2328
      %2393 = vst [vmem:[%s319 + $0xd0] sm:$0xf] %v2329
      %2394 = vst [vmem:[%s319 + $0xd4] sm:$0xf] %v2330
      %2395 = vst [vmem:[%s319 + $0xd8] sm:$0xf] %v2331
      %2396 = vst [vmem:[%s319 + $0xdc] sm:$0xf] %v2332
      %2397 = vst [vmem:[%s319 + $0xe0] sm:$0xf] %v2333
      %2398 = vst [vmem:[%s319 + $0xe4] sm:$0xf] %v2334
      %2399 = vst [vmem:[%s319 + $0xe8] sm:$0xf] %v2335
      %2400 = vst [vmem:[%s319 + $0xec] sm:$0xf] %v2336
      %2401 = vst [vmem:[%s319 + $0xf0] sm:$0xf] %v2337
      %2402 = vst [vmem:[%s319 + $0xf4] sm:$0xf] %v2338
      %2403 = vst [vmem:[%s319 + $0xf8] sm:$0xf] %v2339
      %2404 = vst [vmem:[%s319 + $0xfc] sm:$0xf] %v2340
      %s2405 = smul.u32 64, %s23
      %p2406 = scmp.lt.s32.totalorder %s22, 1
      %s2407 = scalar_select %p2406, %s22, 1
      %p2408 = scmp.lt.s32.totalorder %s2405, 63
      %s2409 = scalar_select %p2408, %s2405, 63
      %s2410 = smul.addr %s2407, 64
      %s2411 = sadd.s32 %s2409, %s2410
      %s2412 = smul.addr %s2411, 4
      %s2413 = scalar_lea.vmem %s7, %s2412
      // Predicated region
      $region67: #{_lambda_.4} parent=47 // pred_check
        %p2414 = pneg %p204
      $region68: #{_lambda_.4} parent=47 // pred_check_branch
        %2416 = sbr.rel (%p2414) target = $region70
      $region69: #{_lambda_.4} parent=47 // pred_region
        %s2417 = smul.u32 64, %s23
      $region70: #{_lambda_.4} parent=47 // pred_fallthru
        _
    $region48: #{_lambda_.4} parent=5 // pred_fallthru
      _
    %p2418 = scmp.le.s32.totalorder 2, %s13
    // Predicated region
    $region71: #{_lambda_.4} parent=5 // pred_check
      %p2419 = pneg %p2418
    $region72: #{_lambda_.4} parent=5 // pred_check_branch
      %2421 = sbr.rel (%p2419) target = $region74
    $region73: #{_lambda_.4} parent=5 // pred_region
      %s2422 = ssub.s32 %s13, 2
      // Predicated region
      $region75: #{_lambda_.4} parent=73 // pred_check
        %p2423 = pneg %p210
      $region76: #{_lambda_.4} parent=73 // pred_check_branch
        %2425 = sbr.rel (%p2423) target = $region78
      $region77: #{_lambda_.4} parent=73 // pred_region
        %s2426 = smul.u32 64, %s25
        %p2427 = scmp.lt.s32.totalorder %s24, 1
        %s2428 = scalar_select %p2427, %s24, 1
        %p2429 = scmp.lt.s32.totalorder %s2426, 63
        %s2430 = scalar_select %p2429, %s2426, 63
        %s2431 = smul.addr %s2428, 64
        %s2432 = sadd.s32 %s2430, %s2431
        %s2433 = smul.addr %s2432, 4
        %s2434 = scalar_lea.vmem %s7, %s2433
      $region78: #{_lambda_.4} parent=73 // pred_fallthru
        _
    $region74: #{_lambda_.4} parent=5 // pred_fallthru
      _
  $region6: #{_lambda_.4} parent=0 // loop_footer
    %s17 = sadd.s32 1, %s13
  $region7: #{_lambda_.4} parent=0 // loop_footer_branch
    %12 = sbr.rel target = $region3
  $region8: #{_lambda_.4} parent=0 // loop_exit
    _

// kernel: _lambda_.5
$region0: #{_lambda_.5}
  #allocation0 [shape = 'u32[]', space=smem, size = 0x4, offset = 0x4, fixed_abs, tag = 'smem constant byte address 0x4 - core index']
  #allocation1 [shape = 'u32[72,128]{1,0:T(1,128)}', space=vmem, size = 0x9000, scoped, tag = 'internal scratch']
  %s0 = inlined_call_operand.vmem [shape: bf16[1024,64], index: 0, kind: input, shape index: {}]
  %s1 = inlined_call_operand.vmem [shape: bf16[1024,64], index: 1, kind: input, shape index: {}]
  %s2 = inlined_call_operand.vmem [shape: bf16[64,32], index: 2, kind: input, shape index: {}]
  %s3 = inlined_call_operand.hbm [shape: f32[1024,32], index: 3, kind: output, shape index: {}]
  %s4 = sld [smem:[#allocation0]]
  $region45: #{_lambda_.5} parent=0
    _
  %s6 = ssub.s32 1, %s4
  %s7 = scalar_select 0, %s6, %s4
  $region1: #{_lambda_.5} parent=0
    #allocation2 [shape = 'u8[524288]{0}', space=vmem, size = 0x80000, scoped, tag = 'output window, operand 0']
    #allocation3 [shape = 's32[2]{0}', space=sflag, size = 0x8, scoped, tag = 'scoped memory for _lambda_.5']
    %8 = vsyncpa [#allocation3], 0
    %s9 = scalar_lea.sflag [#allocation3], 1
    %10 = vsyncpa %s9, 0
    loop: start=0, step=1, limit=4
    $region2: #{_lambda_.5} parent=1 // loop_pre_header
      _
    $region3: #{_lambda_.5} parent=1 // loop_header
      %s12 = sphi 0, %s16
      %p13 = scmp.ge.s32.totalorder %s12, 4
      %s22 = sphi 0, %s24
      %s25 = sphi 0, %s22
      %s26 = sphi 0, %s25
      %s42 = sphi 0, %s26
      %s48 = sphi 0, %s50
      %s51 = sphi 0, %s48
      %s52 = sphi 0, %s51
      %s68 = sphi 0, %s52
      %s72 = sphi 0, %s72
      %s74 = sphi 0, %s72
      %s75 = sphi 0, %s74
      %s89 = sphi 0, %s75
      %s95 = sphi 0, %s97
      %s98 = sphi 0, %s95
      %s99 = sphi 0, %s98
      %s115 = sphi 0, %s99
    $region4: #{_lambda_.5} parent=1 // loop_header_branch
      %15 = sbr.rel (%p13) target = $region8
    $region5: #{_lambda_.5} parent=1 // loop_body
      %s17 = ssub.s32 %s12, 1
      %s18 = ssub.s32 %s12, 2
      %s19 = sadd.s32 %s12, 1
      %s20 = ssub.s32 %s12, %s19
      %p21 = scmp.eq.s32.totalorder %s20, 0
      %s23 = sadd.s32 %s22, 1
      %s24 = scalar_select %p21, %s22, %s23
      %p27 = pneg %p21
      %p28 = scmp.eq.s32.totalorder %s12, 1
      %p29 = por %p27, %p28
      %p30 = scmp.ne.s32.totalorder %s22, %s25
      %p31 = scmp.eq.s32.totalorder %s12, 0
      %p32 = por %p30, %p31
      %p33 = scmp.ne.s32.totalorder %s22, %s25
      %p34 = scmp.eq.s32.totalorder %s17, 1
      %p35 = por %p33, %p34
      %p36 = scmp.ne.s32.totalorder %s25, %s26
      %p37 = scmp.eq.s32.totalorder %s17, 0
      %p38 = por %p36, %p37
      %p39 = scmp.ne.s32.totalorder %s25, %s26
      %p40 = scmp.eq.s32.totalorder %s18, 1
      %p41 = por %p39, %p40
      %p43 = scmp.ne.s32.totalorder %s26, %s42
      %p44 = scmp.eq.s32.totalorder %s18, 0
      %p45 = por %p43, %p44
      %s46 = ssub.s32 %s12, %s19
      %p47 = scmp.eq.s32.totalorder %s46, 0
      %s49 = sadd.s32 %s48, 1
      %s50 = scalar_select %p47, %s48, %s49
      %p53 = pneg %p47
      %p54 = scmp.eq.s32.totalorder %s12, 1
      %p55 = por %p53, %p54
      %p56 = scmp.ne.s32.totalorder %s48, %s51
      %p57 = scmp.eq.s32.totalorder %s12, 0
      %p58 = por %p56, %p57
      %p59 = scmp.ne.s32.totalorder %s48, %s51
      %p60 = scmp.eq.s32.totalorder %s17, 1
      %p61 = por %p59, %p60
      %p62 = scmp.ne.s32.totalorder %s51, %s52
      %p63 = scmp.eq.s32.totalorder %s17, 0
      %p64 = por %p62, %p63
      %p65 = scmp.ne.s32.totalorder %s51, %s52
      %p66 = scmp.eq.s32.totalorder %s18, 1
      %p67 = por %p65, %p66
      %p69 = scmp.ne.s32.totalorder %s52, %s68
      %p70 = scmp.eq.s32.totalorder %s18, 0
      %p71 = por %p69, %p70
      %s73 = sadd.s32 %s72, 1
      %p76 = scmp.eq.s32.totalorder %s12, 1
      %p77 = scmp.ne.s32.totalorder %s72, %s74
      %p78 = scmp.eq.s32.totalorder %s12, 0
      %p79 = por %p77, %p78
      %p80 = scmp.ne.s32.totalorder %s72, %s74
      %p81 = scmp.eq.s32.totalorder %s17, 1
      %p82 = por %p80, %p81
      %p83 = scmp.ne.s32.totalorder %s74, %s75
      %p84 = scmp.eq.s32.totalorder %s17, 0
      %p85 = por %p83, %p84
      %p86 = scmp.ne.s32.totalorder %s74, %s75
      %p87 = scmp.eq.s32.totalorder %s18, 1
      %p88 = por %p86, %p87
      %p90 = scmp.ne.s32.totalorder %s75, %s89
      %p91 = scmp.eq.s32.totalorder %s18, 0
      %p92 = por %p90, %p91
      %s93 = ssub.s32 %s12, %s19
      %p94 = scmp.eq.s32.totalorder %s93, 0
      %s96 = sadd.s32 %s95, 1
      %s97 = scalar_select %p94, %s95, %s96
      %p100 = pneg %p94
      %p101 = scmp.eq.s32.totalorder %s12, 1
      %p102 = por %p100, %p101
      %p103 = scmp.ne.s32.totalorder %s95, %s98
      %p104 = scmp.eq.s32.totalorder %s12, 0
      %p105 = por %p103, %p104
      %p106 = scmp.ne.s32.totalorder %s95, %s98
      %p107 = scmp.eq.s32.totalorder %s17, 1
      %p108 = por %p106, %p107
      %p109 = scmp.ne.s32.totalorder %s98, %s99
      %p110 = scmp.eq.s32.totalorder %s17, 0
      %p111 = por %p109, %p110
      %p112 = scmp.ne.s32.totalorder %s98, %s99
      %p113 = scmp.eq.s32.totalorder %s18, 1
      %p114 = por %p112, %p113
      %p116 = scmp.ne.s32.totalorder %s99, %s115
      %p117 = scmp.eq.s32.totalorder %s18, 0
      %p118 = por %p116, %p117
      %p119 = scmp.le.s32.totalorder 1, %s12
      %p120 = scmp.lt.s32.totalorder %s12, 3
      %p121 = pnand %p119, %p120
      %p122 = pneg %p121
      // Predicated region
      $region9: #{_lambda_.5} parent=5 // pred_check
        _
      $region10: #{_lambda_.5} parent=5 // pred_check_branch
        %124 = sbr.rel (%p121) target = $region12
      $region11: #{_lambda_.5} parent=5 // pred_region
        %s125 = ssub.s32 %s12, 1
        // Predicated region
        $region13: #{_lambda_.5} parent=11 // pred_check
          %p126 = pneg %p85
        $region14: #{_lambda_.5} parent=11 // pred_check_branch
          %128 = sbr.rel (%p126) target = $region16
        $region15: #{_lambda_.5} parent=11 // pred_region
          _
        $region16: #{_lambda_.5} parent=11 // pred_fallthru
          _
      $region12: #{_lambda_.5} parent=5 // pred_fallthru
        _
      %p129 = scmp.lt.s32.totalorder %s12, 2
      // Predicated region
      $region17: #{_lambda_.5} parent=5 // pred_check
        %p130 = pneg %p129
      $region18: #{_lambda_.5} parent=5 // pred_check_branch
        %132 = sbr.rel (%p130) target = $region20
      $region19: #{_lambda_.5} parent=5 // pred_region
        // Predicated region
        $region21: #{_lambda_.5} parent=19 // pred_check
          %p133 = pneg %p32
        $region22: #{_lambda_.5} parent=19 // pred_check_branch
          %135 = sbr.rel (%p133) target = $region24
        $region23: #{_lambda_.5} parent=19 // pred_region
          %s136 = smul.u32 64, %s12
          %p137 = scmp.lt.s32.totalorder %s136, 127
          %s138 = scalar_select %p137, %s136, 127
          %s139 = smul.addr %s138, 4
          %s140 = scalar_lea.vmem %s0, %s139
          %s141 = smul.u32 64, %s12
        $region24: #{_lambda_.5} parent=19 // pred_fallthru
          _
        // Predicated region
        $region25: #{_lambda_.5} parent=19 // pred_check
          %p142 = pneg %p58
        $region26: #{_lambda_.5} parent=19 // pred_check_branch
          %144 = sbr.rel (%p142) target = $region28
        $region27: #{_lambda_.5} parent=19 // pred_region
          %s145 = smul.u32 64, %s12
          %p146 = scmp.lt.s32.totalorder %s145, 127
          %s147 = scalar_select %p146, %s145, 127
          %s148 = smul.addr %s147, 4
          %s149 = scalar_lea.vmem %s1, %s148
          %s150 = smul.u32 64, %s12
        $region28: #{_lambda_.5} parent=19 // pred_fallthru
          _
      $region20: #{_lambda_.5} parent=5 // pred_fallthru
        _
      %p151 = scmp.le.s32.totalorder 1, %s12
      %p152 = scmp.lt.s32.totalorder %s12, 3
      %p153 = pnand %p151, %p152
      %p154 = pneg %p153
      // Predicated region
      $region29: #{_lambda_.5} parent=5 // pred_check
        _
      $region30: #{_lambda_.5} parent=5 // pred_check_branch
        %156 = sbr.rel (%p153) target = $region32
      $region31: #{_lambda_.5} parent=5 // pred_region
        %s157 = ssub.s32 %s12, 1
        %s158 = smul.u32 64, %s17
        %p159 = scmp.lt.s32.totalorder %s158, 127
        %s160 = scalar_select %p159, %s158, 127
        %s161 = smul.addr %s160, 4
        %s162 = scalar_lea.vmem %s0, %s161
        %p163 = pneg %p38
        %p164 = pneg %p35
        %s165 = smul.u32 64, %s17
        %p166 = scmp.lt.s32.totalorder %s165, 127
        %s167 = scalar_select %p166, %s165, 127
        %s168 = smul.addr %s167, 4
        %s169 = scalar_lea.vmem %s1, %s168
        %p170 = pneg %p64
        %p171 = pneg %p61
        %p172 = pneg %p85
        %p173 = pneg %p82
        %p174 = pneg %p111
        %p175 = pneg %p108
        %s176 = sand.u32 %s98, 1
        %s177 = scalar_lea.sflag [#allocation3], %s176
        %s178 = sand.u32 %s98, 1
        %s179 = smul.addr %s178, 512
        %s180 = scalar_lea.vmem [#allocation2], %s179
        %s181 = smul.u32 64, %s17
        %p182 = scmp.lt.s32.totalorder %s181, 127
        %s183 = scalar_select %p182, %s181, 127
        %s184 = smul.addr %s183, 4
        %s185 = scalar_lea.vmem %s0, %s184
        %s186 = smul.u32 64, %s17
        %s187 = smul.u32 64, %s17
        %p188 = scmp.lt.s32.totalorder %s187, 127
        %s189 = scalar_select %p188, %s187, 127
        %s190 = smul.addr %s189, 4
        %s191 = scalar_lea.vmem %s1, %s190
        %s192 = smul.u32 64, %s17
        %s193 = smul.u32 64, %s17
        %v195 = vld [vmem:[%s185] sm:$0xf]
        %v196 = vld [vmem:[%s185 + $0x4] sm:$0xf]
        %v197 = vld [vmem:[%s185 + $0x8] sm:$0xf]
        %v198 = vld [vmem:[%s185 + $0xc] sm:$0xf]
        %v199 = vld [vmem:[%s185 + $0x10] sm:$0xf]
        %v200 = vld [vmem:[%s185 + $0x14] sm:$0xf]
        %v201 = vld [vmem:[%s185 + $0x18] sm:$0xf]
        %v202 = vld [vmem:[%s185 + $0x1c] sm:$0xf]
        %v203 = vld [vmem:[%s185 + $0x20] sm:$0xf]
        %v204 = vld [vmem:[%s185 + $0x24] sm:$0xf]
        %v205 = vld [vmem:[%s185 + $0x28] sm:$0xf]
        %v206 = vld [vmem:[%s185 + $0x2c] sm:$0xf]
        %v207 = vld [vmem:[%s185 + $0x30] sm:$0xf]
        %v208 = vld [vmem:[%s185 + $0x34] sm:$0xf]
        %v209 = vld [vmem:[%s185 + $0x38] sm:$0xf]
        %v210 = vld [vmem:[%s185 + $0x3c] sm:$0xf]
        %v211 = vld [vmem:[%s185 + $0x40] sm:$0xf]
        %v212 = vld [vmem:[%s185 + $0x44] sm:$0xf]
        %v213 = vld [vmem:[%s185 + $0x48] sm:$0xf]
        %v214 = vld [vmem:[%s185 + $0x4c] sm:$0xf]
        %v215 = vld [vmem:[%s185 + $0x50] sm:$0xf]
        %v216 = vld [vmem:[%s185 + $0x54] sm:$0xf]
        %v217 = vld [vmem:[%s185 + $0x58] sm:$0xf]
        %v218 = vld [vmem:[%s185 + $0x5c] sm:$0xf]
        %v219 = vld [vmem:[%s185 + $0x60] sm:$0xf]
        %v220 = vld [vmem:[%s185 + $0x64] sm:$0xf]
        %v221 = vld [vmem:[%s185 + $0x68] sm:$0xf]
        %v222 = vld [vmem:[%s185 + $0x6c] sm:$0xf]
        %v223 = vld [vmem:[%s185 + $0x70] sm:$0xf]
        %v224 = vld [vmem:[%s185 + $0x74] sm:$0xf]
        %v225 = vld [vmem:[%s185 + $0x78] sm:$0xf]
        %v226 = vld [vmem:[%s185 + $0x7c] sm:$0xf]
        %v227 = vld [vmem:[%s185 + $0x80] sm:$0xf]
        %v228 = vld [vmem:[%s185 + $0x84] sm:$0xf]
        %v229 = vld [vmem:[%s185 + $0x88] sm:$0xf]
        %v230 = vld [vmem:[%s185 + $0x8c] sm:$0xf]
        %v231 = vld [vmem:[%s185 + $0x90] sm:$0xf]
        %v232 = vld [vmem:[%s185 + $0x94] sm:$0xf]
        %v233 = vld [vmem:[%s185 + $0x98] sm:$0xf]
        %v234 = vld [vmem:[%s185 + $0x9c] sm:$0xf]
        %v235 = vld [vmem:[%s185 + $0xa0] sm:$0xf]
        %v236 = vld [vmem:[%s185 + $0xa4] sm:$0xf]
        %v237 = vld [vmem:[%s185 + $0xa8] sm:$0xf]
        %v238 = vld [vmem:[%s185 + $0xac] sm:$0xf]
        %v239 = vld [vmem:[%s185 + $0xb0] sm:$0xf]
        %v240 = vld [vmem:[%s185 + $0xb4] sm:$0xf]
        %v241 = vld [vmem:[%s185 + $0xb8] sm:$0xf]
        %v242 = vld [vmem:[%s185 + $0xbc] sm:$0xf]
        %v243 = vld [vmem:[%s185 + $0xc0] sm:$0xf]
        %v244 = vld [vmem:[%s185 + $0xc4] sm:$0xf]
        %v245 = vld [vmem:[%s185 + $0xc8] sm:$0xf]
        %v246 = vld [vmem:[%s185 + $0xcc] sm:$0xf]
        %v247 = vld [vmem:[%s185 + $0xd0] sm:$0xf]
        %v248 = vld [vmem:[%s185 + $0xd4] sm:$0xf]
        %v249 = vld [vmem:[%s185 + $0xd8] sm:$0xf]
        %v250 = vld [vmem:[%s185 + $0xdc] sm:$0xf]
        %v251 = vld [vmem:[%s185 + $0xe0] sm:$0xf]
        %v252 = vld [vmem:[%s185 + $0xe4] sm:$0xf]
        %v253 = vld [vmem:[%s185 + $0xe8] sm:$0xf]
        %v254 = vld [vmem:[%s185 + $0xec] sm:$0xf]
        %v255 = vld [vmem:[%s185 + $0xf0] sm:$0xf]
        %v256 = vld [vmem:[%s185 + $0xf4] sm:$0xf]
        %v257 = vld [vmem:[%s185 + $0xf8] sm:$0xf]
        %v258 = vld [vmem:[%s185 + $0xfc] sm:$0xf]
        %v259 = vunpack.c.l.bf16 %v195
        %v260 = vunpack.c.l.bf16 %v196
        %v261 = vunpack.c.l.bf16 %v197
        %v262 = vunpack.c.l.bf16 %v198
        %v263 = vunpack.c.l.bf16 %v199
        %v264 = vunpack.c.l.bf16 %v200
        %v265 = vunpack.c.l.bf16 %v201
        %v266 = vunpack.c.l.bf16 %v202
        %v267 = vunpack.c.l.bf16 %v203
        %v268 = vunpack.c.l.bf16 %v204
        %v269 = vunpack.c.l.bf16 %v205
        %v270 = vunpack.c.l.bf16 %v206
        %v271 = vunpack.c.l.bf16 %v207
        %v272 = vunpack.c.l.bf16 %v208
        %v273 = vunpack.c.l.bf16 %v209
        %v274 = vunpack.c.l.bf16 %v210
        %v275 = vunpack.c.l.bf16 %v211
        %v276 = vunpack.c.l.bf16 %v212
        %v277 = vunpack.c.l.bf16 %v213
        %v278 = vunpack.c.l.bf16 %v214
        %v279 = vunpack.c.l.bf16 %v215
        %v280 = vunpack.c.l.bf16 %v216
        %v281 = vunpack.c.l.bf16 %v217
        %v282 = vunpack.c.l.bf16 %v218
        %v283 = vunpack.c.l.bf16 %v219
        %v284 = vunpack.c.l.bf16 %v220
        %v285 = vunpack.c.l.bf16 %v221
        %v286 = vunpack.c.l.bf16 %v222
        %v287 = vunpack.c.l.bf16 %v223
        %v288 = vunpack.c.l.bf16 %v224
        %v289 = vunpack.c.l.bf16 %v225
        %v290 = vunpack.c.l.bf16 %v226
        %v291 = vunpack.c.l.bf16 %v227
        %v292 = vunpack.c.l.bf16 %v228
        %v293 = vunpack.c.l.bf16 %v229
        %v294 = vunpack.c.l.bf16 %v230
        %v295 = vunpack.c.l.bf16 %v231
        %v296 = vunpack.c.l.bf16 %v232
        %v297 = vunpack.c.l.bf16 %v233
        %v298 = vunpack.c.l.bf16 %v234
        %v299 = vunpack.c.l.bf16 %v235
        %v300 = vunpack.c.l.bf16 %v236
        %v301 = vunpack.c.l.bf16 %v237
        %v302 = vunpack.c.l.bf16 %v238
        %v303 = vunpack.c.l.bf16 %v239
        %v304 = vunpack.c.l.bf16 %v240
        %v305 = vunpack.c.l.bf16 %v241
        %v306 = vunpack.c.l.bf16 %v242
        %v307 = vunpack.c.l.bf16 %v243
        %v308 = vunpack.c.l.bf16 %v244
        %v309 = vunpack.c.l.bf16 %v245
        %v310 = vunpack.c.l.bf16 %v246
        %v311 = vunpack.c.l.bf16 %v247
        %v312 = vunpack.c.l.bf16 %v248
        %v313 = vunpack.c.l.bf16 %v249
        %v314 = vunpack.c.l.bf16 %v250
        %v315 = vunpack.c.l.bf16 %v251
        %v316 = vunpack.c.l.bf16 %v252
        %v317 = vunpack.c.l.bf16 %v253
        %v318 = vunpack.c.l.bf16 %v254
        %v319 = vunpack.c.l.bf16 %v255
        %v320 = vunpack.c.l.bf16 %v256
        %v321 = vunpack.c.l.bf16 %v257
        %v322 = vunpack.c.l.bf16 %v258
        %v323 = vld [vmem:[%s191] sm:$0xf]
        %v324 = vld [vmem:[%s191 + $0x4] sm:$0xf]
        %v325 = vld [vmem:[%s191 + $0x8] sm:$0xf]
        %v326 = vld [vmem:[%s191 + $0xc] sm:$0xf]
        %v327 = vld [vmem:[%s191 + $0x10] sm:$0xf]
        %v328 = vld [vmem:[%s191 + $0x14] sm:$0xf]
        %v329 = vld [vmem:[%s191 + $0x18] sm:$0xf]
        %v330 = vld [vmem:[%s191 + $0x1c] sm:$0xf]
        %v331 = vld [vmem:[%s191 + $0x20] sm:$0xf]
        %v332 = vld [vmem:[%s191 + $0x24] sm:$0xf]
        %v333 = vld [vmem:[%s191 + $0x28] sm:$0xf]
        %v334 = vld [vmem:[%s191 + $0x2c] sm:$0xf]
        %v335 = vld [vmem:[%s191 + $0x30] sm:$0xf]
        %v336 = vld [vmem:[%s191 + $0x34] sm:$0xf]
        %v337 = vld [vmem:[%s191 + $0x38] sm:$0xf]
        %v338 = vld [vmem:[%s191 + $0x3c] sm:$0xf]
        %v339 = vld [vmem:[%s191 + $0x40] sm:$0xf]
        %v340 = vld [vmem:[%s191 + $0x44] sm:$0xf]
        %v341 = vld [vmem:[%s191 + $0x48] sm:$0xf]
        %v342 = vld [vmem:[%s191 + $0x4c] sm:$0xf]
        %v343 = vld [vmem:[%s191 + $0x50] sm:$0xf]
        %v344 = vld [vmem:[%s191 + $0x54] sm:$0xf]
        %v345 = vld [vmem:[%s191 + $0x58] sm:$0xf]
        %v346 = vld [vmem:[%s191 + $0x5c] sm:$0xf]
        %v347 = vld [vmem:[%s191 + $0x60] sm:$0xf]
        %v348 = vld [vmem:[%s191 + $0x64] sm:$0xf]
        %v349 = vld [vmem:[%s191 + $0x68] sm:$0xf]
        %v350 = vld [vmem:[%s191 + $0x6c] sm:$0xf]
        %v351 = vld [vmem:[%s191 + $0x70] sm:$0xf]
        %v352 = vld [vmem:[%s191 + $0x74] sm:$0xf]
        %v353 = vld [vmem:[%s191 + $0x78] sm:$0xf]
        %v354 = vld [vmem:[%s191 + $0x7c] sm:$0xf]
        %v355 = vld [vmem:[%s191 + $0x80] sm:$0xf]
        %v356 = vld [vmem:[%s191 + $0x84] sm:$0xf]
        %v357 = vld [vmem:[%s191 + $0x88] sm:$0xf]
        %v358 = vld [vmem:[%s191 + $0x8c] sm:$0xf]
        %v359 = vld [vmem:[%s191 + $0x90] sm:$0xf]
        %v360 = vld [vmem:[%s191 + $0x94] sm:$0xf]
        %v361 = vld [vmem:[%s191 + $0x98] sm:$0xf]
        %v362 = vld [vmem:[%s191 + $0x9c] sm:$0xf]
        %v363 = vld [vmem:[%s191 + $0xa0] sm:$0xf]
        %v364 = vld [vmem:[%s191 + $0xa4] sm:$0xf]
        %v365 = vld [vmem:[%s191 + $0xa8] sm:$0xf]
        %v366 = vld [vmem:[%s191 + $0xac] sm:$0xf]
        %v367 = vld [vmem:[%s191 + $0xb0] sm:$0xf]
        %v368 = vld [vmem:[%s191 + $0xb4] sm:$0xf]
        %v369 = vld [vmem:[%s191 + $0xb8] sm:$0xf]
        %v370 = vld [vmem:[%s191 + $0xbc] sm:$0xf]
        %v371 = vld [vmem:[%s191 + $0xc0] sm:$0xf]
        %v372 = vld [vmem:[%s191 + $0xc4] sm:$0xf]
        %v373 = vld [vmem:[%s191 + $0xc8] sm:$0xf]
        %v374 = vld [vmem:[%s191 + $0xcc] sm:$0xf]
        %v375 = vld [vmem:[%s191 + $0xd0] sm:$0xf]
        %v376 = vld [vmem:[%s191 + $0xd4] sm:$0xf]
        %v377 = vld [vmem:[%s191 + $0xd8] sm:$0xf]
        %v378 = vld [vmem:[%s191 + $0xdc] sm:$0xf]
        %v379 = vld [vmem:[%s191 + $0xe0] sm:$0xf]
        %v380 = vld [vmem:[%s191 + $0xe4] sm:$0xf]
        %v381 = vld [vmem:[%s191 + $0xe8] sm:$0xf]
        %v382 = vld [vmem:[%s191 + $0xec] sm:$0xf]
        %v383 = vld [vmem:[%s191 + $0xf0] sm:$0xf]
        %v384 = vld [vmem:[%s191 + $0xf4] sm:$0xf]
        %v385 = vld [vmem:[%s191 + $0xf8] sm:$0xf]
        %v386 = vld [vmem:[%s191 + $0xfc] sm:$0xf]
        %v387 = vunpack.c.l.bf16 %v323
        %v388 = vunpack.c.l.bf16 %v324
        %v389 = vunpack.c.l.bf16 %v325
        %v390 = vunpack.c.l.bf16 %v326
        %v391 = vunpack.c.l.bf16 %v327
        %v392 = vunpack.c.l.bf16 %v328
        %v393 = vunpack.c.l.bf16 %v329
        %v394 = vunpack.c.l.bf16 %v330
        %v395 = vunpack.c.l.bf16 %v331
        %v396 = vunpack.c.l.bf16 %v332
        %v397 = vunpack.c.l.bf16 %v333
        %v398 = vunpack.c.l.bf16 %v334
        %v399 = vunpack.c.l.bf16 %v335
        %v400 = vunpack.c.l.bf16 %v336
        %v401 = vunpack.c.l.bf16 %v337
        %v402 = vunpack.c.l.bf16 %v338
        %v403 = vunpack.c.l.bf16 %v339
        %v404 = vunpack.c.l.bf16 %v340
        %v405 = vunpack.c.l.bf16 %v341
        %v406 = vunpack.c.l.bf16 %v342
        %v407 = vunpack.c.l.bf16 %v343
        %v408 = vunpack.c.l.bf16 %v344
        %v409 = vunpack.c.l.bf16 %v345
        %v410 = vunpack.c.l.bf16 %v346
        %v411 = vunpack.c.l.bf16 %v347
        %v412 = vunpack.c.l.bf16 %v348
        %v413 = vunpack.c.l.bf16 %v349
        %v414 = vunpack.c.l.bf16 %v350
        %v415 = vunpack.c.l.bf16 %v351
        %v416 = vunpack.c.l.bf16 %v352
        %v417 = vunpack.c.l.bf16 %v353
        %v418 = vunpack.c.l.bf16 %v354
        %v419 = vunpack.c.l.bf16 %v355
        %v420 = vunpack.c.l.bf16 %v356
        %v421 = vunpack.c.l.bf16 %v357
        %v422 = vunpack.c.l.bf16 %v358
        %v423 = vunpack.c.l.bf16 %v359
        %v424 = vunpack.c.l.bf16 %v360
        %v425 = vunpack.c.l.bf16 %v361
        %v426 = vunpack.c.l.bf16 %v362
        %v427 = vunpack.c.l.bf16 %v363
        %v428 = vunpack.c.l.bf16 %v364
        %v429 = vunpack.c.l.bf16 %v365
        %v430 = vunpack.c.l.bf16 %v366
        %v431 = vunpack.c.l.bf16 %v367
        %v432 = vunpack.c.l.bf16 %v368
        %v433 = vunpack.c.l.bf16 %v369
        %v434 = vunpack.c.l.bf16 %v370
        %v435 = vunpack.c.l.bf16 %v371
        %v436 = vunpack.c.l.bf16 %v372
        %v437 = vunpack.c.l.bf16 %v373
        %v438 = vunpack.c.l.bf16 %v374
        %v439 = vunpack.c.l.bf16 %v375
        %v440 = vunpack.c.l.bf16 %v376
        %v441 = vunpack.c.l.bf16 %v377
        %v442 = vunpack.c.l.bf16 %v378
        %v443 = vunpack.c.l.bf16 %v379
        %v444 = vunpack.c.l.bf16 %v380
        %v445 = vunpack.c.l.bf16 %v381
        %v446 = vunpack.c.l.bf16 %v382
        %v447 = vunpack.c.l.bf16 %v383
        %v448 = vunpack.c.l.bf16 %v384
        %v449 = vunpack.c.l.bf16 %v385
        %v450 = vunpack.c.l.bf16 %v386
        %v451 = vadd.f32 %v259, %v387
        %v452 = vadd.f32 %v260, %v388
        %v453 = vadd.f32 %v261, %v389
        %v454 = vadd.f32 %v262, %v390
        %v455 = vadd.f32 %v263, %v391
        %v456 = vadd.f32 %v264, %v392
        %v457 = vadd.f32 %v265, %v393
        %v458 = vadd.f32 %v266, %v394
        %v459 = vadd.f32 %v267, %v395
        %v460 = vadd.f32 %v268, %v396
        %v461 = vadd.f32 %v269, %v397
        %v462 = vadd.f32 %v270, %v398
        %v463 = vadd.f32 %v271, %v399
        %v464 = vadd.f32 %v272, %v400
        %v465 = vadd.f32 %v273, %v401
        %v466 = vadd.f32 %v274, %v402
        %v467 = vadd.f32 %v275, %v403
        %v468 = vadd.f32 %v276, %v404
        %v469 = vadd.f32 %v277, %v405
        %v470 = vadd.f32 %v278, %v406
        %v471 = vadd.f32 %v279, %v407
        %v472 = vadd.f32 %v280, %v408
        %v473 = vadd.f32 %v281, %v409
        %v474 = vadd.f32 %v282, %v410
        %v475 = vadd.f32 %v283, %v411
        %v476 = vadd.f32 %v284, %v412
        %v477 = vadd.f32 %v285, %v413
        %v478 = vadd.f32 %v286, %v414
        %v479 = vadd.f32 %v287, %v415
        %v480 = vadd.f32 %v288, %v416
        %v481 = vadd.f32 %v289, %v417
        %v482 = vadd.f32 %v290, %v418
        %v483 = vadd.f32 %v291, %v419
        %v484 = vadd.f32 %v292, %v420
        %v485 = vadd.f32 %v293, %v421
        %v486 = vadd.f32 %v294, %v422
        %v487 = vadd.f32 %v295, %v423
        %v488 = vadd.f32 %v296, %v424
        %v489 = vadd.f32 %v297, %v425
        %v490 = vadd.f32 %v298, %v426
        %v491 = vadd.f32 %v299, %v427
        %v492 = vadd.f32 %v300, %v428
        %v493 = vadd.f32 %v301, %v429
        %v494 = vadd.f32 %v302, %v430
        %v495 = vadd.f32 %v303, %v431
        %v496 = vadd.f32 %v304, %v432
        %v497 = vadd.f32 %v305, %v433
        %v498 = vadd.f32 %v306, %v434
        %v499 = vadd.f32 %v307, %v435
        %v500 = vadd.f32 %v308, %v436
        %v501 = vadd.f32 %v309, %v437
        %v502 = vadd.f32 %v310, %v438
        %v503 = vadd.f32 %v311, %v439
        %v504 = vadd.f32 %v312, %v440
        %v505 = vadd.f32 %v313, %v441
        %v506 = vadd.f32 %v314, %v442
        %v507 = vadd.f32 %v315, %v443
        %v508 = vadd.f32 %v316, %v444
        %v509 = vadd.f32 %v317, %v445
        %v510 = vadd.f32 %v318, %v446
        %v511 = vadd.f32 %v319, %v447
        %v512 = vadd.f32 %v320, %v448
        %v513 = vadd.f32 %v321, %v449
        %v514 = vadd.f32 %v322, %v450
        %v515 = vpack.c.bf16 %v452, %v451
        %v516 = vpack.c.bf16 %v454, %v453
        %v517 = vpack.c.bf16 %v456, %v455
        %v518 = vpack.c.bf16 %v458, %v457
        %v519 = vpack.c.bf16 %v460, %v459
        %v520 = vpack.c.bf16 %v462, %v461
        %v521 = vpack.c.bf16 %v464, %v463
        %v522 = vpack.c.bf16 %v466, %v465
        %v523 = vpack.c.bf16 %v468, %v467
        %v524 = vpack.c.bf16 %v470, %v469
        %v525 = vpack.c.bf16 %v472, %v471
        %v526 = vpack.c.bf16 %v474, %v473
        %v527 = vpack.c.bf16 %v476, %v475
        %v528 = vpack.c.bf16 %v478, %v477
        %v529 = vpack.c.bf16 %v480, %v479
        %v530 = vpack.c.bf16 %v482, %v481
        %v531 = vpack.c.bf16 %v484, %v483
        %v532 = vpack.c.bf16 %v486, %v485
        %v533 = vpack.c.bf16 %v488, %v487
        %v534 = vpack.c.bf16 %v490, %v489
        %v535 = vpack.c.bf16 %v492, %v491
        %v536 = vpack.c.bf16 %v494, %v493
        %v537 = vpack.c.bf16 %v496, %v495
        %v538 = vpack.c.bf16 %v498, %v497
        %v539 = vpack.c.bf16 %v500, %v499
        %v540 = vpack.c.bf16 %v502, %v501
        %v541 = vpack.c.bf16 %v504, %v503
        %v542 = vpack.c.bf16 %v506, %v505
        %v543 = vpack.c.bf16 %v508, %v507
        %v544 = vpack.c.bf16 %v510, %v509
        %v545 = vpack.c.bf16 %v512, %v511
        %v546 = vpack.c.bf16 %v514, %v513
        %v547 = vld [vmem:[%s2] sm:$0xf]
        %v548 = vld [vmem:[%s2 + $0x4] sm:$0xf]
        %v549 = vld [vmem:[%s2 + $0x8] sm:$0xf]
        %v550 = vld [vmem:[%s2 + $0xc] sm:$0xf]
        %v551 = vld [vmem:[%s2 + $0x10] sm:$0xf]
        %v552 = vld [vmem:[%s2 + $0x14] sm:$0xf]
        %v553 = vld [vmem:[%s2 + $0x18] sm:$0xf]
        %v554 = vld [vmem:[%s2 + $0x1c] sm:$0xf]
        %v563 = vunpack.c.l.b16 %v547
        %v564 = vunpack.c.l.b16 %v548
        %v565 = vunpack.c.l.b16 %v549
        %v566 = vunpack.c.l.b16 %v550
        %v567 = vunpack.c.l.b16 %v551
        %v568 = vunpack.c.l.b16 %v552
        %v569 = vunpack.c.l.b16 %v553
        %v570 = vunpack.c.l.b16 %v554
        %v571 = vpack.c.b16 %v564, %v563
        %v572 = vpack.c.b16 %v566, %v565
        %v573 = vpack.c.b16 %v568, %v567
        %v574 = vpack.c.b16 %v570, %v569
        %vm579 = vcmask 523264
        %v581 = vsel %vm579, %v515, 0
        %v584 = vsel %vm579, %v516, 0
        %v587 = vsel %vm579, %v517, 0
        %v590 = vsel %vm579, %v518, 0
        %v593 = vsel %vm579, %v519, 0
        %v596 = vsel %vm579, %v520, 0
        %v599 = vsel %vm579, %v521, 0
        %v602 = vsel %vm579, %v522, 0
        %v605 = vsel %vm579, %v523, 0
        %v608 = vsel %vm579, %v524, 0
        %v611 = vsel %vm579, %v525, 0
        %v614 = vsel %vm579, %v526, 0
        %v617 = vsel %vm579, %v527, 0
        %v620 = vsel %vm579, %v528, 0
        %v623 = vsel %vm579, %v529, 0
        %v626 = vsel %vm579, %v530, 0
        %v629 = vsel %vm579, %v531, 0
        %v632 = vsel %vm579, %v532, 0
        %v635 = vsel %vm579, %v533, 0
        %v638 = vsel %vm579, %v534, 0
        %v641 = vsel %vm579, %v535, 0
        %v644 = vsel %vm579, %v536, 0
        %v647 = vsel %vm579, %v537, 0
        %v650 = vsel %vm579, %v538, 0
        %v653 = vsel %vm579, %v539, 0
        %v656 = vsel %vm579, %v540, 0
        %v659 = vsel %vm579, %v541, 0
        %v662 = vsel %vm579, %v542, 0
        %v665 = vsel %vm579, %v543, 0
        %v668 = vsel %vm579, %v544, 0
        %v671 = vsel %vm579, %v545, 0
        %v674 = vsel %vm579, %v546, 0
        %676 = vmatpush.bf16.msra.mxu0 0
        %677 = vmatpush.bf16.msra.mxu0 0
        %678 = vmatpush.bf16.msra.mxu0 0
        %679 = vmatpush.bf16.msra.mxu0 0
        %680 = vmatpush.bf16.msra.mxu0 %v574
        %681 = vmatpush.bf16.msra.mxu0 %v573
        %682 = vmatpush.bf16.msra.mxu0 %v572
        %683 = vmatpush.bf16.msra.mxu0 %v571
        %684 = vmatmul.bf16.gmra.mxu0 %v581
        %v685 = vpop.f32.mrf.mxu0
        %v686 = vadd.f32 0.0, %v685
        %v687 = vpop.f32.mrf.mxu0
        %v688 = vadd.f32 0.0, %v687
        %689 = vmatmul.bf16.gmra.mxu0 %v584
        %v690 = vpop.f32.mrf.mxu0
        %v691 = vadd.f32 0.0, %v690
        %v692 = vpop.f32.mrf.mxu0
        %v693 = vadd.f32 0.0, %v692
        %694 = vmatmul.bf16.gmra.mxu0 %v587
        %v695 = vpop.f32.mrf.mxu0
        %v696 = vadd.f32 0.0, %v695
        %v697 = vpop.f32.mrf.mxu0
        %v698 = vadd.f32 0.0, %v697
        %699 = vmatmul.bf16.gmra.mxu0 %v590
        %v700 = vpop.f32.mrf.mxu0
        %v701 = vadd.f32 0.0, %v700
        %v702 = vpop.f32.mrf.mxu0
        %v703 = vadd.f32 0.0, %v702
        %704 = vmatmul.bf16.gmra.mxu0 %v593
        %v705 = vpop.f32.mrf.mxu0
        %v706 = vadd.f32 0.0, %v705
        %v707 = vpop.f32.mrf.mxu0
        %v708 = vadd.f32 0.0, %v707
        %709 = vmatmul.bf16.gmra.mxu0 %v596
        %v710 = vpop.f32.mrf.mxu0
        %v711 = vadd.f32 0.0, %v710
        %v712 = vpop.f32.mrf.mxu0
        %v713 = vadd.f32 0.0, %v712
        %714 = vmatmul.bf16.gmra.mxu0 %v599
        %v715 = vpop.f32.mrf.mxu0
        %v716 = vadd.f32 0.0, %v715
        %v717 = vpop.f32.mrf.mxu0
        %v718 = vadd.f32 0.0, %v717
        %719 = vmatmul.bf16.gmra.mxu0 %v602
        %v720 = vpop.f32.mrf.mxu0
        %v721 = vadd.f32 0.0, %v720
        %v722 = vpop.f32.mrf.mxu0
        %v723 = vadd.f32 0.0, %v722
        %724 = vmatmul.bf16.gmra.mxu0 %v605
        %v725 = vpop.f32.mrf.mxu0
        %v726 = vadd.f32 0.0, %v725
        %v727 = vpop.f32.mrf.mxu0
        %v728 = vadd.f32 0.0, %v727
        %729 = vmatmul.bf16.gmra.mxu0 %v608
        %v730 = vpop.f32.mrf.mxu0
        %v731 = vadd.f32 0.0, %v730
        %v732 = vpop.f32.mrf.mxu0
        %v733 = vadd.f32 0.0, %v732
        %734 = vmatmul.bf16.gmra.mxu0 %v611
        %v735 = vpop.f32.mrf.mxu0
        %v736 = vadd.f32 0.0, %v735
        %v737 = vpop.f32.mrf.mxu0
        %v738 = vadd.f32 0.0, %v737
        %739 = vmatmul.bf16.gmra.mxu0 %v614
        %v740 = vpop.f32.mrf.mxu0
        %v741 = vadd.f32 0.0, %v740
        %v742 = vpop.f32.mrf.mxu0
        %v743 = vadd.f32 0.0, %v742
        %744 = vmatmul.bf16.gmra.mxu0 %v617
        %v745 = vpop.f32.mrf.mxu0
        %v746 = vadd.f32 0.0, %v745
        %v747 = vpop.f32.mrf.mxu0
        %v748 = vadd.f32 0.0, %v747
        %749 = vmatmul.bf16.gmra.mxu0 %v620
        %v750 = vpop.f32.mrf.mxu0
        %v751 = vadd.f32 0.0, %v750
        %v752 = vpop.f32.mrf.mxu0
        %v753 = vadd.f32 0.0, %v752
        %754 = vmatmul.bf16.gmra.mxu0 %v623
        %v755 = vpop.f32.mrf.mxu0
        %v756 = vadd.f32 0.0, %v755
        %v757 = vpop.f32.mrf.mxu0
        %v758 = vadd.f32 0.0, %v757
        %759 = vmatmul.bf16.gmra.mxu0 %v626
        %v760 = vpop.f32.mrf.mxu0
        %v761 = vadd.f32 0.0, %v760
        %v762 = vpop.f32.mrf.mxu0
        %v763 = vadd.f32 0.0, %v762
        %764 = vmatmul.bf16.gmra.mxu0 %v629
        %v765 = vpop.f32.mrf.mxu0
        %v766 = vadd.f32 0.0, %v765
        %v767 = vpop.f32.mrf.mxu0
        %v768 = vadd.f32 0.0, %v767
        %769 = vmatmul.bf16.gmra.mxu0 %v632
        %v770 = vpop.f32.mrf.mxu0
        %v771 = vadd.f32 0.0, %v770
        %v772 = vpop.f32.mrf.mxu0
        %v773 = vadd.f32 0.0, %v772
        %774 = vmatmul.bf16.gmra.mxu0 %v635
        %v775 = vpop.f32.mrf.mxu0
        %v776 = vadd.f32 0.0, %v775
        %v777 = vpop.f32.mrf.mxu0
        %v778 = vadd.f32 0.0, %v777
        %779 = vmatmul.bf16.gmra.mxu0 %v638
        %v780 = vpop.f32.mrf.mxu0
        %v781 = vadd.f32 0.0, %v780
        %v782 = vpop.f32.mrf.mxu0
        %v783 = vadd.f32 0.0, %v782
        %784 = vmatmul.bf16.gmra.mxu0 %v641
        %v785 = vpop.f32.mrf.mxu0
        %v786 = vadd.f32 0.0, %v785
        %v787 = vpop.f32.mrf.mxu0
        %v788 = vadd.f32 0.0, %v787
        %789 = vmatmul.bf16.gmra.mxu0 %v644
        %v790 = vpop.f32.mrf.mxu0
        %v791 = vadd.f32 0.0, %v790
        %v792 = vpop.f32.mrf.mxu0
        %v793 = vadd.f32 0.0, %v792
        %794 = vmatmul.bf16.gmra.mxu0 %v647
        %v795 = vpop.f32.mrf.mxu0
        %v796 = vadd.f32 0.0, %v795
        %v797 = vpop.f32.mrf.mxu0
        %v798 = vadd.f32 0.0, %v797
        %799 = vmatmul.bf16.gmra.mxu0 %v650
        %v800 = vpop.f32.mrf.mxu0
        %v801 = vadd.f32 0.0, %v800
        %v802 = vpop.f32.mrf.mxu0
        %v803 = vadd.f32 0.0, %v802
        %804 = vmatmul.bf16.gmra.mxu0 %v653
        %v805 = vpop.f32.mrf.mxu0
        %v806 = vadd.f32 0.0, %v805
        %v807 = vpop.f32.mrf.mxu0
        %v808 = vadd.f32 0.0, %v807
        %809 = vmatmul.bf16.gmra.mxu0 %v656
        %v810 = vpop.f32.mrf.mxu0
        %v811 = vadd.f32 0.0, %v810
        %v812 = vpop.f32.mrf.mxu0
        %v813 = vadd.f32 0.0, %v812
        %814 = vmatmul.bf16.gmra.mxu0 %v659
        %v815 = vpop.f32.mrf.mxu0
        %v816 = vadd.f32 0.0, %v815
        %v817 = vpop.f32.mrf.mxu0
        %v818 = vadd.f32 0.0, %v817
        %819 = vmatmul.bf16.gmra.mxu0 %v662
        %v820 = vpop.f32.mrf.mxu0
        %v821 = vadd.f32 0.0, %v820
        %v822 = vpop.f32.mrf.mxu0
        %v823 = vadd.f32 0.0, %v822
        %824 = vmatmul.bf16.gmra.mxu0 %v665
        %v825 = vpop.f32.mrf.mxu0
        %v826 = vadd.f32 0.0, %v825
        %v827 = vpop.f32.mrf.mxu0
        %v828 = vadd.f32 0.0, %v827
        %829 = vmatmul.bf16.gmra.mxu0 %v668
        %v830 = vpop.f32.mrf.mxu0
        %v831 = vadd.f32 0.0, %v830
        %v832 = vpop.f32.mrf.mxu0
        %v833 = vadd.f32 0.0, %v832
        %834 = vmatmul.bf16.gmra.mxu0 %v671
        %v835 = vpop.f32.mrf.mxu0
        %v836 = vadd.f32 0.0, %v835
        %v837 = vpop.f32.mrf.mxu0
        %v838 = vadd.f32 0.0, %v837
        %839 = vmatmul.bf16.gmra.mxu0 %v674
        %v840 = vpop.f32.mrf.mxu0
        %v841 = vadd.f32 0.0, %v840
        %v842 = vpop.f32.mrf.mxu0
        %v843 = vadd.f32 0.0, %v842
        %844 = vdwg.mxu0
        %vm845 = vcmask 261120
        %846 = vst.msk [vmem:[%s180] sm:$0xff] %vm845, %v686
        %847 = vst.msk [vmem:[%s180 + $0x8] sm:$0xff] %vm845, %v688
        %848 = vst.msk [vmem:[%s180 + $0x10] sm:$0xff] %vm845, %v691
        %849 = vst.msk [vmem:[%s180 + $0x18] sm:$0xff] %vm845, %v693
        %850 = vst.msk [vmem:[%s180 + $0x20] sm:$0xff] %vm845, %v696
        %851 = vst.msk [vmem:[%s180 + $0x28] sm:$0xff] %vm845, %v698
        %852 = vst.msk [vmem:[%s180 + $0x30] sm:$0xff] %vm845, %v701
        %853 = vst.msk [vmem:[%s180 + $0x38] sm:$0xff] %vm845, %v703
        %854 = vst.msk [vmem:[%s180 + $0x40] sm:$0xff] %vm845, %v706
        %855 = vst.msk [vmem:[%s180 + $0x48] sm:$0xff] %vm845, %v708
        %856 = vst.msk [vmem:[%s180 + $0x50] sm:$0xff] %vm845, %v711
        %857 = vst.msk [vmem:[%s180 + $0x58] sm:$0xff] %vm845, %v713
        %858 = vst.msk [vmem:[%s180 + $0x60] sm:$0xff] %vm845, %v716
        %859 = vst.msk [vmem:[%s180 + $0x68] sm:$0xff] %vm845, %v718
        %860 = vst.msk [vmem:[%s180 + $0x70] sm:$0xff] %vm845, %v721
        %861 = vst.msk [vmem:[%s180 + $0x78] sm:$0xff] %vm845, %v723
        %862 = vst.msk [vmem:[%s180 + $0x80] sm:$0xff] %vm845, %v726
        %863 = vst.msk [vmem:[%s180 + $0x88] sm:$0xff] %vm845, %v728
        %864 = vst.msk [vmem:[%s180 + $0x90] sm:$0xff] %vm845, %v731
        %865 = vst.msk [vmem:[%s180 + $0x98] sm:$0xff] %vm845, %v733
        %866 = vst.msk [vmem:[%s180 + $0xa0] sm:$0xff] %vm845, %v736
        %867 = vst.msk [vmem:[%s180 + $0xa8] sm:$0xff] %vm845, %v738
        %868 = vst.msk [vmem:[%s180 + $0xb0] sm:$0xff] %vm845, %v741
        %869 = vst.msk [vmem:[%s180 + $0xb8] sm:$0xff] %vm845, %v743
        %870 = vst.msk [vmem:[%s180 + $0xc0] sm:$0xff] %vm845, %v746
        %871 = vst.msk [vmem:[%s180 + $0xc8] sm:$0xff] %vm845, %v748
        %872 = vst.msk [vmem:[%s180 + $0xd0] sm:$0xff] %vm845, %v751
        %873 = vst.msk [vmem:[%s180 + $0xd8] sm:$0xff] %vm845, %v753
        %874 = vst.msk [vmem:[%s180 + $0xe0] sm:$0xff] %vm845, %v756
        %875 = vst.msk [vmem:[%s180 + $0xe8] sm:$0xff] %vm845, %v758
        %876 = vst.msk [vmem:[%s180 + $0xf0] sm:$0xff] %vm845, %v761
        %877 = vst.msk [vmem:[%s180 + $0xf8] sm:$0xff] %vm845, %v763
        %878 = vst.msk [vmem:[%s180 + $0x100] sm:$0xff] %vm845, %v766
        %879 = vst.msk [vmem:[%s180 + $0x108] sm:$0xff] %vm845, %v768
        %880 = vst.msk [vmem:[%s180 + $0x110] sm:$0xff] %vm845, %v771
        %881 = vst.msk [vmem:[%s180 + $0x118] sm:$0xff] %vm845, %v773
        %882 = vst.msk [vmem:[%s180 + $0x120] sm:$0xff] %vm845, %v776
        %883 = vst.msk [vmem:[%s180 + $0x128] sm:$0xff] %vm845, %v778
        %884 = vst.msk [vmem:[%s180 + $0x130] sm:$0xff] %vm845, %v781
        %885 = vst.msk [vmem:[%s180 + $0x138] sm:$0xff] %vm845, %v783
        %886 = vst.msk [vmem:[%s180 + $0x140] sm:$0xff] %vm845, %v786
        %887 = vst.msk [vmem:[%s180 + $0x148] sm:$0xff] %vm845, %v788
        %888 = vst.msk [vmem:[%s180 + $0x150] sm:$0xff] %vm845, %v791
        %889 = vst.msk [vmem:[%s180 + $0x158] sm:$0xff] %vm845, %v793
        %890 = vst.msk [vmem:[%s180 + $0x160] sm:$0xff] %vm845, %v796
        %891 = vst.msk [vmem:[%s180 + $0x168] sm:$0xff] %vm845, %v798
        %892 = vst.msk [vmem:[%s180 + $0x170] sm:$0xff] %vm845, %v801
        %893 = vst.msk [vmem:[%s180 + $0x178] sm:$0xff] %vm845, %v803
        %894 = vst.msk [vmem:[%s180 + $0x180] sm:$0xff] %vm845, %v806
        %895 = vst.msk [vmem:[%s180 + $0x188] sm:$0xff] %vm845, %v808
        %896 = vst.msk [vmem:[%s180 + $0x190] sm:$0xff] %vm845, %v811
        %897 = vst.msk [vmem:[%s180 + $0x198] sm:$0xff] %vm845, %v813
        %898 = vst.msk [vmem:[%s180 + $0x1a0] sm:$0xff] %vm845, %v816
        %899 = vst.msk [vmem:[%s180 + $0x1a8] sm:$0xff] %vm845, %v818
        %900 = vst.msk [vmem:[%s180 + $0x1b0] sm:$0xff] %vm845, %v821
        %901 = vst.msk [vmem:[%s180 + $0x1b8] sm:$0xff] %vm845, %v823
        %902 = vst.msk [vmem:[%s180 + $0x1c0] sm:$0xff] %vm845, %v826
        %903 = vst.msk [vmem:[%s180 + $0x1c8] sm:$0xff] %vm845, %v828
        %904 = vst.msk [vmem:[%s180 + $0x1d0] sm:$0xff] %vm845, %v831
        %905 = vst.msk [vmem:[%s180 + $0x1d8] sm:$0xff] %vm845, %v833
        %906 = vst.msk [vmem:[%s180 + $0x1e0] sm:$0xff] %vm845, %v836
        %907 = vst.msk [vmem:[%s180 + $0x1e8] sm:$0xff] %vm845, %v838
        %908 = vst.msk [vmem:[%s180 + $0x1f0] sm:$0xff] %vm845, %v841
        %909 = vst.msk [vmem:[%s180 + $0x1f8] sm:$0xff] %vm845, %v843
        %s910 = sand.u32 %s98, 1
        %s911 = scalar_lea.sflag [#allocation3], %s910
        %s912 = sand.u32 %s98, 1
        %s913 = smul.addr %s912, 512
        %s914 = scalar_lea.vmem [#allocation2], %s913
        // Predicated region
        $region33: #{_lambda_.5} parent=31 // pred_check
          %p915 = pneg %p108
        $region34: #{_lambda_.5} parent=31 // pred_check_branch
          %917 = sbr.rel (%p915) target = $region36
        $region35: #{_lambda_.5} parent=31 // pred_region
          %s918 = smul.u32 64, %s17
          %920 = vsyncadd %s911, 0
          %s921 = smul.addr %s918, 8
          %s922 = scalar_lea.hbm %s3, %s921
          %s923 = sshll.u32 %s914, 4
          %s924 = int_to_ptr.vmem [resolvable:$true] %s923
          %s925 = sshll.u32 %s922, 4
          %s926 = int_to_ptr.hbm [resolvable:$true] %s925
          %931 = dma.vmem_to_hbm [thread:$0]  %s924, 8192, %s926, %s911, 128, 128, 8
        $region36: #{_lambda_.5} parent=31 // pred_fallthru
          _
      $region32: #{_lambda_.5} parent=5 // pred_fallthru
        _
      %p932 = scmp.le.s32.totalorder 2, %s12
      // Predicated region
      $region37: #{_lambda_.5} parent=5 // pred_check
        %p933 = pneg %p932
      $region38: #{_lambda_.5} parent=5 // pred_check_branch
        %935 = sbr.rel (%p933) target = $region40
      $region39: #{_lambda_.5} parent=5 // pred_region
        %s936 = ssub.s32 %s12, 2
        // Predicated region
        $region41: #{_lambda_.5} parent=39 // pred_check
          %p937 = pneg %p114
        $region42: #{_lambda_.5} parent=39 // pred_check_branch
          %939 = sbr.rel (%p937) target = $region44
        $region43: #{_lambda_.5} parent=39 // pred_region
          %s940 = sand.u32 %s99, 1
          %s941 = scalar_lea.sflag [#allocation3], %s940
          %s942 = sand.u32 %s99, 1
          %s943 = smul.addr %s942, 512
          %s944 = scalar_lea.vmem [#allocation2], %s943
          %946 = dma.done %s941, 8192
        $region44: #{_lambda_.5} parent=39 // pred_fallthru
          _
      $region40: #{_lambda_.5} parent=5 // pred_fallthru
        _
    $region6: #{_lambda_.5} parent=1 // loop_footer
      %s16 = sadd.s32 1, %s12
    $region7: #{_lambda_.5} parent=1 // loop_footer_branch
      %11 = sbr.rel target = $region3
    $region8: #{_lambda_.5} parent=1 // loop_exit
      _
    %947 = vsyncpa [#allocation3], 1
    %s948 = scalar_lea.sflag [#allocation3], 1
    %949 = vsyncpa %s948, 1

// kernel: _lambda_.3
$region0: #{_lambda_.3}
  #allocation0 [shape = 'u32[]', space=smem, size = 0x4, offset = 0x4, fixed_abs, tag = 'smem constant byte address 0x4 - core index']
  #allocation1 [shape = 'u32[72,128]{1,0:T(1,128)}', space=vmem, size = 0x9000, scoped, tag = 'internal scratch']
  %s0 = inlined_call_operand.hbm [shape: f32[1024,32], index: 0, kind: input, shape index: {}]
  %s1 = inlined_call_operand.vmem [shape: f32[1,32], index: 1, kind: input, shape index: {}]
  %s2 = inlined_call_operand.vmem [shape: f32[1,32], index: 2, kind: input, shape index: {}]
  %s3 = inlined_call_operand.hbm [shape: bf16[32,128], index: 3, kind: input, shape index: {}]
  %s4 = inlined_call_operand.vmem [shape: bf16[1024,128], index: 4, kind: output, shape index: {}]
  %s5 = sld [smem:[#allocation0]]
  $region57: #{_lambda_.3} parent=0
    _
  %s7 = ssub.s32 1, %s5
  %s8 = scalar_select 0, %s7, %s5
  $region1: #{_lambda_.3} parent=0
    #allocation2 [shape = 'u8[524288]{0}', space=vmem, size = 0x80000, scoped, tag = 'input window, operand 0']
    #allocation3 [shape = 's32[2]{0}', space=sflag, size = 0x8, scoped, tag = 'scoped memory for _lambda_.3']
    #allocation4 [shape = 'u8[8192]{0}', space=vmem, size = 0x2000, scoped, tag = 'input window, operand 3, single buffered']
    #allocation5 [shape = 's32[1]{0}', space=sflag, size = 0x4, scoped, tag = 'scoped memory for _lambda_.3']
    %9 = vsyncpa [#allocation3], 0
    %s10 = scalar_lea.sflag [#allocation3], 1
    %11 = vsyncpa %s10, 0
    %12 = vsyncpa [#allocation5], 0
    loop: start=0, step=1, limit=4
    $region2: #{_lambda_.3} parent=1 // loop_pre_header
      _
    $region3: #{_lambda_.3} parent=1 // loop_header
      %s14 = sphi 0, %s18
      %p15 = scmp.ge.s32.totalorder %s14, 4
      %s24 = sphi 0, %s26
      %s27 = sphi 0, %s24
      %s28 = sphi 0, %s27
      %s44 = sphi 0, %s28
      %s48 = sphi 0, %s48
      %s50 = sphi 0, %s48
      %s51 = sphi 0, %s50
      %s65 = sphi 0, %s51
      %s69 = sphi 0, %s69
      %s71 = sphi 0, %s69
      %s72 = sphi 0, %s71
      %s86 = sphi 0, %s72
      %s90 = sphi 0, %s90
      %s92 = sphi 0, %s90
      %s93 = sphi 0, %s92
      %s107 = sphi 0, %s93
      %s113 = sphi 0, %s115
      %s116 = sphi 0, %s113
      %s117 = sphi 0, %s116
      %s133 = sphi 0, %s117
    $region4: #{_lambda_.3} parent=1 // loop_header_branch
      %17 = sbr.rel (%p15) target = $region8
    $region5: #{_lambda_.3} parent=1 // loop_body
      %s19 = ssub.s32 %s14, 1
      %s20 = ssub.s32 %s14, 2
      %s21 = sadd.s32 %s14, 1
      %s22 = ssub.s32 %s14, %s21
      %p23 = scmp.eq.s32.totalorder %s22, 0
      %s25 = sadd.s32 %s24, 1
      %s26 = scalar_select %p23, %s24, %s25
      %p29 = pneg %p23
      %p30 = scmp.eq.s32.totalorder %s14, 1
      %p31 = por %p29, %p30
      %p32 = scmp.ne.s32.totalorder %s24, %s27
      %p33 = scmp.eq.s32.totalorder %s14, 0
      %p34 = por %p32, %p33
      %p35 = scmp.ne.s32.totalorder %s24, %s27
      %p36 = scmp.eq.s32.totalorder %s19, 1
      %p37 = por %p35, %p36
      %p38 = scmp.ne.s32.totalorder %s27, %s28
      %p39 = scmp.eq.s32.totalorder %s19, 0
      %p40 = por %p38, %p39
      %p41 = scmp.ne.s32.totalorder %s27, %s28
      %p42 = scmp.eq.s32.totalorder %s20, 1
      %p43 = por %p41, %p42
      %p45 = scmp.ne.s32.totalorder %s28, %s44
      %p46 = scmp.eq.s32.totalorder %s20, 0
      %p47 = por %p45, %p46
      %s49 = sadd.s32 %s48, 1
      %p52 = scmp.eq.s32.totalorder %s14, 1
      %p53 = scmp.ne.s32.totalorder %s48, %s50
      %p54 = scmp.eq.s32.totalorder %s14, 0
      %p55 = por %p53, %p54
      %p56 = scmp.ne.s32.totalorder %s48, %s50
      %p57 = scmp.eq.s32.totalorder %s19, 1
      %p58 = por %p56, %p57
      %p59 = scmp.ne.s32.totalorder %s50, %s51
      %p60 = scmp.eq.s32.totalorder %s19, 0
      %p61 = por %p59, %p60
      %p62 = scmp.ne.s32.totalorder %s50, %s51
      %p63 = scmp.eq.s32.totalorder %s20, 1
      %p64 = por %p62, %p63
      %p66 = scmp.ne.s32.totalorder %s51, %s65
      %p67 = scmp.eq.s32.totalorder %s20, 0
      %p68 = por %p66, %p67
      %s70 = sadd.s32 %s69, 1
      %p73 = scmp.eq.s32.totalorder %s14, 1
      %p74 = scmp.ne.s32.totalorder %s69, %s71
      %p75 = scmp.eq.s32.totalorder %s14, 0
      %p76 = por %p74, %p75
      %p77 = scmp.ne.s32.totalorder %s69, %s71
      %p78 = scmp.eq.s32.totalorder %s19, 1
      %p79 = por %p77, %p78
      %p80 = scmp.ne.s32.totalorder %s71, %s72
      %p81 = scmp.eq.s32.totalorder %s19, 0
      %p82 = por %p80, %p81
      %p83 = scmp.ne.s32.totalorder %s71, %s72
      %p84 = scmp.eq.s32.totalorder %s20, 1
      %p85 = por %p83, %p84
      %p87 = scmp.ne.s32.totalorder %s72, %s86
      %p88 = scmp.eq.s32.totalorder %s20, 0
      %p89 = por %p87, %p88
      %s91 = sadd.s32 %s90, 1
      %p94 = scmp.eq.s32.totalorder %s14, 1
      %p95 = scmp.ne.s32.totalorder %s90, %s92
      %p96 = scmp.eq.s32.totalorder %s14, 0
      %p97 = por %p95, %p96
      %p98 = scmp.ne.s32.totalorder %s90, %s92
      %p99 = scmp.eq.s32.totalorder %s19, 1
      %p100 = por %p98, %p99
      %p101 = scmp.ne.s32.totalorder %s92, %s93
      %p102 = scmp.eq.s32.totalorder %s19, 0
      %p103 = por %p101, %p102
      %p104 = scmp.ne.s32.totalorder %s92, %s93
      %p105 = scmp.eq.s32.totalorder %s20, 1
      %p106 = por %p104, %p105
      %p108 = scmp.ne.s32.totalorder %s93, %s107
      %p109 = scmp.eq.s32.totalorder %s20, 0
      %p110 = por %p108, %p109
      %s111 = ssub.s32 %s14, %s21
      %p112 = scmp.eq.s32.totalorder %s111, 0
      %s114 = sadd.s32 %s113, 1
      %s115 = scalar_select %p112, %s113, %s114
      %p118 = pneg %p112
      %p119 = scmp.eq.s32.totalorder %s14, 1
      %p120 = por %p118, %p119
      %p121 = scmp.ne.s32.totalorder %s113, %s116
      %p122 = scmp.eq.s32.totalorder %s14, 0
      %p123 = por %p121, %p122
      %p124 = scmp.ne.s32.totalorder %s113, %s116
      %p125 = scmp.eq.s32.totalorder %s19, 1
      %p126 = por %p124, %p125
      %p127 = scmp.ne.s32.totalorder %s116, %s117
      %p128 = scmp.eq.s32.totalorder %s19, 0
      %p129 = por %p127, %p128
      %p130 = scmp.ne.s32.totalorder %s116, %s117
      %p131 = scmp.eq.s32.totalorder %s20, 1
      %p132 = por %p130, %p131
      %p134 = scmp.ne.s32.totalorder %s117, %s133
      %p135 = scmp.eq.s32.totalorder %s20, 0
      %p136 = por %p134, %p135
      %p137 = scmp.le.s32.totalorder 1, %s14
      %p138 = scmp.lt.s32.totalorder %s14, 3
      %p139 = pnand %p137, %p138
      %p140 = pneg %p139
      // Predicated region
      $region9: #{_lambda_.3} parent=5 // pred_check
        _
      $region10: #{_lambda_.3} parent=5 // pred_check_branch
        %142 = sbr.rel (%p139) target = $region12
      $region11: #{_lambda_.3} parent=5 // pred_region
        %s143 = ssub.s32 %s14, 1
        // Predicated region
        $region13: #{_lambda_.3} parent=11 // pred_check
          %p144 = pneg %p61
        $region14: #{_lambda_.3} parent=11 // pred_check_branch
          %146 = sbr.rel (%p144) target = $region16
        $region15: #{_lambda_.3} parent=11 // pred_region
          _
        $region16: #{_lambda_.3} parent=11 // pred_fallthru
          _
        // Predicated region
        $region17: #{_lambda_.3} parent=11 // pred_check
          %p147 = pneg %p82
        $region18: #{_lambda_.3} parent=11 // pred_check_branch
          %149 = sbr.rel (%p147) target = $region20
        $region19: #{_lambda_.3} parent=11 // pred_region
          _
        $region20: #{_lambda_.3} parent=11 // pred_fallthru
          _
        // Predicated region
        $region21: #{_lambda_.3} parent=11 // pred_check
          %p150 = pneg %p103
        $region22: #{_lambda_.3} parent=11 // pred_check_branch
          %152 = sbr.rel (%p150) target = $region24
        $region23: #{_lambda_.3} parent=11 // pred_region
          %154 = vsyncadd [#allocation5], 0
          %s155 = sshll.u32 %s3, 4
          %s156 = int_to_ptr.hbm [resolvable:$true] %s155
          %s157 = sshll.u32 [#allocation4], 4
          %s158 = int_to_ptr.vmem [resolvable:$true] %s157
          %163 = dma.hbm_to_vmem [thread:$0]  %s156, 256, %s158, [#allocation5], 64, 64, 4
        $region24: #{_lambda_.3} parent=11 // pred_fallthru
          _
      $region12: #{_lambda_.3} parent=5 // pred_fallthru
        _
      %p164 = scmp.lt.s32.totalorder %s14, 2
      // Predicated region
      $region25: #{_lambda_.3} parent=5 // pred_check
        %p165 = pneg %p164
      $region26: #{_lambda_.3} parent=5 // pred_check_branch
        %167 = sbr.rel (%p165) target = $region28
      $region27: #{_lambda_.3} parent=5 // pred_region
        // Predicated region
        $region29: #{_lambda_.3} parent=27 // pred_check
          %p168 = pneg %p34
        $region30: #{_lambda_.3} parent=27 // pred_check_branch
          %170 = sbr.rel (%p168) target = $region32
        $region31: #{_lambda_.3} parent=27 // pred_region
          %s171 = sand.u32 %s24, 1
          %s172 = scalar_lea.sflag [#allocation3], %s171
          %s173 = sand.u32 %s24, 1
          %s174 = smul.addr %s173, 512
          %s175 = scalar_lea.vmem [#allocation2], %s174
          %s176 = smul.u32 64, %s14
          %178 = vsyncadd %s172, 0
          %s179 = smul.addr %s176, 8
          %s180 = scalar_lea.hbm %s0, %s179
          %s181 = sshll.u32 %s180, 4
          %s182 = int_to_ptr.hbm [resolvable:$true] %s181
          %s183 = sshll.u32 %s175, 4
          %s184 = int_to_ptr.vmem [resolvable:$true] %s183
          %189 = dma.hbm_to_vmem [thread:$0]  %s182, 8192, %s184, %s172, 128, 128, 8
        $region32: #{_lambda_.3} parent=27 // pred_fallthru
          _
      $region28: #{_lambda_.3} parent=5 // pred_fallthru
        _
      %p190 = scmp.le.s32.totalorder 1, %s14
      %p191 = scmp.lt.s32.totalorder %s14, 3
      %p192 = pnand %p190, %p191
      %p193 = pneg %p192
      // Predicated region
      $region33: #{_lambda_.3} parent=5 // pred_check
        _
      $region34: #{_lambda_.3} parent=5 // pred_check_branch
        %195 = sbr.rel (%p192) target = $region36
      $region35: #{_lambda_.3} parent=5 // pred_region
        %s196 = ssub.s32 %s14, 1
        %s197 = sand.u32 %s27, 1
        %s198 = scalar_lea.sflag [#allocation3], %s197
        %s199 = sand.u32 %s27, 1
        %s200 = smul.addr %s199, 512
        %s201 = scalar_lea.vmem [#allocation2], %s200
        // Predicated region
        $region37: #{_lambda_.3} parent=35 // pred_check
          %p202 = pneg %p40
        $region38: #{_lambda_.3} parent=35 // pred_check_branch
          %204 = sbr.rel (%p202) target = $region40
        $region39: #{_lambda_.3} parent=35 // pred_region
          %206 = dma.done %s198, 8192
        $region40: #{_lambda_.3} parent=35 // pred_fallthru
          _
        // Predicated region
        $region41: #{_lambda_.3} parent=35 // pred_check
          %p207 = pneg %p103
        $region42: #{_lambda_.3} parent=35 // pred_check_branch
          %209 = sbr.rel (%p207) target = $region44
        $region43: #{_lambda_.3} parent=35 // pred_region
          %211 = dma.done [#allocation5], 256
        $region44: #{_lambda_.3} parent=35 // pred_fallthru
          _
        %s212 = sand.u32 %s27, 1
        %s213 = scalar_lea.sflag [#allocation3], %s212
        %s214 = sand.u32 %s27, 1
        %s215 = smul.addr %s214, 512
        %s216 = scalar_lea.vmem [#allocation2], %s215
        %p217 = pneg %p40
        %p218 = pneg %p37
        %p219 = pneg %p61
        %p220 = pneg %p58
        %p221 = pneg %p82
        %p222 = pneg %p79
        %p223 = pneg %p103
        %p224 = pneg %p100
        %p225 = pneg %p129
        %p226 = pneg %p126
        %s227 = smul.u32 64, %s19
        %p228 = scmp.lt.s32.totalorder %s227, 127
        %s229 = scalar_select %p228, %s227, 127
        %s230 = smul.addr %s229, 4
        %s231 = scalar_lea.vmem %s4, %s230
        %s232 = smul.u32 64, %s19
        %s233 = smul.u32 64, %s19
        %p234 = scmp.lt.s32.totalorder %s233, 127
        %s235 = scalar_select %p234, %s233, 127
        %s236 = smul.addr %s235, 4
        %s237 = scalar_lea.vmem %s4, %s236
        %s238 = smul.u32 64, %s19
        %v240 = vld [vmem:[%s201] sm:$0xff]
        %v241 = vld [vmem:[%s201 + $0x8] sm:$0xff]
        %v242 = vld [vmem:[%s201 + $0x10] sm:$0xff]
        %v243 = vld [vmem:[%s201 + $0x18] sm:$0xff]
        %v244 = vld [vmem:[%s201 + $0x20] sm:$0xff]
        %v245 = vld [vmem:[%s201 + $0x28] sm:$0xff]
        %v246 = vld [vmem:[%s201 + $0x30] sm:$0xff]
        %v247 = vld [vmem:[%s201 + $0x38] sm:$0xff]
        %v248 = vld [vmem:[%s201 + $0x40] sm:$0xff]
        %v249 = vld [vmem:[%s201 + $0x48] sm:$0xff]
        %v250 = vld [vmem:[%s201 + $0x50] sm:$0xff]
        %v251 = vld [vmem:[%s201 + $0x58] sm:$0xff]
        %v252 = vld [vmem:[%s201 + $0x60] sm:$0xff]
        %v253 = vld [vmem:[%s201 + $0x68] sm:$0xff]
        %v254 = vld [vmem:[%s201 + $0x70] sm:$0xff]
        %v255 = vld [vmem:[%s201 + $0x78] sm:$0xff]
        %v256 = vld [vmem:[%s201 + $0x80] sm:$0xff]
        %v257 = vld [vmem:[%s201 + $0x88] sm:$0xff]
        %v258 = vld [vmem:[%s201 + $0x90] sm:$0xff]
        %v259 = vld [vmem:[%s201 + $0x98] sm:$0xff]
        %v260 = vld [vmem:[%s201 + $0xa0] sm:$0xff]
        %v261 = vld [vmem:[%s201 + $0xa8] sm:$0xff]
        %v262 = vld [vmem:[%s201 + $0xb0] sm:$0xff]
        %v263 = vld [vmem:[%s201 + $0xb8] sm:$0xff]
        %v264 = vld [vmem:[%s201 + $0xc0] sm:$0xff]
        %v265 = vld [vmem:[%s201 + $0xc8] sm:$0xff]
        %v266 = vld [vmem:[%s201 + $0xd0] sm:$0xff]
        %v267 = vld [vmem:[%s201 + $0xd8] sm:$0xff]
        %v268 = vld [vmem:[%s201 + $0xe0] sm:$0xff]
        %v269 = vld [vmem:[%s201 + $0xe8] sm:$0xff]
        %v270 = vld [vmem:[%s201 + $0xf0] sm:$0xff]
        %v271 = vld [vmem:[%s201 + $0xf8] sm:$0xff]
        %v272 = vld [vmem:[%s201 + $0x100] sm:$0xff]
        %v273 = vld [vmem:[%s201 + $0x108] sm:$0xff]
        %v274 = vld [vmem:[%s201 + $0x110] sm:$0xff]
        %v275 = vld [vmem:[%s201 + $0x118] sm:$0xff]
        %v276 = vld [vmem:[%s201 + $0x120] sm:$0xff]
        %v277 = vld [vmem:[%s201 + $0x128] sm:$0xff]
        %v278 = vld [vmem:[%s201 + $0x130] sm:$0xff]
        %v279 = vld [vmem:[%s201 + $0x138] sm:$0xff]
        %v280 = vld [vmem:[%s201 + $0x140] sm:$0xff]
        %v281 = vld [vmem:[%s201 + $0x148] sm:$0xff]
        %v282 = vld [vmem:[%s201 + $0x150] sm:$0xff]
        %v283 = vld [vmem:[%s201 + $0x158] sm:$0xff]
        %v284 = vld [vmem:[%s201 + $0x160] sm:$0xff]
        %v285 = vld [vmem:[%s201 + $0x168] sm:$0xff]
        %v286 = vld [vmem:[%s201 + $0x170] sm:$0xff]
        %v287 = vld [vmem:[%s201 + $0x178] sm:$0xff]
        %v288 = vld [vmem:[%s201 + $0x180] sm:$0xff]
        %v289 = vld [vmem:[%s201 + $0x188] sm:$0xff]
        %v290 = vld [vmem:[%s201 + $0x190] sm:$0xff]
        %v291 = vld [vmem:[%s201 + $0x198] sm:$0xff]
        %v292 = vld [vmem:[%s201 + $0x1a0] sm:$0xff]
        %v293 = vld [vmem:[%s201 + $0x1a8] sm:$0xff]
        %v294 = vld [vmem:[%s201 + $0x1b0] sm:$0xff]
        %v295 = vld [vmem:[%s201 + $0x1b8] sm:$0xff]
        %v296 = vld [vmem:[%s201 + $0x1c0] sm:$0xff]
        %v297 = vld [vmem:[%s201 + $0x1c8] sm:$0xff]
        %v298 = vld [vmem:[%s201 + $0x1d0] sm:$0xff]
        %v299 = vld [vmem:[%s201 + $0x1d8] sm:$0xff]
        %v300 = vld [vmem:[%s201 + $0x1e0] sm:$0xff]
        %v301 = vld [vmem:[%s201 + $0x1e8] sm:$0xff]
        %v302 = vld [vmem:[%s201 + $0x1f0] sm:$0xff]
        %v303 = vld [vmem:[%s201 + $0x1f8] sm:$0xff]
        %vm304 = vcmask 261120
        %v305 = vsel %vm304, %v240, 0.0
        %306 = vadd.xlane.f32.xlu0 %v305
        %v307 = vpop.xlane.xlu0 %306
        %v308 = vsel %vm304, %v241, 0.0
        %309 = vadd.xlane.f32.xlu0 %v308
        %v310 = vpop.xlane.xlu0 %309
        %v311 = vsel %vm304, %v242, 0.0
        %312 = vadd.xlane.f32.xlu0 %v311
        %v313 = vpop.xlane.xlu0 %312
        %v314 = vsel %vm304, %v243, 0.0
        %315 = vadd.xlane.f32.xlu0 %v314
        %v316 = vpop.xlane.xlu0 %315
        %v317 = vsel %vm304, %v244, 0.0
        %318 = vadd.xlane.f32.xlu0 %v317
        %v319 = vpop.xlane.xlu0 %318
        %v320 = vsel %vm304, %v245, 0.0
        %321 = vadd.xlane.f32.xlu0 %v320
        %v322 = vpop.xlane.xlu0 %321
        %v323 = vsel %vm304, %v246, 0.0
        %324 = vadd.xlane.f32.xlu0 %v323
        %v325 = vpop.xlane.xlu0 %324
        %v326 = vsel %vm304, %v247, 0.0
        %327 = vadd.xlane.f32.xlu0 %v326
        %v328 = vpop.xlane.xlu0 %327
        %v329 = vsel %vm304, %v248, 0.0
        %330 = vadd.xlane.f32.xlu0 %v329
        %v331 = vpop.xlane.xlu0 %330
        %v332 = vsel %vm304, %v249, 0.0
        %333 = vadd.xlane.f32.xlu0 %v332
        %v334 = vpop.xlane.xlu0 %333
        %v335 = vsel %vm304, %v250, 0.0
        %336 = vadd.xlane.f32.xlu0 %v335
        %v337 = vpop.xlane.xlu0 %336
        %v338 = vsel %vm304, %v251, 0.0
        %339 = vadd.xlane.f32.xlu0 %v338
        %v340 = vpop.xlane.xlu0 %339
        %v341 = vsel %vm304, %v252, 0.0
        %342 = vadd.xlane.f32.xlu0 %v341
        %v343 = vpop.xlane.xlu0 %342
        %v344 = vsel %vm304, %v253, 0.0
        %345 = vadd.xlane.f32.xlu0 %v344
        %v346 = vpop.xlane.xlu0 %345
        %v347 = vsel %vm304, %v254, 0.0
        %348 = vadd.xlane.f32.xlu0 %v347
        %v349 = vpop.xlane.xlu0 %348
        %v350 = vsel %vm304, %v255, 0.0
        %351 = vadd.xlane.f32.xlu0 %v350
        %v352 = vpop.xlane.xlu0 %351
        %v353 = vsel %vm304, %v256, 0.0
        %354 = vadd.xlane.f32.xlu0 %v353
        %v355 = vpop.xlane.xlu0 %354
        %v356 = vsel %vm304, %v257, 0.0
        %357 = vadd.xlane.f32.xlu0 %v356
        %v358 = vpop.xlane.xlu0 %357
        %v359 = vsel %vm304, %v258, 0.0
        %360 = vadd.xlane.f32.xlu0 %v359
        %v361 = vpop.xlane.xlu0 %360
        %v362 = vsel %vm304, %v259, 0.0
        %363 = vadd.xlane.f32.xlu0 %v362
        %v364 = vpop.xlane.xlu0 %363
        %v365 = vsel %vm304, %v260, 0.0
        %366 = vadd.xlane.f32.xlu0 %v365
        %v367 = vpop.xlane.xlu0 %366
        %v368 = vsel %vm304, %v261, 0.0
        %369 = vadd.xlane.f32.xlu0 %v368
        %v370 = vpop.xlane.xlu0 %369
        %v371 = vsel %vm304, %v262, 0.0
        %372 = vadd.xlane.f32.xlu0 %v371
        %v373 = vpop.xlane.xlu0 %372
        %v374 = vsel %vm304, %v263, 0.0
        %375 = vadd.xlane.f32.xlu0 %v374
        %v376 = vpop.xlane.xlu0 %375
        %v377 = vsel %vm304, %v264, 0.0
        %378 = vadd.xlane.f32.xlu0 %v377
        %v379 = vpop.xlane.xlu0 %378
        %v380 = vsel %vm304, %v265, 0.0
        %381 = vadd.xlane.f32.xlu0 %v380
        %v382 = vpop.xlane.xlu0 %381
        %v383 = vsel %vm304, %v266, 0.0
        %384 = vadd.xlane.f32.xlu0 %v383
        %v385 = vpop.xlane.xlu0 %384
        %v386 = vsel %vm304, %v267, 0.0
        %387 = vadd.xlane.f32.xlu0 %v386
        %v388 = vpop.xlane.xlu0 %387
        %v389 = vsel %vm304, %v268, 0.0
        %390 = vadd.xlane.f32.xlu0 %v389
        %v391 = vpop.xlane.xlu0 %390
        %v392 = vsel %vm304, %v269, 0.0
        %393 = vadd.xlane.f32.xlu0 %v392
        %v394 = vpop.xlane.xlu0 %393
        %v395 = vsel %vm304, %v270, 0.0
        %396 = vadd.xlane.f32.xlu0 %v395
        %v397 = vpop.xlane.xlu0 %396
        %v398 = vsel %vm304, %v271, 0.0
        %399 = vadd.xlane.f32.xlu0 %v398
        %v400 = vpop.xlane.xlu0 %399
        %v401 = vsel %vm304, %v272, 0.0
        %402 = vadd.xlane.f32.xlu0 %v401
        %v403 = vpop.xlane.xlu0 %402
        %v404 = vsel %vm304, %v273, 0.0
        %405 = vadd.xlane.f32.xlu0 %v404
        %v406 = vpop.xlane.xlu0 %405
        %v407 = vsel %vm304, %v274, 0.0
        %408 = vadd.xlane.f32.xlu0 %v407
        %v409 = vpop.xlane.xlu0 %408
        %v410 = vsel %vm304, %v275, 0.0
        %411 = vadd.xlane.f32.xlu0 %v410
        %v412 = vpop.xlane.xlu0 %411
        %v413 = vsel %vm304, %v276, 0.0
        %414 = vadd.xlane.f32.xlu0 %v413
        %v415 = vpop.xlane.xlu0 %414
        %v416 = vsel %vm304, %v277, 0.0
        %417 = vadd.xlane.f32.xlu0 %v416
        %v418 = vpop.xlane.xlu0 %417
        %v419 = vsel %vm304, %v278, 0.0
        %420 = vadd.xlane.f32.xlu0 %v419
        %v421 = vpop.xlane.xlu0 %420
        %v422 = vsel %vm304, %v279, 0.0
        %423 = vadd.xlane.f32.xlu0 %v422
        %v424 = vpop.xlane.xlu0 %423
        %v425 = vsel %vm304, %v280, 0.0
        %426 = vadd.xlane.f32.xlu0 %v425
        %v427 = vpop.xlane.xlu0 %426
        %v428 = vsel %vm304, %v281, 0.0
        %429 = vadd.xlane.f32.xlu0 %v428
        %v430 = vpop.xlane.xlu0 %429
        %v431 = vsel %vm304, %v282, 0.0
        %432 = vadd.xlane.f32.xlu0 %v431
        %v433 = vpop.xlane.xlu0 %432
        %v434 = vsel %vm304, %v283, 0.0
        %435 = vadd.xlane.f32.xlu0 %v434
        %v436 = vpop.xlane.xlu0 %435
        %v437 = vsel %vm304, %v284, 0.0
        %438 = vadd.xlane.f32.xlu0 %v437
        %v439 = vpop.xlane.xlu0 %438
        %v440 = vsel %vm304, %v285, 0.0
        %441 = vadd.xlane.f32.xlu0 %v440
        %v442 = vpop.xlane.xlu0 %441
        %v443 = vsel %vm304, %v286, 0.0
        %444 = vadd.xlane.f32.xlu0 %v443
        %v445 = vpop.xlane.xlu0 %444
        %v446 = vsel %vm304, %v287, 0.0
        %447 = vadd.xlane.f32.xlu0 %v446
        %v448 = vpop.xlane.xlu0 %447
        %v449 = vsel %vm304, %v288, 0.0
        %450 = vadd.xlane.f32.xlu0 %v449
        %v451 = vpop.xlane.xlu0 %450
        %v452 = vsel %vm304, %v289, 0.0
        %453 = vadd.xlane.f32.xlu0 %v452
        %v454 = vpop.xlane.xlu0 %453
        %v455 = vsel %vm304, %v290, 0.0
        %456 = vadd.xlane.f32.xlu0 %v455
        %v457 = vpop.xlane.xlu0 %456
        %v458 = vsel %vm304, %v291, 0.0
        %459 = vadd.xlane.f32.xlu0 %v458
        %v460 = vpop.xlane.xlu0 %459
        %v461 = vsel %vm304, %v292, 0.0
        %462 = vadd.xlane.f32.xlu0 %v461
        %v463 = vpop.xlane.xlu0 %462
        %v464 = vsel %vm304, %v293, 0.0
        %465 = vadd.xlane.f32.xlu0 %v464
        %v466 = vpop.xlane.xlu0 %465
        %v467 = vsel %vm304, %v294, 0.0
        %468 = vadd.xlane.f32.xlu0 %v467
        %v469 = vpop.xlane.xlu0 %468
        %v470 = vsel %vm304, %v295, 0.0
        %471 = vadd.xlane.f32.xlu0 %v470
        %v472 = vpop.xlane.xlu0 %471
        %v473 = vsel %vm304, %v296, 0.0
        %474 = vadd.xlane.f32.xlu0 %v473
        %v475 = vpop.xlane.xlu0 %474
        %v476 = vsel %vm304, %v297, 0.0
        %477 = vadd.xlane.f32.xlu0 %v476
        %v478 = vpop.xlane.xlu0 %477
        %v479 = vsel %vm304, %v298, 0.0
        %480 = vadd.xlane.f32.xlu0 %v479
        %v481 = vpop.xlane.xlu0 %480
        %v482 = vsel %vm304, %v299, 0.0
        %483 = vadd.xlane.f32.xlu0 %v482
        %v484 = vpop.xlane.xlu0 %483
        %v485 = vsel %vm304, %v300, 0.0
        %486 = vadd.xlane.f32.xlu0 %v485
        %v487 = vpop.xlane.xlu0 %486
        %v488 = vsel %vm304, %v301, 0.0
        %489 = vadd.xlane.f32.xlu0 %v488
        %v490 = vpop.xlane.xlu0 %489
        %v491 = vsel %vm304, %v302, 0.0
        %492 = vadd.xlane.f32.xlu0 %v491
        %v493 = vpop.xlane.xlu0 %492
        %v494 = vsel %vm304, %v303, 0.0
        %495 = vadd.xlane.f32.xlu0 %v494
        %v496 = vpop.xlane.xlu0 %495
        %v497 = vrcp.pop 32.0
        %v498 = vmul.f32 32.0, %v497
        %v499 = vsub.f32 1.0, %v498
        %v500 = vmul.f32 %v497, %v499
        %v501 = vadd.f32 %v497, %v500
        %vm502 = vweird.f32 %v497
        %v503 = vsel %vm502, %v497, %v501
        %v504 = vmul.f32 %v307, %v503
        %v505 = vmul.f32 %v310, %v503
        %v506 = vmul.f32 %v313, %v503
        %v507 = vmul.f32 %v316, %v503
        %v508 = vmul.f32 %v319, %v503
        %v509 = vmul.f32 %v322, %v503
        %v510 = vmul.f32 %v325, %v503
        %v511 = vmul.f32 %v328, %v503
        %v512 = vmul.f32 %v331, %v503
        %v513 = vmul.f32 %v334, %v503
        %v514 = vmul.f32 %v337, %v503
        %v515 = vmul.f32 %v340, %v503
        %v516 = vmul.f32 %v343, %v503
        %v517 = vmul.f32 %v346, %v503
        %v518 = vmul.f32 %v349, %v503
        %v519 = vmul.f32 %v352, %v503
        %v520 = vmul.f32 %v355, %v503
        %v521 = vmul.f32 %v358, %v503
        %v522 = vmul.f32 %v361, %v503
        %v523 = vmul.f32 %v364, %v503
        %v524 = vmul.f32 %v367, %v503
        %v525 = vmul.f32 %v370, %v503
        %v526 = vmul.f32 %v373, %v503
        %v527 = vmul.f32 %v376, %v503
        %v528 = vmul.f32 %v379, %v503
        %v529 = vmul.f32 %v382, %v503
        %v530 = vmul.f32 %v385, %v503
        %v531 = vmul.f32 %v388, %v503
        %v532 = vmul.f32 %v391, %v503
        %v533 = vmul.f32 %v394, %v503
        %v534 = vmul.f32 %v397, %v503
        %v535 = vmul.f32 %v400, %v503
        %v536 = vmul.f32 %v403, %v503
        %v537 = vmul.f32 %v406, %v503
        %v538 = vmul.f32 %v409, %v503
        %v539 = vmul.f32 %v412, %v503
        %v540 = vmul.f32 %v415, %v503
        %v541 = vmul.f32 %v418, %v503
        %v542 = vmul.f32 %v421, %v503
        %v543 = vmul.f32 %v424, %v503
        %v544 = vmul.f32 %v427, %v503
        %v545 = vmul.f32 %v430, %v503
        %v546 = vmul.f32 %v433, %v503
        %v547 = vmul.f32 %v436, %v503
        %v548 = vmul.f32 %v439, %v503
        %v549 = vmul.f32 %v442, %v503
        %v550 = vmul.f32 %v445, %v503
        %v551 = vmul.f32 %v448, %v503
        %v552 = vmul.f32 %v451, %v503
        %v553 = vmul.f32 %v454, %v503
        %v554 = vmul.f32 %v457, %v503
        %v555 = vmul.f32 %v460, %v503
        %v556 = vmul.f32 %v463, %v503
        %v557 = vmul.f32 %v466, %v503
        %v558 = vmul.f32 %v469, %v503
        %v559 = vmul.f32 %v472, %v503
        %v560 = vmul.f32 %v475, %v503
        %v561 = vmul.f32 %v478, %v503
        %v562 = vmul.f32 %v481, %v503
        %v563 = vmul.f32 %v484, %v503
        %v564 = vmul.f32 %v487, %v503
        %v565 = vmul.f32 %v490, %v503
        %v566 = vmul.f32 %v493, %v503
        %v567 = vmul.f32 %v496, %v503
        %v568 = vsub.f32 %v240, %v504
        %v569 = vsub.f32 %v241, %v505
        %v570 = vsub.f32 %v242, %v506
        %v571 = vsub.f32 %v243, %v507
        %v572 = vsub.f32 %v244, %v508
        %v573 = vsub.f32 %v245, %v509
        %v574 = vsub.f32 %v246, %v510
        %v575 = vsub.f32 %v247, %v511
        %v576 = vsub.f32 %v248, %v512
        %v577 = vsub.f32 %v249, %v513
        %v578 = vsub.f32 %v250, %v514
        %v579 = vsub.f32 %v251, %v515
        %v580 = vsub.f32 %v252, %v516
        %v581 = vsub.f32 %v253, %v517
        %v582 = vsub.f32 %v254, %v518
        %v583 = vsub.f32 %v255, %v519
        %v584 = vsub.f32 %v256, %v520
        %v585 = vsub.f32 %v257, %v521
        %v586 = vsub.f32 %v258, %v522
        %v587 = vsub.f32 %v259, %v523
        %v588 = vsub.f32 %v260, %v524
        %v589 = vsub.f32 %v261, %v525
        %v590 = vsub.f32 %v262, %v526
        %v591 = vsub.f32 %v263, %v527
        %v592 = vsub.f32 %v264, %v528
        %v593 = vsub.f32 %v265, %v529
        %v594 = vsub.f32 %v266, %v530
        %v595 = vsub.f32 %v267, %v531
        %v596 = vsub.f32 %v268, %v532
        %v597 = vsub.f32 %v269, %v533
        %v598 = vsub.f32 %v270, %v534
        %v599 = vsub.f32 %v271, %v535
        %v600 = vsub.f32 %v272, %v536
        %v601 = vsub.f32 %v273, %v537
        %v602 = vsub.f32 %v274, %v538
        %v603 = vsub.f32 %v275, %v539
        %v604 = vsub.f32 %v276, %v540
        %v605 = vsub.f32 %v277, %v541
        %v606 = vsub.f32 %v278, %v542
        %v607 = vsub.f32 %v279, %v543
        %v608 = vsub.f32 %v280, %v544
        %v609 = vsub.f32 %v281, %v545
        %v610 = vsub.f32 %v282, %v546
        %v611 = vsub.f32 %v283, %v547
        %v612 = vsub.f32 %v284, %v548
        %v613 = vsub.f32 %v285, %v549
        %v614 = vsub.f32 %v286, %v550
        %v615 = vsub.f32 %v287, %v551
        %v616 = vsub.f32 %v288, %v552
        %v617 = vsub.f32 %v289, %v553
        %v618 = vsub.f32 %v290, %v554
        %v619 = vsub.f32 %v291, %v555
        %v620 = vsub.f32 %v292, %v556
        %v621 = vsub.f32 %v293, %v557
        %v622 = vsub.f32 %v294, %v558
        %v623 = vsub.f32 %v295, %v559
        %v624 = vsub.f32 %v296, %v560
        %v625 = vsub.f32 %v297, %v561
        %v626 = vsub.f32 %v298, %v562
        %v627 = vsub.f32 %v299, %v563
        %v628 = vsub.f32 %v300, %v564
        %v629 = vsub.f32 %v301, %v565
        %v630 = vsub.f32 %v302, %v566
        %v631 = vsub.f32 %v303, %v567
        %v632 = vmul.f32 %v568, %v568
        %v633 = vmul.f32 %v569, %v569
        %v634 = vmul.f32 %v570, %v570
        %v635 = vmul.f32 %v571, %v571
        %v636 = vmul.f32 %v572, %v572
        %v637 = vmul.f32 %v573, %v573
        %v638 = vmul.f32 %v574, %v574
        %v639 = vmul.f32 %v575, %v575
        %v640 = vmul.f32 %v576, %v576
        %v641 = vmul.f32 %v577, %v577
        %v642 = vmul.f32 %v578, %v578
        %v643 = vmul.f32 %v579, %v579
        %v644 = vmul.f32 %v580, %v580
        %v645 = vmul.f32 %v581, %v581
        %v646 = vmul.f32 %v582, %v582
        %v647 = vmul.f32 %v583, %v583
        %v648 = vmul.f32 %v584, %v584
        %v649 = vmul.f32 %v585, %v585
        %v650 = vmul.f32 %v586, %v586
        %v651 = vmul.f32 %v587, %v587
        %v652 = vmul.f32 %v588, %v588
        %v653 = vmul.f32 %v589, %v589
        %v654 = vmul.f32 %v590, %v590
        %v655 = vmul.f32 %v591, %v591
        %v656 = vmul.f32 %v592, %v592
        %v657 = vmul.f32 %v593, %v593
        %v658 = vmul.f32 %v594, %v594
        %v659 = vmul.f32 %v595, %v595
        %v660 = vmul.f32 %v596, %v596
        %v661 = vmul.f32 %v597, %v597
        %v662 = vmul.f32 %v598, %v598
        %v663 = vmul.f32 %v599, %v599
        %v664 = vmul.f32 %v600, %v600
        %v665 = vmul.f32 %v601, %v601
        %v666 = vmul.f32 %v602, %v602
        %v667 = vmul.f32 %v603, %v603
        %v668 = vmul.f32 %v604, %v604
        %v669 = vmul.f32 %v605, %v605
        %v670 = vmul.f32 %v606, %v606
        %v671 = vmul.f32 %v607, %v607
        %v672 = vmul.f32 %v608, %v608
        %v673 = vmul.f32 %v609, %v609
        %v674 = vmul.f32 %v610, %v610
        %v675 = vmul.f32 %v611, %v611
        %v676 = vmul.f32 %v612, %v612
        %v677 = vmul.f32 %v613, %v613
        %v678 = vmul.f32 %v614, %v614
        %v679 = vmul.f32 %v615, %v615
        %v680 = vmul.f32 %v616, %v616
        %v681 = vmul.f32 %v617, %v617
        %v682 = vmul.f32 %v618, %v618
        %v683 = vmul.f32 %v619, %v619
        %v684 = vmul.f32 %v620, %v620
        %v685 = vmul.f32 %v621, %v621
        %v686 = vmul.f32 %v622, %v622
        %v687 = vmul.f32 %v623, %v623
        %v688 = vmul.f32 %v624, %v624
        %v689 = vmul.f32 %v625, %v625
        %v690 = vmul.f32 %v626, %v626
        %v691 = vmul.f32 %v627, %v627
        %v692 = vmul.f32 %v628, %v628
        %v693 = vmul.f32 %v629, %v629
        %v694 = vmul.f32 %v630, %v630
        %v695 = vmul.f32 %v631, %v631
        %v696 = vsel %vm304, %v632, 0.0
        %697 = vadd.xlane.f32.xlu0 %v696
        %v698 = vpop.xlane.xlu0 %697
        %v699 = vsel %vm304, %v633, 0.0
        %700 = vadd.xlane.f32.xlu0 %v699
        %v701 = vpop.xlane.xlu0 %700
        %v702 = vsel %vm304, %v634, 0.0
        %703 = vadd.xlane.f32.xlu0 %v702
        %v704 = vpop.xlane.xlu0 %703
        %v705 = vsel %vm304, %v635, 0.0
        %706 = vadd.xlane.f32.xlu0 %v705
        %v707 = vpop.xlane.xlu0 %706
        %v708 = vsel %vm304, %v636, 0.0
        %709 = vadd.xlane.f32.xlu0 %v708
        %v710 = vpop.xlane.xlu0 %709
        %v711 = vsel %vm304, %v637, 0.0
        %712 = vadd.xlane.f32.xlu0 %v711
        %v713 = vpop.xlane.xlu0 %712
        %v714 = vsel %vm304, %v638, 0.0
        %715 = vadd.xlane.f32.xlu0 %v714
        %v716 = vpop.xlane.xlu0 %715
        %v717 = vsel %vm304, %v639, 0.0
        %718 = vadd.xlane.f32.xlu0 %v717
        %v719 = vpop.xlane.xlu0 %718
        %v720 = vsel %vm304, %v640, 0.0
        %721 = vadd.xlane.f32.xlu0 %v720
        %v722 = vpop.xlane.xlu0 %721
        %v723 = vsel %vm304, %v641, 0.0
        %724 = vadd.xlane.f32.xlu0 %v723
        %v725 = vpop.xlane.xlu0 %724
        %v726 = vsel %vm304, %v642, 0.0
        %727 = vadd.xlane.f32.xlu0 %v726
        %v728 = vpop.xlane.xlu0 %727
        %v729 = vsel %vm304, %v643, 0.0
        %730 = vadd.xlane.f32.xlu0 %v729
        %v731 = vpop.xlane.xlu0 %730
        %v732 = vsel %vm304, %v644, 0.0
        %733 = vadd.xlane.f32.xlu0 %v732
        %v734 = vpop.xlane.xlu0 %733
        %v735 = vsel %vm304, %v645, 0.0
        %736 = vadd.xlane.f32.xlu0 %v735
        %v737 = vpop.xlane.xlu0 %736
        %v738 = vsel %vm304, %v646, 0.0
        %739 = vadd.xlane.f32.xlu0 %v738
        %v740 = vpop.xlane.xlu0 %739
        %v741 = vsel %vm304, %v647, 0.0
        %742 = vadd.xlane.f32.xlu0 %v741
        %v743 = vpop.xlane.xlu0 %742
        %v744 = vsel %vm304, %v648, 0.0
        %745 = vadd.xlane.f32.xlu0 %v744
        %v746 = vpop.xlane.xlu0 %745
        %v747 = vsel %vm304, %v649, 0.0
        %748 = vadd.xlane.f32.xlu0 %v747
        %v749 = vpop.xlane.xlu0 %748
        %v750 = vsel %vm304, %v650, 0.0
        %751 = vadd.xlane.f32.xlu0 %v750
        %v752 = vpop.xlane.xlu0 %751
        %v753 = vsel %vm304, %v651, 0.0
        %754 = vadd.xlane.f32.xlu0 %v753
        %v755 = vpop.xlane.xlu0 %754
        %v756 = vsel %vm304, %v652, 0.0
        %757 = vadd.xlane.f32.xlu0 %v756
        %v758 = vpop.xlane.xlu0 %757
        %v759 = vsel %vm304, %v653, 0.0
        %760 = vadd.xlane.f32.xlu0 %v759
        %v761 = vpop.xlane.xlu0 %760
        %v762 = vsel %vm304, %v654, 0.0
        %763 = vadd.xlane.f32.xlu0 %v762
        %v764 = vpop.xlane.xlu0 %763
        %v765 = vsel %vm304, %v655, 0.0
        %766 = vadd.xlane.f32.xlu0 %v765
        %v767 = vpop.xlane.xlu0 %766
        %v768 = vsel %vm304, %v656, 0.0
        %769 = vadd.xlane.f32.xlu0 %v768
        %v770 = vpop.xlane.xlu0 %769
        %v771 = vsel %vm304, %v657, 0.0
        %772 = vadd.xlane.f32.xlu0 %v771
        %v773 = vpop.xlane.xlu0 %772
        %v774 = vsel %vm304, %v658, 0.0
        %775 = vadd.xlane.f32.xlu0 %v774
        %v776 = vpop.xlane.xlu0 %775
        %v777 = vsel %vm304, %v659, 0.0
        %778 = vadd.xlane.f32.xlu0 %v777
        %v779 = vpop.xlane.xlu0 %778
        %v780 = vsel %vm304, %v660, 0.0
        %781 = vadd.xlane.f32.xlu0 %v780
        %v782 = vpop.xlane.xlu0 %781
        %v783 = vsel %vm304, %v661, 0.0
        %784 = vadd.xlane.f32.xlu0 %v783
        %v785 = vpop.xlane.xlu0 %784
        %v786 = vsel %vm304, %v662, 0.0
        %787 = vadd.xlane.f32.xlu0 %v786
        %v788 = vpop.xlane.xlu0 %787
        %v789 = vsel %vm304, %v663, 0.0
        %790 = vadd.xlane.f32.xlu0 %v789
        %v791 = vpop.xlane.xlu0 %790
        %v792 = vsel %vm304, %v664, 0.0
        %793 = vadd.xlane.f32.xlu0 %v792
        %v794 = vpop.xlane.xlu0 %793
        %v795 = vsel %vm304, %v665, 0.0
        %796 = vadd.xlane.f32.xlu0 %v795
        %v797 = vpop.xlane.xlu0 %796
        %v798 = vsel %vm304, %v666, 0.0
        %799 = vadd.xlane.f32.xlu0 %v798
        %v800 = vpop.xlane.xlu0 %799
        %v801 = vsel %vm304, %v667, 0.0
        %802 = vadd.xlane.f32.xlu0 %v801
        %v803 = vpop.xlane.xlu0 %802
        %v804 = vsel %vm304, %v668, 0.0
        %805 = vadd.xlane.f32.xlu0 %v804
        %v806 = vpop.xlane.xlu0 %805
        %v807 = vsel %vm304, %v669, 0.0
        %808 = vadd.xlane.f32.xlu0 %v807
        %v809 = vpop.xlane.xlu0 %808
        %v810 = vsel %vm304, %v670, 0.0
        %811 = vadd.xlane.f32.xlu0 %v810
        %v812 = vpop.xlane.xlu0 %811
        %v813 = vsel %vm304, %v671, 0.0
        %814 = vadd.xlane.f32.xlu0 %v813
        %v815 = vpop.xlane.xlu0 %814
        %v816 = vsel %vm304, %v672, 0.0
        %817 = vadd.xlane.f32.xlu0 %v816
        %v818 = vpop.xlane.xlu0 %817
        %v819 = vsel %vm304, %v673, 0.0
        %820 = vadd.xlane.f32.xlu0 %v819
        %v821 = vpop.xlane.xlu0 %820
        %v822 = vsel %vm304, %v674, 0.0
        %823 = vadd.xlane.f32.xlu0 %v822
        %v824 = vpop.xlane.xlu0 %823
        %v825 = vsel %vm304, %v675, 0.0
        %826 = vadd.xlane.f32.xlu0 %v825
        %v827 = vpop.xlane.xlu0 %826
        %v828 = vsel %vm304, %v676, 0.0
        %829 = vadd.xlane.f32.xlu0 %v828
        %v830 = vpop.xlane.xlu0 %829
        %v831 = vsel %vm304, %v677, 0.0
        %832 = vadd.xlane.f32.xlu0 %v831
        %v833 = vpop.xlane.xlu0 %832
        %v834 = vsel %vm304, %v678, 0.0
        %835 = vadd.xlane.f32.xlu0 %v834
        %v836 = vpop.xlane.xlu0 %835
        %v837 = vsel %vm304, %v679, 0.0
        %838 = vadd.xlane.f32.xlu0 %v837
        %v839 = vpop.xlane.xlu0 %838
        %v840 = vsel %vm304, %v680, 0.0
        %841 = vadd.xlane.f32.xlu0 %v840
        %v842 = vpop.xlane.xlu0 %841
        %v843 = vsel %vm304, %v681, 0.0
        %844 = vadd.xlane.f32.xlu0 %v843
        %v845 = vpop.xlane.xlu0 %844
        %v846 = vsel %vm304, %v682, 0.0
        %847 = vadd.xlane.f32.xlu0 %v846
        %v848 = vpop.xlane.xlu0 %847
        %v849 = vsel %vm304, %v683, 0.0
        %850 = vadd.xlane.f32.xlu0 %v849
        %v851 = vpop.xlane.xlu0 %850
        %v852 = vsel %vm304, %v684, 0.0
        %853 = vadd.xlane.f32.xlu0 %v852
        %v854 = vpop.xlane.xlu0 %853
        %v855 = vsel %vm304, %v685, 0.0
        %856 = vadd.xlane.f32.xlu0 %v855
        %v857 = vpop.xlane.xlu0 %856
        %v858 = vsel %vm304, %v686, 0.0
        %859 = vadd.xlane.f32.xlu0 %v858
        %v860 = vpop.xlane.xlu0 %859
        %v861 = vsel %vm304, %v687, 0.0
        %862 = vadd.xlane.f32.xlu0 %v861
        %v863 = vpop.xlane.xlu0 %862
        %v864 = vsel %vm304, %v688, 0.0
        %865 = vadd.xlane.f32.xlu0 %v864
        %v866 = vpop.xlane.xlu0 %865
        %v867 = vsel %vm304, %v689, 0.0
        %868 = vadd.xlane.f32.xlu0 %v867
        %v869 = vpop.xlane.xlu0 %868
        %v870 = vsel %vm304, %v690, 0.0
        %871 = vadd.xlane.f32.xlu0 %v870
        %v872 = vpop.xlane.xlu0 %871
        %v873 = vsel %vm304, %v691, 0.0
        %874 = vadd.xlane.f32.xlu0 %v873
        %v875 = vpop.xlane.xlu0 %874
        %v876 = vsel %vm304, %v692, 0.0
        %877 = vadd.xlane.f32.xlu0 %v876
        %v878 = vpop.xlane.xlu0 %877
        %v879 = vsel %vm304, %v693, 0.0
        %880 = vadd.xlane.f32.xlu0 %v879
        %v881 = vpop.xlane.xlu0 %880
        %v882 = vsel %vm304, %v694, 0.0
        %883 = vadd.xlane.f32.xlu0 %v882
        %v884 = vpop.xlane.xlu0 %883
        %v885 = vsel %vm304, %v695, 0.0
        %886 = vadd.xlane.f32.xlu0 %v885
        %v887 = vpop.xlane.xlu0 %886
        %v888 = vmul.f32 %v698, %v503
        %v889 = vmul.f32 %v701, %v503
        %v890 = vmul.f32 %v704, %v503
        %v891 = vmul.f32 %v707, %v503
        %v892 = vmul.f32 %v710, %v503
        %v893 = vmul.f32 %v713, %v503
        %v894 = vmul.f32 %v716, %v503
        %v895 = vmul.f32 %v719, %v503
        %v896 = vmul.f32 %v722, %v503
        %v897 = vmul.f32 %v725, %v503
        %v898 = vmul.f32 %v728, %v503
        %v899 = vmul.f32 %v731, %v503
        %v900 = vmul.f32 %v734, %v503
        %v901 = vmul.f32 %v737, %v503
        %v902 = vmul.f32 %v740, %v503
        %v903 = vmul.f32 %v743, %v503
        %v904 = vmul.f32 %v746, %v503
        %v905 = vmul.f32 %v749, %v503
        %v906 = vmul.f32 %v752, %v503
        %v907 = vmul.f32 %v755, %v503
        %v908 = vmul.f32 %v758, %v503
        %v909 = vmul.f32 %v761, %v503
        %v910 = vmul.f32 %v764, %v503
        %v911 = vmul.f32 %v767, %v503
        %v912 = vmul.f32 %v770, %v503
        %v913 = vmul.f32 %v773, %v503
        %v914 = vmul.f32 %v776, %v503
        %v915 = vmul.f32 %v779, %v503
        %v916 = vmul.f32 %v782, %v503
        %v917 = vmul.f32 %v785, %v503
        %v918 = vmul.f32 %v788, %v503
        %v919 = vmul.f32 %v791, %v503
        %v920 = vmul.f32 %v794, %v503
        %v921 = vmul.f32 %v797, %v503
        %v922 = vmul.f32 %v800, %v503
        %v923 = vmul.f32 %v803, %v503
        %v924 = vmul.f32 %v806, %v503
        %v925 = vmul.f32 %v809, %v503
        %v926 = vmul.f32 %v812, %v503
        %v927 = vmul.f32 %v815, %v503
        %v928 = vmul.f32 %v818, %v503
        %v929 = vmul.f32 %v821, %v503
        %v930 = vmul.f32 %v824, %v503
        %v931 = vmul.f32 %v827, %v503
        %v932 = vmul.f32 %v830, %v503
        %v933 = vmul.f32 %v833, %v503
        %v934 = vmul.f32 %v836, %v503
        %v935 = vmul.f32 %v839, %v503
        %v936 = vmul.f32 %v842, %v503
        %v937 = vmul.f32 %v845, %v503
        %v938 = vmul.f32 %v848, %v503
        %v939 = vmul.f32 %v851, %v503
        %v940 = vmul.f32 %v854, %v503
        %v941 = vmul.f32 %v857, %v503
        %v942 = vmul.f32 %v860, %v503
        %v943 = vmul.f32 %v863, %v503
        %v944 = vmul.f32 %v866, %v503
        %v945 = vmul.f32 %v869, %v503
        %v946 = vmul.f32 %v872, %v503
        %v947 = vmul.f32 %v875, %v503
        %v948 = vmul.f32 %v878, %v503
        %v949 = vmul.f32 %v881, %v503
        %v950 = vmul.f32 %v884, %v503
        %v951 = vmul.f32 %v887, %v503
        %v952 = vadd.f32 %v888, 1e-05
        %v953 = vadd.f32 %v889, 1e-05
        %v954 = vadd.f32 %v890, 1e-05
        %v955 = vadd.f32 %v891, 1e-05
        %v956 = vadd.f32 %v892, 1e-05
        %v957 = vadd.f32 %v893, 1e-05
        %v958 = vadd.f32 %v894, 1e-05
        %v959 = vadd.f32 %v895, 1e-05
        %v960 = vadd.f32 %v896, 1e-05
        %v961 = vadd.f32 %v897, 1e-05
        %v962 = vadd.f32 %v898, 1e-05
        %v963 = vadd.f32 %v899, 1e-05
        %v964 = vadd.f32 %v900, 1e-05
        %v965 = vadd.f32 %v901, 1e-05
        %v966 = vadd.f32 %v902, 1e-05
        %v967 = vadd.f32 %v903, 1e-05
        %v968 = vadd.f32 %v904, 1e-05
        %v969 = vadd.f32 %v905, 1e-05
        %v970 = vadd.f32 %v906, 1e-05
        %v971 = vadd.f32 %v907, 1e-05
        %v972 = vadd.f32 %v908, 1e-05
        %v973 = vadd.f32 %v909, 1e-05
        %v974 = vadd.f32 %v910, 1e-05
        %v975 = vadd.f32 %v911, 1e-05
        %v976 = vadd.f32 %v912, 1e-05
        %v977 = vadd.f32 %v913, 1e-05
        %v978 = vadd.f32 %v914, 1e-05
        %v979 = vadd.f32 %v915, 1e-05
        %v980 = vadd.f32 %v916, 1e-05
        %v981 = vadd.f32 %v917, 1e-05
        %v982 = vadd.f32 %v918, 1e-05
        %v983 = vadd.f32 %v919, 1e-05
        %v984 = vadd.f32 %v920, 1e-05
        %v985 = vadd.f32 %v921, 1e-05
        %v986 = vadd.f32 %v922, 1e-05
        %v987 = vadd.f32 %v923, 1e-05
        %v988 = vadd.f32 %v924, 1e-05
        %v989 = vadd.f32 %v925, 1e-05
        %v990 = vadd.f32 %v926, 1e-05
        %v991 = vadd.f32 %v927, 1e-05
        %v992 = vadd.f32 %v928, 1e-05
        %v993 = vadd.f32 %v929, 1e-05
        %v994 = vadd.f32 %v930, 1e-05
        %v995 = vadd.f32 %v931, 1e-05
        %v996 = vadd.f32 %v932, 1e-05
        %v997 = vadd.f32 %v933, 1e-05
        %v998 = vadd.f32 %v934, 1e-05
        %v999 = vadd.f32 %v935, 1e-05
        %v1000 = vadd.f32 %v936, 1e-05
        %v1001 = vadd.f32 %v937, 1e-05
        %v1002 = vadd.f32 %v938, 1e-05
        %v1003 = vadd.f32 %v939, 1e-05
        %v1004 = vadd.f32 %v940, 1e-05
        %v1005 = vadd.f32 %v941, 1e-05
        %v1006 = vadd.f32 %v942, 1e-05
        %v1007 = vadd.f32 %v943, 1e-05
        %v1008 = vadd.f32 %v944, 1e-05
        %v1009 = vadd.f32 %v945, 1e-05
        %v1010 = vadd.f32 %v946, 1e-05
        %v1011 = vadd.f32 %v947, 1e-05
        %v1012 = vadd.f32 %v948, 1e-05
        %v1013 = vadd.f32 %v949, 1e-05
        %v1014 = vadd.f32 %v950, 1e-05
        %v1015 = vadd.f32 %v951, 1e-05
        %v1016 = vrsqrt.pop %v952
        %v1017 = vmul.f32 %v1016, %v952
        %v1018 = vmul.f32 %v1017, %v1016
        %v1019 = vmul.f32 0.5, %v1018
        %v1020 = vsub.f32 1.5, %v1019
        %v1021 = vmul.f32 %v1016, %v1020
        %vm1022 = vweird.f32 %v952
        %vm1023 = vweird.f32 %v1016
        %vm1024 = vmor %vm1022, %vm1023
        %v1025 = vsel %vm1024, %v1016, %v1021
        %v1026 = vrsqrt.pop %v953
        %v1027 = vmul.f32 %v1026, %v953
        %v1028 = vmul.f32 %v1027, %v1026
        %v1029 = vmul.f32 0.5, %v1028
        %v1030 = vsub.f32 1.5, %v1029
        %v1031 = vmul.f32 %v1026, %v1030
        %vm1032 = vweird.f32 %v953
        %vm1033 = vweird.f32 %v1026
        %vm1034 = vmor %vm1032, %vm1033
        %v1035 = vsel %vm1034, %v1026, %v1031
        %v1036 = vrsqrt.pop %v954
        %v1037 = vmul.f32 %v1036, %v954
        %v1038 = vmul.f32 %v1037, %v1036
        %v1039 = vmul.f32 0.5, %v1038
        %v1040 = vsub.f32 1.5, %v1039
        %v1041 = vmul.f32 %v1036, %v1040
        %vm1042 = vweird.f32 %v954
        %vm1043 = vweird.f32 %v1036
        %vm1044 = vmor %vm1042, %vm1043
        %v1045 = vsel %vm1044, %v1036, %v1041
        %v1046 = vrsqrt.pop %v955
        %v1047 = vmul.f32 %v1046, %v955
        %v1048 = vmul.f32 %v1047, %v1046
        %v1049 = vmul.f32 0.5, %v1048
        %v1050 = vsub.f32 1.5, %v1049
        %v1051 = vmul.f32 %v1046, %v1050
        %vm1052 = vweird.f32 %v955
        %vm1053 = vweird.f32 %v1046
        %vm1054 = vmor %vm1052, %vm1053
        %v1055 = vsel %vm1054, %v1046, %v1051
        %v1056 = vrsqrt.pop %v956
        %v1057 = vmul.f32 %v1056, %v956
        %v1058 = vmul.f32 %v1057, %v1056
        %v1059 = vmul.f32 0.5, %v1058
        %v1060 = vsub.f32 1.5, %v1059
        %v1061 = vmul.f32 %v1056, %v1060
        %vm1062 = vweird.f32 %v956
        %vm1063 = vweird.f32 %v1056
        %vm1064 = vmor %vm1062, %vm1063
        %v1065 = vsel %vm1064, %v1056, %v1061
        %v1066 = vrsqrt.pop %v957
        %v1067 = vmul.f32 %v1066, %v957
        %v1068 = vmul.f32 %v1067, %v1066
        %v1069 = vmul.f32 0.5, %v1068
        %v1070 = vsub.f32 1.5, %v1069
        %v1071 = vmul.f32 %v1066, %v1070
        %vm1072 = vweird.f32 %v957
        %vm1073 = vweird.f32 %v1066
        %vm1074 = vmor %vm1072, %vm1073
        %v1075 = vsel %vm1074, %v1066, %v1071
        %v1076 = vrsqrt.pop %v958
        %v1077 = vmul.f32 %v1076, %v958
        %v1078 = vmul.f32 %v1077, %v1076
        %v1079 = vmul.f32 0.5, %v1078
        %v1080 = vsub.f32 1.5, %v1079
        %v1081 = vmul.f32 %v1076, %v1080
        %vm1082 = vweird.f32 %v958
        %vm1083 = vweird.f32 %v1076
        %vm1084 = vmor %vm1082, %vm1083
        %v1085 = vsel %vm1084, %v1076, %v1081
        %v1086 = vrsqrt.pop %v959
        %v1087 = vmul.f32 %v1086, %v959
        %v1088 = vmul.f32 %v1087, %v1086
        %v1089 = vmul.f32 0.5, %v1088
        %v1090 = vsub.f32 1.5, %v1089
        %v1091 = vmul.f32 %v1086, %v1090
        %vm1092 = vweird.f32 %v959
        %vm1093 = vweird.f32 %v1086
        %vm1094 = vmor %vm1092, %vm1093
        %v1095 = vsel %vm1094, %v1086, %v1091
        %v1096 = vrsqrt.pop %v960
        %v1097 = vmul.f32 %v1096, %v960
        %v1098 = vmul.f32 %v1097, %v1096
        %v1099 = vmul.f32 0.5, %v1098
        %v1100 = vsub.f32 1.5, %v1099
        %v1101 = vmul.f32 %v1096, %v1100
        %vm1102 = vweird.f32 %v960
        %vm1103 = vweird.f32 %v1096
        %vm1104 = vmor %vm1102, %vm1103
        %v1105 = vsel %vm1104, %v1096, %v1101
        %v1106 = vrsqrt.pop %v961
        %v1107 = vmul.f32 %v1106, %v961
        %v1108 = vmul.f32 %v1107, %v1106
        %v1109 = vmul.f32 0.5, %v1108
        %v1110 = vsub.f32 1.5, %v1109
        %v1111 = vmul.f32 %v1106, %v1110
        %vm1112 = vweird.f32 %v961
        %vm1113 = vweird.f32 %v1106
        %vm1114 = vmor %vm1112, %vm1113
        %v1115 = vsel %vm1114, %v1106, %v1111
        %v1116 = vrsqrt.pop %v962
        %v1117 = vmul.f32 %v1116, %v962
        %v1118 = vmul.f32 %v1117, %v1116
        %v1119 = vmul.f32 0.5, %v1118
        %v1120 = vsub.f32 1.5, %v1119
        %v1121 = vmul.f32 %v1116, %v1120
        %vm1122 = vweird.f32 %v962
        %vm1123 = vweird.f32 %v1116
        %vm1124 = vmor %vm1122, %vm1123
        %v1125 = vsel %vm1124, %v1116, %v1121
        %v1126 = vrsqrt.pop %v963
        %v1127 = vmul.f32 %v1126, %v963
        %v1128 = vmul.f32 %v1127, %v1126
        %v1129 = vmul.f32 0.5, %v1128
        %v1130 = vsub.f32 1.5, %v1129
        %v1131 = vmul.f32 %v1126, %v1130
        %vm1132 = vweird.f32 %v963
        %vm1133 = vweird.f32 %v1126
        %vm1134 = vmor %vm1132, %vm1133
        %v1135 = vsel %vm1134, %v1126, %v1131
        %v1136 = vrsqrt.pop %v964
        %v1137 = vmul.f32 %v1136, %v964
        %v1138 = vmul.f32 %v1137, %v1136
        %v1139 = vmul.f32 0.5, %v1138
        %v1140 = vsub.f32 1.5, %v1139
        %v1141 = vmul.f32 %v1136, %v1140
        %vm1142 = vweird.f32 %v964
        %vm1143 = vweird.f32 %v1136
        %vm1144 = vmor %vm1142, %vm1143
        %v1145 = vsel %vm1144, %v1136, %v1141
        %v1146 = vrsqrt.pop %v965
        %v1147 = vmul.f32 %v1146, %v965
        %v1148 = vmul.f32 %v1147, %v1146
        %v1149 = vmul.f32 0.5, %v1148
        %v1150 = vsub.f32 1.5, %v1149
        %v1151 = vmul.f32 %v1146, %v1150
        %vm1152 = vweird.f32 %v965
        %vm1153 = vweird.f32 %v1146
        %vm1154 = vmor %vm1152, %vm1153
        %v1155 = vsel %vm1154, %v1146, %v1151
        %v1156 = vrsqrt.pop %v966
        %v1157 = vmul.f32 %v1156, %v966
        %v1158 = vmul.f32 %v1157, %v1156
        %v1159 = vmul.f32 0.5, %v1158
        %v1160 = vsub.f32 1.5, %v1159
        %v1161 = vmul.f32 %v1156, %v1160
        %vm1162 = vweird.f32 %v966
        %vm1163 = vweird.f32 %v1156
        %vm1164 = vmor %vm1162, %vm1163
        %v1165 = vsel %vm1164, %v1156, %v1161
        %v1166 = vrsqrt.pop %v967
        %v1167 = vmul.f32 %v1166, %v967
        %v1168 = vmul.f32 %v1167, %v1166
        %v1169 = vmul.f32 0.5, %v1168
        %v1170 = vsub.f32 1.5, %v1169
        %v1171 = vmul.f32 %v1166, %v1170
        %vm1172 = vweird.f32 %v967
        %vm1173 = vweird.f32 %v1166
        %vm1174 = vmor %vm1172, %vm1173
        %v1175 = vsel %vm1174, %v1166, %v1171
        %v1176 = vrsqrt.pop %v968
        %v1177 = vmul.f32 %v1176, %v968
        %v1178 = vmul.f32 %v1177, %v1176
        %v1179 = vmul.f32 0.5, %v1178
        %v1180 = vsub.f32 1.5, %v1179
        %v1181 = vmul.f32 %v1176, %v1180
        %vm1182 = vweird.f32 %v968
        %vm1183 = vweird.f32 %v1176
        %vm1184 = vmor %vm1182, %vm1183
        %v1185 = vsel %vm1184, %v1176, %v1181
        %v1186 = vrsqrt.pop %v969
        %v1187 = vmul.f32 %v1186, %v969
        %v1188 = vmul.f32 %v1187, %v1186
        %v1189 = vmul.f32 0.5, %v1188
        %v1190 = vsub.f32 1.5, %v1189
        %v1191 = vmul.f32 %v1186, %v1190
        %vm1192 = vweird.f32 %v969
        %vm1193 = vweird.f32 %v1186
        %vm1194 = vmor %vm1192, %vm1193
        %v1195 = vsel %vm1194, %v1186, %v1191
        %v1196 = vrsqrt.pop %v970
        %v1197 = vmul.f32 %v1196, %v970
        %v1198 = vmul.f32 %v1197, %v1196
        %v1199 = vmul.f32 0.5, %v1198
        %v1200 = vsub.f32 1.5, %v1199
        %v1201 = vmul.f32 %v1196, %v1200
        %vm1202 = vweird.f32 %v970
        %vm1203 = vweird.f32 %v1196
        %vm1204 = vmor %vm1202, %vm1203
        %v1205 = vsel %vm1204, %v1196, %v1201
        %v1206 = vrsqrt.pop %v971
        %v1207 = vmul.f32 %v1206, %v971
        %v1208 = vmul.f32 %v1207, %v1206
        %v1209 = vmul.f32 0.5, %v1208
        %v1210 = vsub.f32 1.5, %v1209
        %v1211 = vmul.f32 %v1206, %v1210
        %vm1212 = vweird.f32 %v971
        %vm1213 = vweird.f32 %v1206
        %vm1214 = vmor %vm1212, %vm1213
        %v1215 = vsel %vm1214, %v1206, %v1211
        %v1216 = vrsqrt.pop %v972
        %v1217 = vmul.f32 %v1216, %v972
        %v1218 = vmul.f32 %v1217, %v1216
        %v1219 = vmul.f32 0.5, %v1218
        %v1220 = vsub.f32 1.5, %v1219
        %v1221 = vmul.f32 %v1216, %v1220
        %vm1222 = vweird.f32 %v972
        %vm1223 = vweird.f32 %v1216
        %vm1224 = vmor %vm1222, %vm1223
        %v1225 = vsel %vm1224, %v1216, %v1221
        %v1226 = vrsqrt.pop %v973
        %v1227 = vmul.f32 %v1226, %v973
        %v1228 = vmul.f32 %v1227, %v1226
        %v1229 = vmul.f32 0.5, %v1228
        %v1230 = vsub.f32 1.5, %v1229
        %v1231 = vmul.f32 %v1226, %v1230
        %vm1232 = vweird.f32 %v973
        %vm1233 = vweird.f32 %v1226
        %vm1234 = vmor %vm1232, %vm1233
        %v1235 = vsel %vm1234, %v1226, %v1231
        %v1236 = vrsqrt.pop %v974
        %v1237 = vmul.f32 %v1236, %v974
        %v1238 = vmul.f32 %v1237, %v1236
        %v1239 = vmul.f32 0.5, %v1238
        %v1240 = vsub.f32 1.5, %v1239
        %v1241 = vmul.f32 %v1236, %v1240
        %vm1242 = vweird.f32 %v974
        %vm1243 = vweird.f32 %v1236
        %vm1244 = vmor %vm1242, %vm1243
        %v1245 = vsel %vm1244, %v1236, %v1241
        %v1246 = vrsqrt.pop %v975
        %v1247 = vmul.f32 %v1246, %v975
        %v1248 = vmul.f32 %v1247, %v1246
        %v1249 = vmul.f32 0.5, %v1248
        %v1250 = vsub.f32 1.5, %v1249
        %v1251 = vmul.f32 %v1246, %v1250
        %vm1252 = vweird.f32 %v975
        %vm1253 = vweird.f32 %v1246
        %vm1254 = vmor %vm1252, %vm1253
        %v1255 = vsel %vm1254, %v1246, %v1251
        %v1256 = vrsqrt.pop %v976
        %v1257 = vmul.f32 %v1256, %v976
        %v1258 = vmul.f32 %v1257, %v1256
        %v1259 = vmul.f32 0.5, %v1258
        %v1260 = vsub.f32 1.5, %v1259
        %v1261 = vmul.f32 %v1256, %v1260
        %vm1262 = vweird.f32 %v976
        %vm1263 = vweird.f32 %v1256
        %vm1264 = vmor %vm1262, %vm1263
        %v1265 = vsel %vm1264, %v1256, %v1261
        %v1266 = vrsqrt.pop %v977
        %v1267 = vmul.f32 %v1266, %v977
        %v1268 = vmul.f32 %v1267, %v1266
        %v1269 = vmul.f32 0.5, %v1268
        %v1270 = vsub.f32 1.5, %v1269
        %v1271 = vmul.f32 %v1266, %v1270
        %vm1272 = vweird.f32 %v977
        %vm1273 = vweird.f32 %v1266
        %vm1274 = vmor %vm1272, %vm1273
        %v1275 = vsel %vm1274, %v1266, %v1271
        %v1276 = vrsqrt.pop %v978
        %v1277 = vmul.f32 %v1276, %v978
        %v1278 = vmul.f32 %v1277, %v1276
        %v1279 = vmul.f32 0.5, %v1278
        %v1280 = vsub.f32 1.5, %v1279
        %v1281 = vmul.f32 %v1276, %v1280
        %vm1282 = vweird.f32 %v978
        %vm1283 = vweird.f32 %v1276
        %vm1284 = vmor %vm1282, %vm1283
        %v1285 = vsel %vm1284, %v1276, %v1281
        %v1286 = vrsqrt.pop %v979
        %v1287 = vmul.f32 %v1286, %v979
        %v1288 = vmul.f32 %v1287, %v1286
        %v1289 = vmul.f32 0.5, %v1288
        %v1290 = vsub.f32 1.5, %v1289
        %v1291 = vmul.f32 %v1286, %v1290
        %vm1292 = vweird.f32 %v979
        %vm1293 = vweird.f32 %v1286
        %vm1294 = vmor %vm1292, %vm1293
        %v1295 = vsel %vm1294, %v1286, %v1291
        %v1296 = vrsqrt.pop %v980
        %v1297 = vmul.f32 %v1296, %v980
        %v1298 = vmul.f32 %v1297, %v1296
        %v1299 = vmul.f32 0.5, %v1298
        %v1300 = vsub.f32 1.5, %v1299
        %v1301 = vmul.f32 %v1296, %v1300
        %vm1302 = vweird.f32 %v980
        %vm1303 = vweird.f32 %v1296
        %vm1304 = vmor %vm1302, %vm1303
        %v1305 = vsel %vm1304, %v1296, %v1301
        %v1306 = vrsqrt.pop %v981
        %v1307 = vmul.f32 %v1306, %v981
        %v1308 = vmul.f32 %v1307, %v1306
        %v1309 = vmul.f32 0.5, %v1308
        %v1310 = vsub.f32 1.5, %v1309
        %v1311 = vmul.f32 %v1306, %v1310
        %vm1312 = vweird.f32 %v981
        %vm1313 = vweird.f32 %v1306
        %vm1314 = vmor %vm1312, %vm1313
        %v1315 = vsel %vm1314, %v1306, %v1311
        %v1316 = vrsqrt.pop %v982
        %v1317 = vmul.f32 %v1316, %v982
        %v1318 = vmul.f32 %v1317, %v1316
        %v1319 = vmul.f32 0.5, %v1318
        %v1320 = vsub.f32 1.5, %v1319
        %v1321 = vmul.f32 %v1316, %v1320
        %vm1322 = vweird.f32 %v982
        %vm1323 = vweird.f32 %v1316
        %vm1324 = vmor %vm1322, %vm1323
        %v1325 = vsel %vm1324, %v1316, %v1321
        %v1326 = vrsqrt.pop %v983
        %v1327 = vmul.f32 %v1326, %v983
        %v1328 = vmul.f32 %v1327, %v1326
        %v1329 = vmul.f32 0.5, %v1328
        %v1330 = vsub.f32 1.5, %v1329
        %v1331 = vmul.f32 %v1326, %v1330
        %vm1332 = vweird.f32 %v983
        %vm1333 = vweird.f32 %v1326
        %vm1334 = vmor %vm1332, %vm1333
        %v1335 = vsel %vm1334, %v1326, %v1331
        %v1336 = vrsqrt.pop %v984
        %v1337 = vmul.f32 %v1336, %v984
        %v1338 = vmul.f32 %v1337, %v1336
        %v1339 = vmul.f32 0.5, %v1338
        %v1340 = vsub.f32 1.5, %v1339
        %v1341 = vmul.f32 %v1336, %v1340
        %vm1342 = vweird.f32 %v984
        %vm1343 = vweird.f32 %v1336
        %vm1344 = vmor %vm1342, %vm1343
        %v1345 = vsel %vm1344, %v1336, %v1341
        %v1346 = vrsqrt.pop %v985
        %v1347 = vmul.f32 %v1346, %v985
        %v1348 = vmul.f32 %v1347, %v1346
        %v1349 = vmul.f32 0.5, %v1348
        %v1350 = vsub.f32 1.5, %v1349
        %v1351 = vmul.f32 %v1346, %v1350
        %vm1352 = vweird.f32 %v985
        %vm1353 = vweird.f32 %v1346
        %vm1354 = vmor %vm1352, %vm1353
        %v1355 = vsel %vm1354, %v1346, %v1351
        %v1356 = vrsqrt.pop %v986
        %v1357 = vmul.f32 %v1356, %v986
        %v1358 = vmul.f32 %v1357, %v1356
        %v1359 = vmul.f32 0.5, %v1358
        %v1360 = vsub.f32 1.5, %v1359
        %v1361 = vmul.f32 %v1356, %v1360
        %vm1362 = vweird.f32 %v986
        %vm1363 = vweird.f32 %v1356
        %vm1364 = vmor %vm1362, %vm1363
        %v1365 = vsel %vm1364, %v1356, %v1361
        %v1366 = vrsqrt.pop %v987
        %v1367 = vmul.f32 %v1366, %v987
        %v1368 = vmul.f32 %v1367, %v1366
        %v1369 = vmul.f32 0.5, %v1368
        %v1370 = vsub.f32 1.5, %v1369
        %v1371 = vmul.f32 %v1366, %v1370
        %vm1372 = vweird.f32 %v987
        %vm1373 = vweird.f32 %v1366
        %vm1374 = vmor %vm1372, %vm1373
        %v1375 = vsel %vm1374, %v1366, %v1371
        %v1376 = vrsqrt.pop %v988
        %v1377 = vmul.f32 %v1376, %v988
        %v1378 = vmul.f32 %v1377, %v1376
        %v1379 = vmul.f32 0.5, %v1378
        %v1380 = vsub.f32 1.5, %v1379
        %v1381 = vmul.f32 %v1376, %v1380
        %vm1382 = vweird.f32 %v988
        %vm1383 = vweird.f32 %v1376
        %vm1384 = vmor %vm1382, %vm1383
        %v1385 = vsel %vm1384, %v1376, %v1381
        %v1386 = vrsqrt.pop %v989
        %v1387 = vmul.f32 %v1386, %v989
        %v1388 = vmul.f32 %v1387, %v1386
        %v1389 = vmul.f32 0.5, %v1388
        %v1390 = vsub.f32 1.5, %v1389
        %v1391 = vmul.f32 %v1386, %v1390
        %vm1392 = vweird.f32 %v989
        %vm1393 = vweird.f32 %v1386
        %vm1394 = vmor %vm1392, %vm1393
        %v1395 = vsel %vm1394, %v1386, %v1391
        %v1396 = vrsqrt.pop %v990
        %v1397 = vmul.f32 %v1396, %v990
        %v1398 = vmul.f32 %v1397, %v1396
        %v1399 = vmul.f32 0.5, %v1398
        %v1400 = vsub.f32 1.5, %v1399
        %v1401 = vmul.f32 %v1396, %v1400
        %vm1402 = vweird.f32 %v990
        %vm1403 = vweird.f32 %v1396
        %vm1404 = vmor %vm1402, %vm1403
        %v1405 = vsel %vm1404, %v1396, %v1401
        %v1406 = vrsqrt.pop %v991
        %v1407 = vmul.f32 %v1406, %v991
        %v1408 = vmul.f32 %v1407, %v1406
        %v1409 = vmul.f32 0.5, %v1408
        %v1410 = vsub.f32 1.5, %v1409
        %v1411 = vmul.f32 %v1406, %v1410
        %vm1412 = vweird.f32 %v991
        %vm1413 = vweird.f32 %v1406
        %vm1414 = vmor %vm1412, %vm1413
        %v1415 = vsel %vm1414, %v1406, %v1411
        %v1416 = vrsqrt.pop %v992
        %v1417 = vmul.f32 %v1416, %v992
        %v1418 = vmul.f32 %v1417, %v1416
        %v1419 = vmul.f32 0.5, %v1418
        %v1420 = vsub.f32 1.5, %v1419
        %v1421 = vmul.f32 %v1416, %v1420
        %vm1422 = vweird.f32 %v992
        %vm1423 = vweird.f32 %v1416
        %vm1424 = vmor %vm1422, %vm1423
        %v1425 = vsel %vm1424, %v1416, %v1421
        %v1426 = vrsqrt.pop %v993
        %v1427 = vmul.f32 %v1426, %v993
        %v1428 = vmul.f32 %v1427, %v1426
        %v1429 = vmul.f32 0.5, %v1428
        %v1430 = vsub.f32 1.5, %v1429
        %v1431 = vmul.f32 %v1426, %v1430
        %vm1432 = vweird.f32 %v993
        %vm1433 = vweird.f32 %v1426
        %vm1434 = vmor %vm1432, %vm1433
        %v1435 = vsel %vm1434, %v1426, %v1431
        %v1436 = vrsqrt.pop %v994
        %v1437 = vmul.f32 %v1436, %v994
        %v1438 = vmul.f32 %v1437, %v1436
        %v1439 = vmul.f32 0.5, %v1438
        %v1440 = vsub.f32 1.5, %v1439
        %v1441 = vmul.f32 %v1436, %v1440
        %vm1442 = vweird.f32 %v994
        %vm1443 = vweird.f32 %v1436
        %vm1444 = vmor %vm1442, %vm1443
        %v1445 = vsel %vm1444, %v1436, %v1441
        %v1446 = vrsqrt.pop %v995
        %v1447 = vmul.f32 %v1446, %v995
        %v1448 = vmul.f32 %v1447, %v1446
        %v1449 = vmul.f32 0.5, %v1448
        %v1450 = vsub.f32 1.5, %v1449
        %v1451 = vmul.f32 %v1446, %v1450
        %vm1452 = vweird.f32 %v995
        %vm1453 = vweird.f32 %v1446
        %vm1454 = vmor %vm1452, %vm1453
        %v1455 = vsel %vm1454, %v1446, %v1451
        %v1456 = vrsqrt.pop %v996
        %v1457 = vmul.f32 %v1456, %v996
        %v1458 = vmul.f32 %v1457, %v1456
        %v1459 = vmul.f32 0.5, %v1458
        %v1460 = vsub.f32 1.5, %v1459
        %v1461 = vmul.f32 %v1456, %v1460
        %vm1462 = vweird.f32 %v996
        %vm1463 = vweird.f32 %v1456
        %vm1464 = vmor %vm1462, %vm1463
        %v1465 = vsel %vm1464, %v1456, %v1461
        %v1466 = vrsqrt.pop %v997
        %v1467 = vmul.f32 %v1466, %v997
        %v1468 = vmul.f32 %v1467, %v1466
        %v1469 = vmul.f32 0.5, %v1468
        %v1470 = vsub.f32 1.5, %v1469
        %v1471 = vmul.f32 %v1466, %v1470
        %vm1472 = vweird.f32 %v997
        %vm1473 = vweird.f32 %v1466
        %vm1474 = vmor %vm1472, %vm1473
        %v1475 = vsel %vm1474, %v1466, %v1471
        %v1476 = vrsqrt.pop %v998
        %v1477 = vmul.f32 %v1476, %v998
        %v1478 = vmul.f32 %v1477, %v1476
        %v1479 = vmul.f32 0.5, %v1478
        %v1480 = vsub.f32 1.5, %v1479
        %v1481 = vmul.f32 %v1476, %v1480
        %vm1482 = vweird.f32 %v998
        %vm1483 = vweird.f32 %v1476
        %vm1484 = vmor %vm1482, %vm1483
        %v1485 = vsel %vm1484, %v1476, %v1481
        %v1486 = vrsqrt.pop %v999
        %v1487 = vmul.f32 %v1486, %v999
        %v1488 = vmul.f32 %v1487, %v1486
        %v1489 = vmul.f32 0.5, %v1488
        %v1490 = vsub.f32 1.5, %v1489
        %v1491 = vmul.f32 %v1486, %v1490
        %vm1492 = vweird.f32 %v999
        %vm1493 = vweird.f32 %v1486
        %vm1494 = vmor %vm1492, %vm1493
        %v1495 = vsel %vm1494, %v1486, %v1491
        %v1496 = vrsqrt.pop %v1000
        %v1497 = vmul.f32 %v1496, %v1000
        %v1498 = vmul.f32 %v1497, %v1496
        %v1499 = vmul.f32 0.5, %v1498
        %v1500 = vsub.f32 1.5, %v1499
        %v1501 = vmul.f32 %v1496, %v1500
        %vm1502 = vweird.f32 %v1000
        %vm1503 = vweird.f32 %v1496
        %vm1504 = vmor %vm1502, %vm1503
        %v1505 = vsel %vm1504, %v1496, %v1501
        %v1506 = vrsqrt.pop %v1001
        %v1507 = vmul.f32 %v1506, %v1001
        %v1508 = vmul.f32 %v1507, %v1506
        %v1509 = vmul.f32 0.5, %v1508
        %v1510 = vsub.f32 1.5, %v1509
        %v1511 = vmul.f32 %v1506, %v1510
        %vm1512 = vweird.f32 %v1001
        %vm1513 = vweird.f32 %v1506
        %vm1514 = vmor %vm1512, %vm1513
        %v1515 = vsel %vm1514, %v1506, %v1511
        %v1516 = vrsqrt.pop %v1002
        %v1517 = vmul.f32 %v1516, %v1002
        %v1518 = vmul.f32 %v1517, %v1516
        %v1519 = vmul.f32 0.5, %v1518
        %v1520 = vsub.f32 1.5, %v1519
        %v1521 = vmul.f32 %v1516, %v1520
        %vm1522 = vweird.f32 %v1002
        %vm1523 = vweird.f32 %v1516
        %vm1524 = vmor %vm1522, %vm1523
        %v1525 = vsel %vm1524, %v1516, %v1521
        %v1526 = vrsqrt.pop %v1003
        %v1527 = vmul.f32 %v1526, %v1003
        %v1528 = vmul.f32 %v1527, %v1526
        %v1529 = vmul.f32 0.5, %v1528
        %v1530 = vsub.f32 1.5, %v1529
        %v1531 = vmul.f32 %v1526, %v1530
        %vm1532 = vweird.f32 %v1003
        %vm1533 = vweird.f32 %v1526
        %vm1534 = vmor %vm1532, %vm1533
        %v1535 = vsel %vm1534, %v1526, %v1531
        %v1536 = vrsqrt.pop %v1004
        %v1537 = vmul.f32 %v1536, %v1004
        %v1538 = vmul.f32 %v1537, %v1536
        %v1539 = vmul.f32 0.5, %v1538
        %v1540 = vsub.f32 1.5, %v1539
        %v1541 = vmul.f32 %v1536, %v1540
        %vm1542 = vweird.f32 %v1004
        %vm1543 = vweird.f32 %v1536
        %vm1544 = vmor %vm1542, %vm1543
        %v1545 = vsel %vm1544, %v1536, %v1541
        %v1546 = vrsqrt.pop %v1005
        %v1547 = vmul.f32 %v1546, %v1005
        %v1548 = vmul.f32 %v1547, %v1546
        %v1549 = vmul.f32 0.5, %v1548
        %v1550 = vsub.f32 1.5, %v1549
        %v1551 = vmul.f32 %v1546, %v1550
        %vm1552 = vweird.f32 %v1005
        %vm1553 = vweird.f32 %v1546
        %vm1554 = vmor %vm1552, %vm1553
        %v1555 = vsel %vm1554, %v1546, %v1551
        %v1556 = vrsqrt.pop %v1006
        %v1557 = vmul.f32 %v1556, %v1006
        %v1558 = vmul.f32 %v1557, %v1556
        %v1559 = vmul.f32 0.5, %v1558
        %v1560 = vsub.f32 1.5, %v1559
        %v1561 = vmul.f32 %v1556, %v1560
        %vm1562 = vweird.f32 %v1006
        %vm1563 = vweird.f32 %v1556
        %vm1564 = vmor %vm1562, %vm1563
        %v1565 = vsel %vm1564, %v1556, %v1561
        %v1566 = vrsqrt.pop %v1007
        %v1567 = vmul.f32 %v1566, %v1007
        %v1568 = vmul.f32 %v1567, %v1566
        %v1569 = vmul.f32 0.5, %v1568
        %v1570 = vsub.f32 1.5, %v1569
        %v1571 = vmul.f32 %v1566, %v1570
        %vm1572 = vweird.f32 %v1007
        %vm1573 = vweird.f32 %v1566
        %vm1574 = vmor %vm1572, %vm1573
        %v1575 = vsel %vm1574, %v1566, %v1571
        %v1576 = vrsqrt.pop %v1008
        %v1577 = vmul.f32 %v1576, %v1008
        %v1578 = vmul.f32 %v1577, %v1576
        %v1579 = vmul.f32 0.5, %v1578
        %v1580 = vsub.f32 1.5, %v1579
        %v1581 = vmul.f32 %v1576, %v1580
        %vm1582 = vweird.f32 %v1008
        %vm1583 = vweird.f32 %v1576
        %vm1584 = vmor %vm1582, %vm1583
        %v1585 = vsel %vm1584, %v1576, %v1581
        %v1586 = vrsqrt.pop %v1009
        %v1587 = vmul.f32 %v1586, %v1009
        %v1588 = vmul.f32 %v1587, %v1586
        %v1589 = vmul.f32 0.5, %v1588
        %v1590 = vsub.f32 1.5, %v1589
        %v1591 = vmul.f32 %v1586, %v1590
        %vm1592 = vweird.f32 %v1009
        %vm1593 = vweird.f32 %v1586
        %vm1594 = vmor %vm1592, %vm1593
        %v1595 = vsel %vm1594, %v1586, %v1591
        %v1596 = vrsqrt.pop %v1010
        %v1597 = vmul.f32 %v1596, %v1010
        %v1598 = vmul.f32 %v1597, %v1596
        %v1599 = vmul.f32 0.5, %v1598
        %v1600 = vsub.f32 1.5, %v1599
        %v1601 = vmul.f32 %v1596, %v1600
        %vm1602 = vweird.f32 %v1010
        %vm1603 = vweird.f32 %v1596
        %vm1604 = vmor %vm1602, %vm1603
        %v1605 = vsel %vm1604, %v1596, %v1601
        %v1606 = vrsqrt.pop %v1011
        %v1607 = vmul.f32 %v1606, %v1011
        %v1608 = vmul.f32 %v1607, %v1606
        %v1609 = vmul.f32 0.5, %v1608
        %v1610 = vsub.f32 1.5, %v1609
        %v1611 = vmul.f32 %v1606, %v1610
        %vm1612 = vweird.f32 %v1011
        %vm1613 = vweird.f32 %v1606
        %vm1614 = vmor %vm1612, %vm1613
        %v1615 = vsel %vm1614, %v1606, %v1611
        %v1616 = vrsqrt.pop %v1012
        %v1617 = vmul.f32 %v1616, %v1012
        %v1618 = vmul.f32 %v1617, %v1616
        %v1619 = vmul.f32 0.5, %v1618
        %v1620 = vsub.f32 1.5, %v1619
        %v1621 = vmul.f32 %v1616, %v1620
        %vm1622 = vweird.f32 %v1012
        %vm1623 = vweird.f32 %v1616
        %vm1624 = vmor %vm1622, %vm1623
        %v1625 = vsel %vm1624, %v1616, %v1621
        %v1626 = vrsqrt.pop %v1013
        %v1627 = vmul.f32 %v1626, %v1013
        %v1628 = vmul.f32 %v1627, %v1626
        %v1629 = vmul.f32 0.5, %v1628
        %v1630 = vsub.f32 1.5, %v1629
        %v1631 = vmul.f32 %v1626, %v1630
        %vm1632 = vweird.f32 %v1013
        %vm1633 = vweird.f32 %v1626
        %vm1634 = vmor %vm1632, %vm1633
        %v1635 = vsel %vm1634, %v1626, %v1631
        %v1636 = vrsqrt.pop %v1014
        %v1637 = vmul.f32 %v1636, %v1014
        %v1638 = vmul.f32 %v1637, %v1636
        %v1639 = vmul.f32 0.5, %v1638
        %v1640 = vsub.f32 1.5, %v1639
        %v1641 = vmul.f32 %v1636, %v1640
        %vm1642 = vweird.f32 %v1014
        %vm1643 = vweird.f32 %v1636
        %vm1644 = vmor %vm1642, %vm1643
        %v1645 = vsel %vm1644, %v1636, %v1641
        %v1646 = vrsqrt.pop %v1015
        %v1647 = vmul.f32 %v1646, %v1015
        %v1648 = vmul.f32 %v1647, %v1646
        %v1649 = vmul.f32 0.5, %v1648
        %v1650 = vsub.f32 1.5, %v1649
        %v1651 = vmul.f32 %v1646, %v1650
        %vm1652 = vweird.f32 %v1015
        %vm1653 = vweird.f32 %v1646
        %vm1654 = vmor %vm1652, %vm1653
        %v1655 = vsel %vm1654, %v1646, %v1651
        %v1656 = vmul.f32 %v568, %v1025
        %v1657 = vmul.f32 %v569, %v1035
        %v1658 = vmul.f32 %v570, %v1045
        %v1659 = vmul.f32 %v571, %v1055
        %v1660 = vmul.f32 %v572, %v1065
        %v1661 = vmul.f32 %v573, %v1075
        %v1662 = vmul.f32 %v574, %v1085
        %v1663 = vmul.f32 %v575, %v1095
        %v1664 = vmul.f32 %v576, %v1105
        %v1665 = vmul.f32 %v577, %v1115
        %v1666 = vmul.f32 %v578, %v1125
        %v1667 = vmul.f32 %v579, %v1135
        %v1668 = vmul.f32 %v580, %v1145
        %v1669 = vmul.f32 %v581, %v1155
        %v1670 = vmul.f32 %v582, %v1165
        %v1671 = vmul.f32 %v583, %v1175
        %v1672 = vmul.f32 %v584, %v1185
        %v1673 = vmul.f32 %v585, %v1195
        %v1674 = vmul.f32 %v586, %v1205
        %v1675 = vmul.f32 %v587, %v1215
        %v1676 = vmul.f32 %v588, %v1225
        %v1677 = vmul.f32 %v589, %v1235
        %v1678 = vmul.f32 %v590, %v1245
        %v1679 = vmul.f32 %v591, %v1255
        %v1680 = vmul.f32 %v592, %v1265
        %v1681 = vmul.f32 %v593, %v1275
        %v1682 = vmul.f32 %v594, %v1285
        %v1683 = vmul.f32 %v595, %v1295
        %v1684 = vmul.f32 %v596, %v1305
        %v1685 = vmul.f32 %v597, %v1315
        %v1686 = vmul.f32 %v598, %v1325
        %v1687 = vmul.f32 %v599, %v1335
        %v1688 = vmul.f32 %v600, %v1345
        %v1689 = vmul.f32 %v601, %v1355
        %v1690 = vmul.f32 %v602, %v1365
        %v1691 = vmul.f32 %v603, %v1375
        %v1692 = vmul.f32 %v604, %v1385
        %v1693 = vmul.f32 %v605, %v1395
        %v1694 = vmul.f32 %v606, %v1405
        %v1695 = vmul.f32 %v607, %v1415
        %v1696 = vmul.f32 %v608, %v1425
        %v1697 = vmul.f32 %v609, %v1435
        %v1698 = vmul.f32 %v610, %v1445
        %v1699 = vmul.f32 %v611, %v1455
        %v1700 = vmul.f32 %v612, %v1465
        %v1701 = vmul.f32 %v613, %v1475
        %v1702 = vmul.f32 %v614, %v1485
        %v1703 = vmul.f32 %v615, %v1495
        %v1704 = vmul.f32 %v616, %v1505
        %v1705 = vmul.f32 %v617, %v1515
        %v1706 = vmul.f32 %v618, %v1525
        %v1707 = vmul.f32 %v619, %v1535
        %v1708 = vmul.f32 %v620, %v1545
        %v1709 = vmul.f32 %v621, %v1555
        %v1710 = vmul.f32 %v622, %v1565
        %v1711 = vmul.f32 %v623, %v1575
        %v1712 = vmul.f32 %v624, %v1585
        %v1713 = vmul.f32 %v625, %v1595
        %v1714 = vmul.f32 %v626, %v1605
        %v1715 = vmul.f32 %v627, %v1615
        %v1716 = vmul.f32 %v628, %v1625
        %v1717 = vmul.f32 %v629, %v1635
        %v1718 = vmul.f32 %v630, %v1645
        %v1719 = vmul.f32 %v631, %v1655
        %v1720 = vld [vmem:[%s1] sm:$0x1]
        %v1722 = vperm.slane %v1720, 0
        %v1724 = vmul.f32 %v1656, %v1722
        %v1725 = vmul.f32 %v1657, %v1722
        %v1726 = vmul.f32 %v1658, %v1722
        %v1727 = vmul.f32 %v1659, %v1722
        %v1728 = vmul.f32 %v1660, %v1722
        %v1729 = vmul.f32 %v1661, %v1722
        %v1730 = vmul.f32 %v1662, %v1722
        %v1731 = vmul.f32 %v1663, %v1722
        %v1732 = vmul.f32 %v1664, %v1722
        %v1733 = vmul.f32 %v1665, %v1722
        %v1734 = vmul.f32 %v1666, %v1722
        %v1735 = vmul.f32 %v1667, %v1722
        %v1736 = vmul.f32 %v1668, %v1722
        %v1737 = vmul.f32 %v1669, %v1722
        %v1738 = vmul.f32 %v1670, %v1722
        %v1739 = vmul.f32 %v1671, %v1722
        %v1740 = vmul.f32 %v1672, %v1722
        %v1741 = vmul.f32 %v1673, %v1722
        %v1742 = vmul.f32 %v1674, %v1722
        %v1743 = vmul.f32 %v1675, %v1722
        %v1744 = vmul.f32 %v1676, %v1722
        %v1745 = vmul.f32 %v1677, %v1722
        %v1746 = vmul.f32 %v1678, %v1722
        %v1747 = vmul.f32 %v1679, %v1722
        %v1748 = vmul.f32 %v1680, %v1722
        %v1749 = vmul.f32 %v1681, %v1722
        %v1750 = vmul.f32 %v1682, %v1722
        %v1751 = vmul.f32 %v1683, %v1722
        %v1752 = vmul.f32 %v1684, %v1722
        %v1753 = vmul.f32 %v1685, %v1722
        %v1754 = vmul.f32 %v1686, %v1722
        %v1755 = vmul.f32 %v1687, %v1722
        %v1756 = vmul.f32 %v1688, %v1722
        %v1757 = vmul.f32 %v1689, %v1722
        %v1758 = vmul.f32 %v1690, %v1722
        %v1759 = vmul.f32 %v1691, %v1722
        %v1760 = vmul.f32 %v1692, %v1722
        %v1761 = vmul.f32 %v1693, %v1722
        %v1762 = vmul.f32 %v1694, %v1722
        %v1763 = vmul.f32 %v1695, %v1722
        %v1764 = vmul.f32 %v1696, %v1722
        %v1765 = vmul.f32 %v1697, %v1722
        %v1766 = vmul.f32 %v1698, %v1722
        %v1767 = vmul.f32 %v1699, %v1722
        %v1768 = vmul.f32 %v1700, %v1722
        %v1769 = vmul.f32 %v1701, %v1722
        %v1770 = vmul.f32 %v1702, %v1722
        %v1771 = vmul.f32 %v1703, %v1722
        %v1772 = vmul.f32 %v1704, %v1722
        %v1773 = vmul.f32 %v1705, %v1722
        %v1774 = vmul.f32 %v1706, %v1722
        %v1775 = vmul.f32 %v1707, %v1722
        %v1776 = vmul.f32 %v1708, %v1722
        %v1777 = vmul.f32 %v1709, %v1722
        %v1778 = vmul.f32 %v1710, %v1722
        %v1779 = vmul.f32 %v1711, %v1722
        %v1780 = vmul.f32 %v1712, %v1722
        %v1781 = vmul.f32 %v1713, %v1722
        %v1782 = vmul.f32 %v1714, %v1722
        %v1783 = vmul.f32 %v1715, %v1722
        %v1784 = vmul.f32 %v1716, %v1722
        %v1785 = vmul.f32 %v1717, %v1722
        %v1786 = vmul.f32 %v1718, %v1722
        %v1787 = vmul.f32 %v1719, %v1722
        %v1788 = vld [vmem:[%s2] sm:$0x1]
        %v1790 = vperm.slane %v1788, 0
        %v1792 = vadd.f32 %v1724, %v1790
        %v1793 = vadd.f32 %v1725, %v1790
        %v1794 = vadd.f32 %v1726, %v1790
        %v1795 = vadd.f32 %v1727, %v1790
        %v1796 = vadd.f32 %v1728, %v1790
        %v1797 = vadd.f32 %v1729, %v1790
        %v1798 = vadd.f32 %v1730, %v1790
        %v1799 = vadd.f32 %v1731, %v1790
        %v1800 = vadd.f32 %v1732, %v1790
        %v1801 = vadd.f32 %v1733, %v1790
        %v1802 = vadd.f32 %v1734, %v1790
        %v1803 = vadd.f32 %v1735, %v1790
        %v1804 = vadd.f32 %v1736, %v1790
        %v1805 = vadd.f32 %v1737, %v1790
        %v1806 = vadd.f32 %v1738, %v1790
        %v1807 = vadd.f32 %v1739, %v1790
        %v1808 = vadd.f32 %v1740, %v1790
        %v1809 = vadd.f32 %v1741, %v1790
        %v1810 = vadd.f32 %v1742, %v1790
        %v1811 = vadd.f32 %v1743, %v1790
        %v1812 = vadd.f32 %v1744, %v1790
        %v1813 = vadd.f32 %v1745, %v1790
        %v1814 = vadd.f32 %v1746, %v1790
        %v1815 = vadd.f32 %v1747, %v1790
        %v1816 = vadd.f32 %v1748, %v1790
        %v1817 = vadd.f32 %v1749, %v1790
        %v1818 = vadd.f32 %v1750, %v1790
        %v1819 = vadd.f32 %v1751, %v1790
        %v1820 = vadd.f32 %v1752, %v1790
        %v1821 = vadd.f32 %v1753, %v1790
        %v1822 = vadd.f32 %v1754, %v1790
        %v1823 = vadd.f32 %v1755, %v1790
        %v1824 = vadd.f32 %v1756, %v1790
        %v1825 = vadd.f32 %v1757, %v1790
        %v1826 = vadd.f32 %v1758, %v1790
        %v1827 = vadd.f32 %v1759, %v1790
        %v1828 = vadd.f32 %v1760, %v1790
        %v1829 = vadd.f32 %v1761, %v1790
        %v1830 = vadd.f32 %v1762, %v1790
        %v1831 = vadd.f32 %v1763, %v1790
        %v1832 = vadd.f32 %v1764, %v1790
        %v1833 = vadd.f32 %v1765, %v1790
        %v1834 = vadd.f32 %v1766, %v1790
        %v1835 = vadd.f32 %v1767, %v1790
        %v1836 = vadd.f32 %v1768, %v1790
        %v1837 = vadd.f32 %v1769, %v1790
        %v1838 = vadd.f32 %v1770, %v1790
        %v1839 = vadd.f32 %v1771, %v1790
        %v1840 = vadd.f32 %v1772, %v1790
        %v1841 = vadd.f32 %v1773, %v1790
        %v1842 = vadd.f32 %v1774, %v1790
        %v1843 = vadd.f32 %v1775, %v1790
        %v1844 = vadd.f32 %v1776, %v1790
        %v1845 = vadd.f32 %v1777, %v1790
        %v1846 = vadd.f32 %v1778, %v1790
        %v1847 = vadd.f32 %v1779, %v1790
        %v1848 = vadd.f32 %v1780, %v1790
        %v1849 = vadd.f32 %v1781, %v1790
        %v1850 = vadd.f32 %v1782, %v1790
        %v1851 = vadd.f32 %v1783, %v1790
        %v1852 = vadd.f32 %v1784, %v1790
        %v1853 = vadd.f32 %v1785, %v1790
        %v1854 = vadd.f32 %v1786, %v1790
        %v1855 = vadd.f32 %v1787, %v1790
        %v1856 = vpack.c.bf16 %v1793, %v1792
        %v1857 = vpack.c.bf16 %v1795, %v1794
        %v1858 = vpack.c.bf16 %v1797, %v1796
        %v1859 = vpack.c.bf16 %v1799, %v1798
        %v1860 = vpack.c.bf16 %v1801, %v1800
        %v1861 = vpack.c.bf16 %v1803, %v1802
        %v1862 = vpack.c.bf16 %v1805, %v1804
        %v1863 = vpack.c.bf16 %v1807, %v1806
        %v1864 = vpack.c.bf16 %v1809, %v1808
        %v1865 = vpack.c.bf16 %v1811, %v1810
        %v1866 = vpack.c.bf16 %v1813, %v1812
        %v1867 = vpack.c.bf16 %v1815, %v1814
        %v1868 = vpack.c.bf16 %v1817, %v1816
        %v1869 = vpack.c.bf16 %v1819, %v1818
        %v1870 = vpack.c.bf16 %v1821, %v1820
        %v1871 = vpack.c.bf16 %v1823, %v1822
        %v1872 = vpack.c.bf16 %v1825, %v1824
        %v1873 = vpack.c.bf16 %v1827, %v1826
        %v1874 = vpack.c.bf16 %v1829, %v1828
        %v1875 = vpack.c.bf16 %v1831, %v1830
        %v1876 = vpack.c.bf16 %v1833, %v1832
        %v1877 = vpack.c.bf16 %v1835, %v1834
        %v1878 = vpack.c.bf16 %v1837, %v1836
        %v1879 = vpack.c.bf16 %v1839, %v1838
        %v1880 = vpack.c.bf16 %v1841, %v1840
        %v1881 = vpack.c.bf16 %v1843, %v1842
        %v1882 = vpack.c.bf16 %v1845, %v1844
        %v1883 = vpack.c.bf16 %v1847, %v1846
        %v1884 = vpack.c.bf16 %v1849, %v1848
        %v1885 = vpack.c.bf16 %v1851, %v1850
        %v1886 = vpack.c.bf16 %v1853, %v1852
        %v1887 = vpack.c.bf16 %v1855, %v1854
        %v1888 = vld [vmem:[#allocation4] sm:$0xf]
        %v1889 = vld [vmem:[#allocation4 + $0x4] sm:$0xf]
        %v1890 = vld [vmem:[#allocation4 + $0x8] sm:$0xf]
        %v1891 = vld [vmem:[#allocation4 + $0xc] sm:$0xf]
        %v1896 = vunpack.c.l.b16 %v1888
        %v1897 = vunpack.c.l.b16 %v1889
        %v1898 = vunpack.c.l.b16 %v1890
        %v1899 = vunpack.c.l.b16 %v1891
        %v1900 = vpack.c.b16 %v1897, %v1896
        %v1901 = vpack.c.b16 %v1899, %v1898
        %v1905 = vsel %vm304, %v1856, 0
        %v1908 = vsel %vm304, %v1857, 0
        %v1911 = vsel %vm304, %v1858, 0
        %v1914 = vsel %vm304, %v1859, 0
        %v1917 = vsel %vm304, %v1860, 0
        %v1920 = vsel %vm304, %v1861, 0
        %v1923 = vsel %vm304, %v1862, 0
        %v1926 = vsel %vm304, %v1863, 0
        %v1929 = vsel %vm304, %v1864, 0
        %v1932 = vsel %vm304, %v1865, 0
        %v1935 = vsel %vm304, %v1866, 0
        %v1938 = vsel %vm304, %v1867, 0
        %v1941 = vsel %vm304, %v1868, 0
        %v1944 = vsel %vm304, %v1869, 0
        %v1947 = vsel %vm304, %v1870, 0
        %v1950 = vsel %vm304, %v1871, 0
        %v1953 = vsel %vm304, %v1872, 0
        %v1956 = vsel %vm304, %v1873, 0
        %v1959 = vsel %vm304, %v1874, 0
        %v1962 = vsel %vm304, %v1875, 0
        %v1965 = vsel %vm304, %v1876, 0
        %v1968 = vsel %vm304, %v1877, 0
        %v1971 = vsel %vm304, %v1878, 0
        %v1974 = vsel %vm304, %v1879, 0
        %v1977 = vsel %vm304, %v1880, 0
        %v1980 = vsel %vm304, %v1881, 0
        %v1983 = vsel %vm304, %v1882, 0
        %v1986 = vsel %vm304, %v1883, 0
        %v1989 = vsel %vm304, %v1884, 0
        %v1992 = vsel %vm304, %v1885, 0
        %v1995 = vsel %vm304, %v1886, 0
        %v1998 = vsel %vm304, %v1887, 0
        %2000 = vmatpush.bf16.msra.mxu0 0
        %2001 = vmatpush.bf16.msra.mxu0 0
        %2002 = vmatpush.bf16.msra.mxu0 0
        %2003 = vmatpush.bf16.msra.mxu0 0
        %2004 = vmatpush.bf16.msra.mxu0 0
        %2005 = vmatpush.bf16.msra.mxu0 0
        %2006 = vmatpush.bf16.msra.mxu0 %v1901
        %2007 = vmatpush.bf16.msra.mxu0 %v1900
        %2008 = vmatmul.bf16.gmra.mxu0 %v1905
        %v2009 = vpop.f32.mrf.mxu0
        %v2010 = vadd.f32 0.0, %v2009
        %v2011 = vpop.f32.mrf.mxu0
        %v2012 = vadd.f32 0.0, %v2011
        %2013 = vmatmul.bf16.gmra.mxu0 %v1908
        %v2014 = vpop.f32.mrf.mxu0
        %v2015 = vadd.f32 0.0, %v2014
        %v2016 = vpop.f32.mrf.mxu0
        %v2017 = vadd.f32 0.0, %v2016
        %2018 = vmatmul.bf16.gmra.mxu0 %v1911
        %v2019 = vpop.f32.mrf.mxu0
        %v2020 = vadd.f32 0.0, %v2019
        %v2021 = vpop.f32.mrf.mxu0
        %v2022 = vadd.f32 0.0, %v2021
        %2023 = vmatmul.bf16.gmra.mxu0 %v1914
        %v2024 = vpop.f32.mrf.mxu0
        %v2025 = vadd.f32 0.0, %v2024
        %v2026 = vpop.f32.mrf.mxu0
        %v2027 = vadd.f32 0.0, %v2026
        %2028 = vmatmul.bf16.gmra.mxu0 %v1917
        %v2029 = vpop.f32.mrf.mxu0
        %v2030 = vadd.f32 0.0, %v2029
        %v2031 = vpop.f32.mrf.mxu0
        %v2032 = vadd.f32 0.0, %v2031
        %2033 = vmatmul.bf16.gmra.mxu0 %v1920
        %v2034 = vpop.f32.mrf.mxu0
        %v2035 = vadd.f32 0.0, %v2034
        %v2036 = vpop.f32.mrf.mxu0
        %v2037 = vadd.f32 0.0, %v2036
        %2038 = vmatmul.bf16.gmra.mxu0 %v1923
        %v2039 = vpop.f32.mrf.mxu0
        %v2040 = vadd.f32 0.0, %v2039
        %v2041 = vpop.f32.mrf.mxu0
        %v2042 = vadd.f32 0.0, %v2041
        %2043 = vmatmul.bf16.gmra.mxu0 %v1926
        %v2044 = vpop.f32.mrf.mxu0
        %v2045 = vadd.f32 0.0, %v2044
        %v2046 = vpop.f32.mrf.mxu0
        %v2047 = vadd.f32 0.0, %v2046
        %2048 = vmatmul.bf16.gmra.mxu0 %v1929
        %v2049 = vpop.f32.mrf.mxu0
        %v2050 = vadd.f32 0.0, %v2049
        %v2051 = vpop.f32.mrf.mxu0
        %v2052 = vadd.f32 0.0, %v2051
        %2053 = vmatmul.bf16.gmra.mxu0 %v1932
        %v2054 = vpop.f32.mrf.mxu0
        %v2055 = vadd.f32 0.0, %v2054
        %v2056 = vpop.f32.mrf.mxu0
        %v2057 = vadd.f32 0.0, %v2056
        %2058 = vmatmul.bf16.gmra.mxu0 %v1935
        %v2059 = vpop.f32.mrf.mxu0
        %v2060 = vadd.f32 0.0, %v2059
        %v2061 = vpop.f32.mrf.mxu0
        %v2062 = vadd.f32 0.0, %v2061
        %2063 = vmatmul.bf16.gmra.mxu0 %v1938
        %v2064 = vpop.f32.mrf.mxu0
        %v2065 = vadd.f32 0.0, %v2064
        %v2066 = vpop.f32.mrf.mxu0
        %v2067 = vadd.f32 0.0, %v2066
        %2068 = vmatmul.bf16.gmra.mxu0 %v1941
        %v2069 = vpop.f32.mrf.mxu0
        %v2070 = vadd.f32 0.0, %v2069
        %v2071 = vpop.f32.mrf.mxu0
        %v2072 = vadd.f32 0.0, %v2071
        %2073 = vmatmul.bf16.gmra.mxu0 %v1944
        %v2074 = vpop.f32.mrf.mxu0
        %v2075 = vadd.f32 0.0, %v2074
        %v2076 = vpop.f32.mrf.mxu0
        %v2077 = vadd.f32 0.0, %v2076
        %2078 = vmatmul.bf16.gmra.mxu0 %v1947
        %v2079 = vpop.f32.mrf.mxu0
        %v2080 = vadd.f32 0.0, %v2079
        %v2081 = vpop.f32.mrf.mxu0
        %v2082 = vadd.f32 0.0, %v2081
        %2083 = vmatmul.bf16.gmra.mxu0 %v1950
        %v2084 = vpop.f32.mrf.mxu0
        %v2085 = vadd.f32 0.0, %v2084
        %v2086 = vpop.f32.mrf.mxu0
        %v2087 = vadd.f32 0.0, %v2086
        %2088 = vmatmul.bf16.gmra.mxu0 %v1953
        %v2089 = vpop.f32.mrf.mxu0
        %v2090 = vadd.f32 0.0, %v2089
        %v2091 = vpop.f32.mrf.mxu0
        %v2092 = vadd.f32 0.0, %v2091
        %2093 = vmatmul.bf16.gmra.mxu0 %v1956
        %v2094 = vpop.f32.mrf.mxu0
        %v2095 = vadd.f32 0.0, %v2094
        %v2096 = vpop.f32.mrf.mxu0
        %v2097 = vadd.f32 0.0, %v2096
        %2098 = vmatmul.bf16.gmra.mxu0 %v1959
        %v2099 = vpop.f32.mrf.mxu0
        %v2100 = vadd.f32 0.0, %v2099
        %v2101 = vpop.f32.mrf.mxu0
        %v2102 = vadd.f32 0.0, %v2101
        %2103 = vmatmul.bf16.gmra.mxu0 %v1962
        %v2104 = vpop.f32.mrf.mxu0
        %v2105 = vadd.f32 0.0, %v2104
        %v2106 = vpop.f32.mrf.mxu0
        %v2107 = vadd.f32 0.0, %v2106
        %2108 = vmatmul.bf16.gmra.mxu0 %v1965
        %v2109 = vpop.f32.mrf.mxu0
        %v2110 = vadd.f32 0.0, %v2109
        %v2111 = vpop.f32.mrf.mxu0
        %v2112 = vadd.f32 0.0, %v2111
        %2113 = vmatmul.bf16.gmra.mxu0 %v1968
        %v2114 = vpop.f32.mrf.mxu0
        %v2115 = vadd.f32 0.0, %v2114
        %v2116 = vpop.f32.mrf.mxu0
        %v2117 = vadd.f32 0.0, %v2116
        %2118 = vmatmul.bf16.gmra.mxu0 %v1971
        %v2119 = vpop.f32.mrf.mxu0
        %v2120 = vadd.f32 0.0, %v2119
        %v2121 = vpop.f32.mrf.mxu0
        %v2122 = vadd.f32 0.0, %v2121
        %2123 = vmatmul.bf16.gmra.mxu0 %v1974
        %v2124 = vpop.f32.mrf.mxu0
        %v2125 = vadd.f32 0.0, %v2124
        %v2126 = vpop.f32.mrf.mxu0
        %v2127 = vadd.f32 0.0, %v2126
        %2128 = vmatmul.bf16.gmra.mxu0 %v1977
        %v2129 = vpop.f32.mrf.mxu0
        %v2130 = vadd.f32 0.0, %v2129
        %v2131 = vpop.f32.mrf.mxu0
        %v2132 = vadd.f32 0.0, %v2131
        %2133 = vmatmul.bf16.gmra.mxu0 %v1980
        %v2134 = vpop.f32.mrf.mxu0
        %v2135 = vadd.f32 0.0, %v2134
        %v2136 = vpop.f32.mrf.mxu0
        %v2137 = vadd.f32 0.0, %v2136
        %2138 = vmatmul.bf16.gmra.mxu0 %v1983
        %v2139 = vpop.f32.mrf.mxu0
        %v2140 = vadd.f32 0.0, %v2139
        %v2141 = vpop.f32.mrf.mxu0
        %v2142 = vadd.f32 0.0, %v2141
        %2143 = vmatmul.bf16.gmra.mxu0 %v1986
        %v2144 = vpop.f32.mrf.mxu0
        %v2145 = vadd.f32 0.0, %v2144
        %v2146 = vpop.f32.mrf.mxu0
        %v2147 = vadd.f32 0.0, %v2146
        %2148 = vmatmul.bf16.gmra.mxu0 %v1989
        %v2149 = vpop.f32.mrf.mxu0
        %v2150 = vadd.f32 0.0, %v2149
        %v2151 = vpop.f32.mrf.mxu0
        %v2152 = vadd.f32 0.0, %v2151
        %2153 = vmatmul.bf16.gmra.mxu0 %v1992
        %v2154 = vpop.f32.mrf.mxu0
        %v2155 = vadd.f32 0.0, %v2154
        %v2156 = vpop.f32.mrf.mxu0
        %v2157 = vadd.f32 0.0, %v2156
        %2158 = vmatmul.bf16.gmra.mxu0 %v1995
        %v2159 = vpop.f32.mrf.mxu0
        %v2160 = vadd.f32 0.0, %v2159
        %v2161 = vpop.f32.mrf.mxu0
        %v2162 = vadd.f32 0.0, %v2161
        %2163 = vmatmul.bf16.gmra.mxu0 %v1998
        %v2164 = vpop.f32.mrf.mxu0
        %v2165 = vadd.f32 0.0, %v2164
        %v2166 = vpop.f32.mrf.mxu0
        %v2167 = vadd.f32 0.0, %v2166
        %2168 = vdwg.mxu0
        %v2169 = vpack.c.bf16 %v2010, %v2010
        %v2170 = vpack.c.bf16 %v2012, %v2012
        %v2171 = vpack.c.bf16 %v2015, %v2015
        %v2172 = vpack.c.bf16 %v2017, %v2017
        %v2173 = vpack.c.bf16 %v2020, %v2020
        %v2174 = vpack.c.bf16 %v2022, %v2022
        %v2175 = vpack.c.bf16 %v2025, %v2025
        %v2176 = vpack.c.bf16 %v2027, %v2027
        %v2177 = vpack.c.bf16 %v2030, %v2030
        %v2178 = vpack.c.bf16 %v2032, %v2032
        %v2179 = vpack.c.bf16 %v2035, %v2035
        %v2180 = vpack.c.bf16 %v2037, %v2037
        %v2181 = vpack.c.bf16 %v2040, %v2040
        %v2182 = vpack.c.bf16 %v2042, %v2042
        %v2183 = vpack.c.bf16 %v2045, %v2045
        %v2184 = vpack.c.bf16 %v2047, %v2047
        %v2185 = vpack.c.bf16 %v2050, %v2050
        %v2186 = vpack.c.bf16 %v2052, %v2052
        %v2187 = vpack.c.bf16 %v2055, %v2055
        %v2188 = vpack.c.bf16 %v2057, %v2057
        %v2189 = vpack.c.bf16 %v2060, %v2060
        %v2190 = vpack.c.bf16 %v2062, %v2062
        %v2191 = vpack.c.bf16 %v2065, %v2065
        %v2192 = vpack.c.bf16 %v2067, %v2067
        %v2193 = vpack.c.bf16 %v2070, %v2070
        %v2194 = vpack.c.bf16 %v2072, %v2072
        %v2195 = vpack.c.bf16 %v2075, %v2075
        %v2196 = vpack.c.bf16 %v2077, %v2077
        %v2197 = vpack.c.bf16 %v2080, %v2080
        %v2198 = vpack.c.bf16 %v2082, %v2082
        %v2199 = vpack.c.bf16 %v2085, %v2085
        %v2200 = vpack.c.bf16 %v2087, %v2087
        %v2201 = vpack.c.bf16 %v2090, %v2090
        %v2202 = vpack.c.bf16 %v2092, %v2092
        %v2203 = vpack.c.bf16 %v2095, %v2095
        %v2204 = vpack.c.bf16 %v2097, %v2097
        %v2205 = vpack.c.bf16 %v2100, %v2100
        %v2206 = vpack.c.bf16 %v2102, %v2102
        %v2207 = vpack.c.bf16 %v2105, %v2105
        %v2208 = vpack.c.bf16 %v2107, %v2107
        %v2209 = vpack.c.bf16 %v2110, %v2110
        %v2210 = vpack.c.bf16 %v2112, %v2112
        %v2211 = vpack.c.bf16 %v2115, %v2115
        %v2212 = vpack.c.bf16 %v2117, %v2117
        %v2213 = vpack.c.bf16 %v2120, %v2120
        %v2214 = vpack.c.bf16 %v2122, %v2122
        %v2215 = vpack.c.bf16 %v2125, %v2125
        %v2216 = vpack.c.bf16 %v2127, %v2127
        %v2217 = vpack.c.bf16 %v2130, %v2130
        %v2218 = vpack.c.bf16 %v2132, %v2132
        %v2219 = vpack.c.bf16 %v2135, %v2135
        %v2220 = vpack.c.bf16 %v2137, %v2137
        %v2221 = vpack.c.bf16 %v2140, %v2140
        %v2222 = vpack.c.bf16 %v2142, %v2142
        %v2223 = vpack.c.bf16 %v2145, %v2145
        %v2224 = vpack.c.bf16 %v2147, %v2147
        %v2225 = vpack.c.bf16 %v2150, %v2150
        %v2226 = vpack.c.bf16 %v2152, %v2152
        %v2227 = vpack.c.bf16 %v2155, %v2155
        %v2228 = vpack.c.bf16 %v2157, %v2157
        %v2229 = vpack.c.bf16 %v2160, %v2160
        %v2230 = vpack.c.bf16 %v2162, %v2162
        %v2231 = vpack.c.bf16 %v2165, %v2165
        %v2232 = vpack.c.bf16 %v2167, %v2167
        %2233 = vst [vmem:[%s237] sm:$0xf] %v2169
        %2234 = vst [vmem:[%s237 + $0x4] sm:$0xf] %v2170
        %2235 = vst [vmem:[%s237 + $0x8] sm:$0xf] %v2171
        %2236 = vst [vmem:[%s237 + $0xc] sm:$0xf] %v2172
        %2237 = vst [vmem:[%s237 + $0x10] sm:$0xf] %v2173
        %2238 = vst [vmem:[%s237 + $0x14] sm:$0xf] %v2174
        %2239 = vst [vmem:[%s237 + $0x18] sm:$0xf] %v2175
        %2240 = vst [vmem:[%s237 + $0x1c] sm:$0xf] %v2176
        %2241 = vst [vmem:[%s237 + $0x20] sm:$0xf] %v2177
        %2242 = vst [vmem:[%s237 + $0x24] sm:$0xf] %v2178
        %2243 = vst [vmem:[%s237 + $0x28] sm:$0xf] %v2179
        %2244 = vst [vmem:[%s237 + $0x2c] sm:$0xf] %v2180
        %2245 = vst [vmem:[%s237 + $0x30] sm:$0xf] %v2181
        %2246 = vst [vmem:[%s237 + $0x34] sm:$0xf] %v2182
        %2247 = vst [vmem:[%s237 + $0x38] sm:$0xf] %v2183
        %2248 = vst [vmem:[%s237 + $0x3c] sm:$0xf] %v2184
        %2249 = vst [vmem:[%s237 + $0x40] sm:$0xf] %v2185
        %2250 = vst [vmem:[%s237 + $0x44] sm:$0xf] %v2186
        %2251 = vst [vmem:[%s237 + $0x48] sm:$0xf] %v2187
        %2252 = vst [vmem:[%s237 + $0x4c] sm:$0xf] %v2188
        %2253 = vst [vmem:[%s237 + $0x50] sm:$0xf] %v2189
        %2254 = vst [vmem:[%s237 + $0x54] sm:$0xf] %v2190
        %2255 = vst [vmem:[%s237 + $0x58] sm:$0xf] %v2191
        %2256 = vst [vmem:[%s237 + $0x5c] sm:$0xf] %v2192
        %2257 = vst [vmem:[%s237 + $0x60] sm:$0xf] %v2193
        %2258 = vst [vmem:[%s237 + $0x64] sm:$0xf] %v2194
        %2259 = vst [vmem:[%s237 + $0x68] sm:$0xf] %v2195
        %2260 = vst [vmem:[%s237 + $0x6c] sm:$0xf] %v2196
        %2261 = vst [vmem:[%s237 + $0x70] sm:$0xf] %v2197
        %2262 = vst [vmem:[%s237 + $0x74] sm:$0xf] %v2198
        %2263 = vst [vmem:[%s237 + $0x78] sm:$0xf] %v2199
        %2264 = vst [vmem:[%s237 + $0x7c] sm:$0xf] %v2200
        %2265 = vst [vmem:[%s237 + $0x80] sm:$0xf] %v2201
        %2266 = vst [vmem:[%s237 + $0x84] sm:$0xf] %v2202
        %2267 = vst [vmem:[%s237 + $0x88] sm:$0xf] %v2203
        %2268 = vst [vmem:[%s237 + $0x8c] sm:$0xf] %v2204
        %2269 = vst [vmem:[%s237 + $0x90] sm:$0xf] %v2205
        %2270 = vst [vmem:[%s237 + $0x94] sm:$0xf] %v2206
        %2271 = vst [vmem:[%s237 + $0x98] sm:$0xf] %v2207
        %2272 = vst [vmem:[%s237 + $0x9c] sm:$0xf] %v2208
        %2273 = vst [vmem:[%s237 + $0xa0] sm:$0xf] %v2209
        %2274 = vst [vmem:[%s237 + $0xa4] sm:$0xf] %v2210
        %2275 = vst [vmem:[%s237 + $0xa8] sm:$0xf] %v2211
        %2276 = vst [vmem:[%s237 + $0xac] sm:$0xf] %v2212
        %2277 = vst [vmem:[%s237 + $0xb0] sm:$0xf] %v2213
        %2278 = vst [vmem:[%s237 + $0xb4] sm:$0xf] %v2214
        %2279 = vst [vmem:[%s237 + $0xb8] sm:$0xf] %v2215
        %2280 = vst [vmem:[%s237 + $0xbc] sm:$0xf] %v2216
        %2281 = vst [vmem:[%s237 + $0xc0] sm:$0xf] %v2217
        %2282 = vst [vmem:[%s237 + $0xc4] sm:$0xf] %v2218
        %2283 = vst [vmem:[%s237 + $0xc8] sm:$0xf] %v2219
        %2284 = vst [vmem:[%s237 + $0xcc] sm:$0xf] %v2220
        %2285 = vst [vmem:[%s237 + $0xd0] sm:$0xf] %v2221
        %2286 = vst [vmem:[%s237 + $0xd4] sm:$0xf] %v2222
        %2287 = vst [vmem:[%s237 + $0xd8] sm:$0xf] %v2223
        %2288 = vst [vmem:[%s237 + $0xdc] sm:$0xf] %v2224
        %2289 = vst [vmem:[%s237 + $0xe0] sm:$0xf] %v2225
        %2290 = vst [vmem:[%s237 + $0xe4] sm:$0xf] %v2226
        %2291 = vst [vmem:[%s237 + $0xe8] sm:$0xf] %v2227
        %2292 = vst [vmem:[%s237 + $0xec] sm:$0xf] %v2228
        %2293 = vst [vmem:[%s237 + $0xf0] sm:$0xf] %v2229
        %2294 = vst [vmem:[%s237 + $0xf4] sm:$0xf] %v2230
        %2295 = vst [vmem:[%s237 + $0xf8] sm:$0xf] %v2231
        %2296 = vst [vmem:[%s237 + $0xfc] sm:$0xf] %v2232
        %s2297 = smul.u32 64, %s19
        %p2298 = scmp.lt.s32.totalorder %s2297, 127
        %s2299 = scalar_select %p2298, %s2297, 127
        %s2300 = smul.addr %s2299, 4
        %s2301 = scalar_lea.vmem %s4, %s2300
        // Predicated region
        $region45: #{_lambda_.3} parent=35 // pred_check
          %p2302 = pneg %p126
        $region46: #{_lambda_.3} parent=35 // pred_check_branch
          %2304 = sbr.rel (%p2302) target = $region48
        $region47: #{_lambda_.3} parent=35 // pred_region
          %s2305 = smul.u32 64, %s19
        $region48: #{_lambda_.3} parent=35 // pred_fallthru
          _
      $region36: #{_lambda_.3} parent=5 // pred_fallthru
        _
      %p2306 = scmp.le.s32.totalorder 2, %s14
      // Predicated region
      $region49: #{_lambda_.3} parent=5 // pred_check
        %p2307 = pneg %p2306
      $region50: #{_lambda_.3} parent=5 // pred_check_branch
        %2309 = sbr.rel (%p2307) target = $region52
      $region51: #{_lambda_.3} parent=5 // pred_region
        %s2310 = ssub.s32 %s14, 2
        // Predicated region
        $region53: #{_lambda_.3} parent=51 // pred_check
          %p2311 = pneg %p132
        $region54: #{_lambda_.3} parent=51 // pred_check_branch
          %2313 = sbr.rel (%p2311) target = $region56
        $region55: #{_lambda_.3} parent=51 // pred_region
          %s2314 = smul.u32 64, %s20
          %p2315 = scmp.lt.s32.totalorder %s2314, 127
          %s2316 = scalar_select %p2315, %s2314, 127
          %s2317 = smul.addr %s2316, 4
          %s2318 = scalar_lea.vmem %s4, %s2317
        $region56: #{_lambda_.3} parent=51 // pred_fallthru
          _
      $region52: #{_lambda_.3} parent=5 // pred_fallthru
        _
    $region6: #{_lambda_.3} parent=1 // loop_footer
      %s18 = sadd.s32 1, %s14
    $region7: #{_lambda_.3} parent=1 // loop_footer_branch
      %13 = sbr.rel target = $region3
    $region8: #{_lambda_.3} parent=1 // loop_exit
      _
    %2319 = vsyncpa [#allocation3], 1
    %s2320 = scalar_lea.sflag [#allocation3], 1
    %2321 = vsyncpa %s2320, 1
    %2322 = vsyncpa [#allocation5], 1

</llo_original>
